<compile_context>
chip_gen: v6e
topology: v6e:2x2x1
jax: 0.10.0
libtpu: 0.0.40
codegen_flags: <defaults>
</compile_context>

<pallas_src>
import functools

import jax
import jax.numpy as jnp
from jax.experimental import pallas as pl
from jax.experimental.pallas import tpu as pltpu


def _attention_kernel(x_ref, *refs, heads, dim_head, scale, fused_qkv,
                      q_tile, kv_tile):
    if fused_qkv:
        w_qkv_ref, w_out_ref, o_ref = refs
    else:
        wq_ref, wk_ref, wv_ref, w_out_ref, o_ref = refs

    Bb, N, D = x_ref.shape
    inner = heads * dim_head
    BH = Bb * heads
    in_dtype = x_ref.dtype          # MXU operand dtype for projections / QK^T
    pv_dtype = jnp.bfloat16         # P@V always bf16 operands, f32 accumulation

    x = x_ref[...].reshape(Bb * N, D)

    # ---- Q/K/V projections (no bias) -----------------------------------
    if fused_qkv:
        # One wide MXU call; inner % 128 == 0 so these slices are lane-aligned.
        qkv = jnp.dot(x, w_qkv_ref[...], preferred_element_type=jnp.float32)
        q = qkv[:, :inner]
        k = qkv[:, inner:2 * inner]
        v = qkv[:, 2 * inner:]
    else:
        q = jnp.dot(x, wq_ref[...], preferred_element_type=jnp.float32)
        k = jnp.dot(x, wk_ref[...], preferred_element_type=jnp.float32)
        v = jnp.dot(x, wv_ref[...], preferred_element_type=jnp.float32)

    # Fold softmax scale into q (N*inner VPU mults instead of h*N*N).
    q = q * scale

    # Head-major relayout ONCE: (Bb*N, inner) -> (Bb*heads, N, dim_head),
    # so both batched matmuls below have their batch dim leading (no hidden
    # per-matmul XLU relayouts).
    def to_head_major(t, dtype):
        t = t.reshape(Bb, N, heads, dim_head)
        t = jnp.transpose(t, (0, 2, 1, 3))            # b n h d -> b h n d
        return t.reshape(BH, N, dim_head).astype(dtype)

    qh = to_head_major(q, in_dtype)
    kh = to_head_major(k, in_dtype)
    vh = to_head_major(v, pv_dtype)

    def out_project(outh, q0, q_len):
        # outh: (BH, q_len, dim_head) f32, already softmax-normalized.
        t = outh.reshape(Bb, heads, q_len, dim_head)
        t = jnp.transpose(t, (0, 2, 1, 3)).reshape(Bb * q_len, inner)  # b h n d -> b n (h d)
        y = jnp.dot(t.astype(in_dtype), w_out_ref[...],
                    preferred_element_type=jnp.float32)
        o_ref[:, q0:q0 + q_len, :] = y.reshape(Bb, q_len, D).astype(o_ref.dtype)

    if q_tile is None:
        # ---- dense path (small N): single (BH, N, N) score block -------
        s = jnp.einsum('hqd,hkd->hqk', qh, kh,
                       preferred_element_type=jnp.float32)
        m = jnp.max(s, axis=-1, keepdims=True)
        p = jnp.exp(s - m)
        l = jnp.sum(p, axis=-1, keepdims=True)
        # Normalize AFTER P@V: N*h*d mults instead of h*N*N, one fewer
        # (BH, N, N) live buffer.
        outh = jnp.einsum('hqk,hkd->hqd', p.astype(pv_dtype), vh,
                          preferred_element_type=jnp.float32)
        outh = outh * pl.reciprocal(l, approx=True)    # EUP vrcp
        out_project(outh, 0, N)
    else:
        # ---- flash path (large N): online softmax over K/V tiles -------
        n_q = N // q_tile
        n_kv = N // kv_tile
        for qi in range(n_q):
            q0 = qi * q_tile
            q_blk = qh[:, q0:q0 + q_tile, :]
            m_i = jnp.full((BH, q_tile, 1), -jnp.inf, jnp.float32)
            l_i = jnp.zeros((BH, q_tile, 1), jnp.float32)
            acc = jnp.zeros((BH, q_tile, dim_head), jnp.float32)
            for ki in range(n_kv):
                k0 = ki * kv_tile
                k_blk = kh[:, k0:k0 + kv_tile, :]
                v_blk = vh[:, k0:k0 + kv_tile, :]
                s = jnp.einsum('hqd,hkd->hqk', q_blk, k_blk,
                               preferred_element_type=jnp.float32)
                m_new = jnp.maximum(m_i, jnp.max(s, axis=-1, keepdims=True))
                alpha = jnp.exp(m_i - m_new)
                p = jnp.exp(s - m_new)
                l_i = alpha * l_i + jnp.sum(p, axis=-1, keepdims=True)
                acc = alpha * acc + jnp.einsum(
                    'hqk,hkd->hqd', p.astype(pv_dtype), v_blk,
                    preferred_element_type=jnp.float32)
                m_i = m_new
            outh = acc * pl.reciprocal(l_i, approx=True)
            out_project(outh, q0, q_tile)


def _vmem_limit_bytes():
    """Generation-conditional scoped-VMEM budget with headroom."""
    default = 32 * 1024 * 1024
    try:
        phys = getattr(pltpu.get_tpu_info(), "vmem_capacity_bytes", None)
    except Exception:
        phys = None
    if not phys:
        return default
    # ~3/4 of physical: ~96 MiB on v5e/v6e (128 MiB), ~48 MiB on v7x (64 MiB).
    return int(min(phys * 3 // 4, 96 * 1024 * 1024))


def _pick_tiles(N):
    """Flash q/kv tile size; (None, None) -> dense (materialize scores) path."""
    if N <= 256:
        return None, None
    for t in (256, 128):   # >=256 rows feeds the 2x256 MXU on v6e/v7x well
        if N % t == 0:
            return t, t
    # TODO(synk): pad / ragged handling for N not divisible by 128.
    return None, None


def _pick_batch_block(B, N, D, heads, dim_head, itemsize, q_tile, kv_tile):
    """Block several batch elements per grid step for tiny working sets."""
    inner = heads * dim_head
    per = 2 * N * D * itemsize          # x + out blocks
    per += 4 * N * inner * 4            # qkv projection + head-major copies (f32)
    if q_tile is None:
        per += 2 * heads * N * N * 4    # scores + probs (f32)
    else:
        per += 2 * heads * q_tile * kv_tile * 4
    target = 8 * 1024 * 1024            # per-step compute-slab target
    bb = max(1, min(B, target // max(per, 1)))
    while B % bb:                       # grid must divide B exactly
        bb -= 1
    return bb


def attention_forward(x, w_qkv, w_out, *, heads, dim_head,
                      single_buffer_weights=True):
    """x: (B, N, D); w_qkv: (D, 3*heads*dim_head); w_out: (heads*dim_head, D)."""
    B, N, D = x.shape
    inner = heads * dim_head
    assert w_qkv.shape == (D, 3 * inner)
    assert w_out.shape == (inner, D)
    scale = dim_head ** -0.5

    q_tile, kv_tile = _pick_tiles(N)
    fused_qkv = (inner % 128 == 0)      # lane-aligned q/k/v slices of fused dot
    bb = _pick_batch_block(B, N, D, heads, dim_head, x.dtype.itemsize,
                           q_tile, kv_tile)

    # Weights: constant index_map -> resident copy; Buffered(1) drops the dead
    # second pipeline buffer (halves weight VMEM footprint).
    wkw = dict(pipeline_mode=pl.Buffered(1)) if single_buffer_weights else {}

    if fused_qkv:
        weight_args = (w_qkv,)
        weight_specs = [pl.BlockSpec((D, 3 * inner), lambda b: (0, 0), **wkw)]
    else:
        weight_args = (w_qkv[:, :inner], w_qkv[:, inner:2 * inner],
                       w_qkv[:, 2 * inner:])
        weight_specs = [pl.BlockSpec((D, inner), lambda b: (0, 0), **wkw)] * 3
    weight_args = weight_args + (w_out,)
    weight_specs = weight_specs + [pl.BlockSpec((inner, D), lambda b: (0, 0), **wkw)]

    kernel = functools.partial(
        _attention_kernel, heads=heads, dim_head=dim_head, scale=scale,
        fused_qkv=fused_qkv, q_tile=q_tile, kv_tile=kv_tile)

    return pl.pallas_call(
        kernel,
        out_shape=jax.ShapeDtypeStruct((B, N, D), x.dtype),
        grid_spec=pltpu.PrefetchScalarGridSpec(
            num_scalar_prefetch=0,
            grid=(B // bb,),
            in_specs=[pl.BlockSpec((bb, N, D), lambda b: (b, 0, 0))] + weight_specs,
            out_specs=pl.BlockSpec((bb, N, D), lambda b: (b, 0, 0)),
        ),
        compiler_params=pltpu.CompilerParams(
            dimension_semantics=("parallel",),   # batch axis -> megacore sharding
            vmem_limit_bytes=_vmem_limit_bytes(),
        ),
    )(x, *weight_args)


def attention(x, w_qkv, w_out, *, heads, dim_head):
    """Robust entry point: retries without Buffered(1) on older JAX builds."""
    try:
        out = attention_forward(x, w_qkv, w_out, heads=heads, dim_head=dim_head,
                                single_buffer_weights=True)
        return jax.block_until_ready(out)
    except Exception:
        out = attention_forward(x, w_qkv, w_out, heads=heads, dim_head=dim_head,
                                single_buffer_weights=False)
        return jax.block_until_ready(out)


def attention_reference(x, w_qkv, w_out, *, heads, dim_head):
    """Pure-JAX reference mirroring the PyTorch forward."""
    B, N, D = x.shape
    inner = heads * dim_head
    scale = dim_head ** -0.5
    qkv = x @ w_qkv
    q, k, v = jnp.split(qkv, 3, axis=-1)

    def to_heads(t):  # 'b n (h d) -> b h n d'
        return t.reshape(B, N, heads, dim_head).transpose(0, 2, 1, 3)

    q, k, v = map(to_heads, (q, k, v))
    dots = jnp.einsum("bhnd,bhmd->bhnm", q, k) * scale
    attn = jax.nn.softmax(dots, axis=-1)
    out = jnp.einsum("bhnm,bhmd->bhnd", attn, v)
    out = out.transpose(0, 2, 1, 3).reshape(B, N, inner)   # 'b h n d -> b n (h d)'
    return out @ w_out


if __name__ == "__main__":
    def run_case(B, N, dim, heads, dim_head):
        inner = heads * dim_head
        key = jax.random.PRNGKey(0)
        kx, kq, ko = jax.random.split(key, 3)
        x = jax.random.normal(kx, (B, N, dim), dtype=jnp.float32)
        # Deterministic "Linear" weights (PyTorch-style uniform bound), no bias.
        bq = 1.0 / (dim ** 0.5)
        bo = 1.0 / (inner ** 0.5)
        w_qkv = jax.random.uniform(kq, (dim, 3 * inner), jnp.float32, -bq, bq)
        w_out = jax.random.uniform(ko, (inner, dim), jnp.float32, -bo, bo)

        out = attention(x, w_qkv, w_out, heads=heads, dim_head=dim_head)
        out = jax.block_until_ready(out)
        ref = attention_reference(x, w_qkv, w_out, heads=heads, dim_head=dim_head)
        assert out.shape == (B, N, dim)
        # Tolerance covers bf16 P@V operands (f32 accumulation) and the
        # approximate EUP reciprocal (~2^-12) in the softmax normalization.
        assert jnp.allclose(out, ref, atol=3e-2, rtol=3e-2), (
            f"mismatch vs reference: max abs err = {jnp.max(jnp.abs(out - ref))}")

    # Small config: dense in-kernel path, split QKV weights (inner=64 not
    # lane-aligned), both batch elements blocked into one grid step.
    run_case(B=2, N=8, dim=32, heads=4, dim_head=16)
    # Moderate config: fused-QKV projection + flash-tiled online-softmax path
    # (256-row q/kv tiles), exercised so the large-N code path is validated.
    run_case(B=1, N=512, dim=128, heads=8, dim_head=64)

    print("KERNEL_OK")
</pallas_src>

<mosaic_0001>
module attributes {stable_mosaic.version = 11 : i64} {
  func.func @_attention_kernel(%arg0: i32, %arg1: memref<2x8x32xf32, #tpu.memory_space<vmem>>, %arg2: memref<32x64xf32, #tpu.memory_space<vmem>>, %arg3: memref<32x64xf32, #tpu.memory_space<vmem>>, %arg4: memref<32x64xf32, #tpu.memory_space<vmem>>, %arg5: memref<64x32xf32, #tpu.memory_space<vmem>>, %arg6: memref<2x8x32xf32, #tpu.memory_space<vmem>>) attributes {dimension_semantics = [#tpu.dimension_semantics<parallel>], iteration_bounds = array<i64: 1>, scalar_prefetch = 0 : i64, scratch_operands = 0 : i64, tpu.core_type = #tpu.core_type<tc>, window_params = [{transform_indices = @transform_0, window_bounds = array<i64: 2, 8, 32>}, {pipeline_mode = #tpu.pipeline_mode<synchronous>, transform_indices = @transform_1, window_bounds = array<i64: 32, 64>}, {pipeline_mode = #tpu.pipeline_mode<synchronous>, transform_indices = @transform_2, window_bounds = array<i64: 32, 64>}, {pipeline_mode = #tpu.pipeline_mode<synchronous>, transform_indices = @transform_3, window_bounds = array<i64: 32, 64>}, {pipeline_mode = #tpu.pipeline_mode<synchronous>, transform_indices = @transform_4, window_bounds = array<i64: 64, 32>}, {transform_indices = @transform_5, window_bounds = array<i64: 2, 8, 32>}]} {
    %c0 = arith.constant 0 : index
    %c0_0 = arith.constant 0 : index
    %c0_1 = arith.constant 0 : index
    %0 = vector.load %arg1[%c0, %c0_0, %c0_1] : memref<2x8x32xf32, #tpu.memory_space<vmem>>, vector<2x8x32xf32>
    %1 = vector.shape_cast %0 : vector<2x8x32xf32> to vector<16x32xf32>
    %c0_2 = arith.constant 0 : index
    %c0_3 = arith.constant 0 : index
    %2 = vector.load %arg2[%c0_2, %c0_3] : memref<32x64xf32, #tpu.memory_space<vmem>>, vector<32x64xf32>
    %cst = arith.constant dense<0.000000e+00> : vector<16x64xf32>
    %3 = tpu.matmul %1, %2, %cst {dimension_numbers = #tpu.dot_dimension_numbers<[1], [0], [0], [1], [0, 0, 1, 1], [], []>} : vector<16x32xf32>, vector<32x64xf32>, vector<16x64xf32> -> vector<16x64xf32>
    %c0_4 = arith.constant 0 : index
    %c0_5 = arith.constant 0 : index
    %4 = vector.load %arg3[%c0_4, %c0_5] : memref<32x64xf32, #tpu.memory_space<vmem>>, vector<32x64xf32>
    %cst_6 = arith.constant dense<0.000000e+00> : vector<16x64xf32>
    %5 = tpu.matmul %1, %4, %cst_6 {dimension_numbers = #tpu.dot_dimension_numbers<[1], [0], [0], [1], [0, 0, 1, 1], [], []>} : vector<16x32xf32>, vector<32x64xf32>, vector<16x64xf32> -> vector<16x64xf32>
    %c0_7 = arith.constant 0 : index
    %c0_8 = arith.constant 0 : index
    %6 = vector.load %arg4[%c0_7, %c0_8] : memref<32x64xf32, #tpu.memory_space<vmem>>, vector<32x64xf32>
    %cst_9 = arith.constant dense<0.000000e+00> : vector<16x64xf32>
    %7 = tpu.matmul %1, %6, %cst_9 {dimension_numbers = #tpu.dot_dimension_numbers<[1], [0], [0], [1], [0, 0, 1, 1], [], []>} : vector<16x32xf32>, vector<32x64xf32>, vector<16x64xf32> -> vector<16x64xf32>
    %cst_10 = arith.constant 2.500000e-01 : f32
    %8 = vector.broadcast %cst_10 : f32 to vector<16x64xf32>
    %9 = arith.mulf %3, %8 : vector<16x64xf32>
    %10 = vector.shape_cast %9 : vector<16x64xf32> to vector<2x8x4x16xf32>
    %11 = tpu.transpose %10, [0, 2, 1, 3] : vector<2x8x4x16xf32> -> vector<2x4x8x16xf32>
    %12 = vector.shape_cast %11 : vector<2x4x8x16xf32> to vector<8x8x16xf32>
    %13 = vector.shape_cast %5 : vector<16x64xf32> to vector<2x8x4x16xf32>
    %14 = tpu.transpose %13, [0, 2, 1, 3] : vector<2x8x4x16xf32> -> vector<2x4x8x16xf32>
    %15 = vector.shape_cast %14 : vector<2x4x8x16xf32> to vector<8x8x16xf32>
    %16 = vector.shape_cast %7 : vector<16x64xf32> to vector<2x8x4x16xf32>
    %17 = tpu.transpose %16, [0, 2, 1, 3] : vector<2x8x4x16xf32> -> vector<2x4x8x16xf32>
    %18 = vector.shape_cast %17 : vector<2x4x8x16xf32> to vector<8x8x16xf32>
    %19 = arith.truncf %18 : vector<8x8x16xf32> to vector<8x8x16xbf16>
    "tpu.trace_start"() <{level = 10 : i32, message = "hqd,hkd->hqk"}> : () -> ()
    %cst_11 = arith.constant dense<0.000000e+00> : vector<8x8x8xf32>
    %20 = tpu.matmul %12, %15, %cst_11 {dimension_numbers = #tpu.dot_dimension_numbers<[2], [2], [1], [1], [0, 0, 0, 1, 1, 1], [0], [0]>} : vector<8x8x16xf32>, vector<8x8x16xf32>, vector<8x8x8xf32> -> vector<8x8x8xf32>
    "tpu.trace_stop"() : () -> ()
    %cst_12 = arith.constant dense<0xFF800000> : vector<8x8xf32>
    %21 = vector.multi_reduction <maximumf>, %20, %cst_12 [2] : vector<8x8x8xf32> to vector<8x8xf32>
    %22 = vector.shape_cast %21 : vector<8x8xf32> to vector<8x8x1xf32>
    %23 = vector.broadcast %22 : vector<8x8x1xf32> to vector<8x8x8xf32>
    %24 = arith.subf %20, %23 : vector<8x8x8xf32>
    %25 = math.exp %24 : vector<8x8x8xf32>
    %cst_13 = arith.constant dense<0.000000e+00> : vector<8x8xf32>
    %26 = vector.multi_reduction <add>, %25, %cst_13 [2] : vector<8x8x8xf32> to vector<8x8xf32>
    %27 = vector.shape_cast %26 : vector<8x8xf32> to vector<8x8x1xf32>
    %28 = arith.truncf %25 : vector<8x8x8xf32> to vector<8x8x8xbf16>
    "tpu.trace_start"() <{level = 10 : i32, message = "hqk,hkd->hqd"}> : () -> ()
    %cst_14 = arith.constant dense<0.000000e+00> : vector<8x8x16xf32>
    %29 = tpu.matmul %28, %19, %cst_14 {dimension_numbers = #tpu.dot_dimension_numbers<[2], [1], [1], [2], [0, 0, 0, 1, 1, 2], [0], [0]>} : vector<8x8x8xbf16>, vector<8x8x16xbf16>, vector<8x8x16xf32> -> vector<8x8x16xf32>
    "tpu.trace_stop"() : () -> ()
    %30 = tpu.reciprocal %27 {approx = true} : vector<8x8x1xf32> -> vector<8x8x1xf32>
    %31 = vector.broadcast %30 : vector<8x8x1xf32> to vector<8x8x16xf32>
    %32 = arith.mulf %29, %31 : vector<8x8x16xf32>
    %33 = vector.shape_cast %32 : vector<8x8x16xf32> to vector<2x4x8x16xf32>
    %34 = tpu.transpose %33, [0, 2, 1, 3] : vector<2x4x8x16xf32> -> vector<2x8x4x16xf32>
    %35 = vector.shape_cast %34 : vector<2x8x4x16xf32> to vector<16x64xf32>
    %c0_15 = arith.constant 0 : index
    %c0_16 = arith.constant 0 : index
    %36 = vector.load %arg5[%c0_15, %c0_16] : memref<64x32xf32, #tpu.memory_space<vmem>>, vector<64x32xf32>
    %cst_17 = arith.constant dense<0.000000e+00> : vector<16x32xf32>
    %37 = tpu.matmul %35, %36, %cst_17 {dimension_numbers = #tpu.dot_dimension_numbers<[1], [0], [0], [1], [0, 0, 1, 1], [], []>} : vector<16x64xf32>, vector<64x32xf32>, vector<16x32xf32> -> vector<16x32xf32>
    %38 = vector.shape_cast %37 : vector<16x32xf32> to vector<2x8x32xf32>
    %c0_18 = arith.constant 0 : index
    %c0_19 = arith.constant 0 : index
    %c0_20 = arith.constant 0 : index
    %39 = vector.load %arg6[%c0_18, %c0_19, %c0_20] : memref<2x8x32xf32, #tpu.memory_space<vmem>>, vector<2x8x32xf32>
    tpu.vector_store %arg6[%c0_18, %c0_19, %c0_20], %38 {strides = array<i32>} : memref<2x8x32xf32, #tpu.memory_space<vmem>>, vector<2x8x32xf32>,
    return
  }
  func.func @transform_0(%arg0: i32) -> (i32, i32, i32) {
    %c0_i32 = arith.constant 0 : i32
    %c0_i32_0 = arith.constant 0 : i32
    %c0_i32_1 = arith.constant 0 : i32
    return %arg0, %c0_i32, %c0_i32_0 : i32, i32, i32
  }
  func.func @transform_1(%arg0: i32) -> (i32, i32) {
    %c0_i32 = arith.constant 0 : i32
    %c0_i32_0 = arith.constant 0 : i32
    %c0_i32_1 = arith.constant 0 : i32
    return %c0_i32, %c0_i32_0 : i32, i32
  }
  func.func @transform_2(%arg0: i32) -> (i32, i32) {
    %c0_i32 = arith.constant 0 : i32
    %c0_i32_0 = arith.constant 0 : i32
    %c0_i32_1 = arith.constant 0 : i32
    return %c0_i32, %c0_i32_0 : i32, i32
  }
  func.func @transform_3(%arg0: i32) -> (i32, i32) {
    %c0_i32 = arith.constant 0 : i32
    %c0_i32_0 = arith.constant 0 : i32
    %c0_i32_1 = arith.constant 0 : i32
    return %c0_i32, %c0_i32_0 : i32, i32
  }
  func.func @transform_4(%arg0: i32) -> (i32, i32) {
    %c0_i32 = arith.constant 0 : i32
    %c0_i32_0 = arith.constant 0 : i32
    %c0_i32_1 = arith.constant 0 : i32
    return %c0_i32, %c0_i32_0 : i32, i32
  }
  func.func @transform_5(%arg0: i32) -> (i32, i32, i32) {
    %c0_i32 = arith.constant 0 : i32
    %c0_i32_0 = arith.constant 0 : i32
    %c0_i32_1 = arith.constant 0 : i32
    return %arg0, %c0_i32, %c0_i32_0 : i32, i32, i32
  }
}

module attributes {stable_mosaic.version = 11 : i64} {
  func.func @_attention_kernel(%arg0: i32, %arg1: memref<2x8x32xf32, #tpu.memory_space<vmem>>, %arg2: memref<32x64xf32, #tpu.memory_space<vmem>>, %arg3: memref<32x64xf32, #tpu.memory_space<vmem>>, %arg4: memref<32x64xf32, #tpu.memory_space<vmem>>, %arg5: memref<64x32xf32, #tpu.memory_space<vmem>>, %arg6: memref<2x8x32xf32, #tpu.memory_space<vmem>>) attributes {dimension_semantics = [#tpu.dimension_semantics<parallel>], iteration_bounds = array<i64: 1>, scalar_prefetch = 0 : i64, scratch_operands = 0 : i64, tpu.core_type = #tpu.core_type<tc>, window_params = [{transform_indices = @transform_0, window_bounds = array<i64: 2, 8, 32>}, {pipeline_mode = #tpu.pipeline_mode<synchronous>, transform_indices = @transform_1, window_bounds = array<i64: 32, 64>}, {pipeline_mode = #tpu.pipeline_mode<synchronous>, transform_indices = @transform_2, window_bounds = array<i64: 32, 64>}, {pipeline_mode = #tpu.pipeline_mode<synchronous>, transform_indices = @transform_3, window_bounds = array<i64: 32, 64>}, {pipeline_mode = #tpu.pipeline_mode<synchronous>, transform_indices = @transform_4, window_bounds = array<i64: 64, 32>}, {transform_indices = @transform_5, window_bounds = array<i64: 2, 8, 32>}]} {
    %c0 = arith.constant 0 : index
    %c0_0 = arith.constant 0 : index
    %c0_1 = arith.constant 0 : index
    %0 = vector.load %arg1[%c0, %c0_0, %c0_1] : memref<2x8x32xf32, #tpu.memory_space<vmem>>, vector<2x8x32xf32>
    %1 = vector.shape_cast %0 : vector<2x8x32xf32> to vector<16x32xf32>
    %c0_2 = arith.constant 0 : index
    %c0_3 = arith.constant 0 : index
    %2 = vector.load %arg2[%c0_2, %c0_3] : memref<32x64xf32, #tpu.memory_space<vmem>>, vector<32x64xf32>
    %cst = arith.constant dense<0.000000e+00> : vector<16x64xf32>
    %3 = tpu.matmul %1, %2, %cst {dimension_numbers = #tpu.dot_dimension_numbers<[1], [0], [0], [1], [0, 0, 1, 1], [], []>} : vector<16x32xf32>, vector<32x64xf32>, vector<16x64xf32> -> vector<16x64xf32>
    %c0_4 = arith.constant 0 : index
    %c0_5 = arith.constant 0 : index
    %4 = vector.load %arg3[%c0_4, %c0_5] : memref<32x64xf32, #tpu.memory_space<vmem>>, vector<32x64xf32>
    %cst_6 = arith.constant dense<0.000000e+00> : vector<16x64xf32>
    %5 = tpu.matmul %1, %4, %cst_6 {dimension_numbers = #tpu.dot_dimension_numbers<[1], [0], [0], [1], [0, 0, 1, 1], [], []>} : vector<16x32xf32>, vector<32x64xf32>, vector<16x64xf32> -> vector<16x64xf32>
    %c0_7 = arith.constant 0 : index
    %c0_8 = arith.constant 0 : index
    %6 = vector.load %arg4[%c0_7, %c0_8] : memref<32x64xf32, #tpu.memory_space<vmem>>, vector<32x64xf32>
    %cst_9 = arith.constant dense<0.000000e+00> : vector<16x64xf32>
    %7 = tpu.matmul %1, %6, %cst_9 {dimension_numbers = #tpu.dot_dimension_numbers<[1], [0], [0], [1], [0, 0, 1, 1], [], []>} : vector<16x32xf32>, vector<32x64xf32>, vector<16x64xf32> -> vector<16x64xf32>
    %cst_10 = arith.constant 2.500000e-01 : f32
    %8 = vector.broadcast %cst_10 : f32 to vector<16x64xf32>
    %9 = arith.mulf %3, %8 : vector<16x64xf32>
    %10 = vector.shape_cast %9 : vector<16x64xf32> to vector<2x8x4x16xf32>
    %11 = tpu.transpose %10, [0, 2, 1, 3] : vector<2x8x4x16xf32> -> vector<2x4x8x16xf32>
    %12 = vector.shape_cast %11 : vector<2x4x8x16xf32> to vector<8x8x16xf32>
    %13 = vector.shape_cast %5 : vector<16x64xf32> to vector<2x8x4x16xf32>
    %14 = tpu.transpose %13, [0, 2, 1, 3] : vector<2x8x4x16xf32> -> vector<2x4x8x16xf32>
    %15 = vector.shape_cast %14 : vector<2x4x8x16xf32> to vector<8x8x16xf32>
    %16 = vector.shape_cast %7 : vector<16x64xf32> to vector<2x8x4x16xf32>
    %17 = tpu.transpose %16, [0, 2, 1, 3] : vector<2x8x4x16xf32> -> vector<2x4x8x16xf32>
    %18 = vector.shape_cast %17 : vector<2x4x8x16xf32> to vector<8x8x16xf32>
    %19 = arith.truncf %18 : vector<8x8x16xf32> to vector<8x8x16xbf16>
    "tpu.trace_start"() <{level = 10 : i32, message = "hqd,hkd->hqk"}> : () -> ()
    %cst_11 = arith.constant dense<0.000000e+00> : vector<8x8x8xf32>
    %20 = tpu.matmul %12, %15, %cst_11 {dimension_numbers = #tpu.dot_dimension_numbers<[2], [2], [1], [1], [0, 0, 0, 1, 1, 1], [0], [0]>} : vector<8x8x16xf32>, vector<8x8x16xf32>, vector<8x8x8xf32> -> vector<8x8x8xf32>
    "tpu.trace_stop"() : () -> ()
    %cst_12 = arith.constant dense<0xFF800000> : vector<8x8xf32>
    %21 = vector.multi_reduction <maximumf>, %20, %cst_12 [2] : vector<8x8x8xf32> to vector<8x8xf32>
    %22 = vector.shape_cast %21 : vector<8x8xf32> to vector<8x8x1xf32>
    %23 = vector.broadcast %22 : vector<8x8x1xf32> to vector<8x8x8xf32>
    %24 = arith.subf %20, %23 : vector<8x8x8xf32>
    %25 = math.exp %24 : vector<8x8x8xf32>
    %cst_13 = arith.constant dense<0.000000e+00> : vector<8x8xf32>
    %26 = vector.multi_reduction <add>, %25, %cst_13 [2] : vector<8x8x8xf32> to vector<8x8xf32>
    %27 = vector.shape_cast %26 : vector<8x8xf32> to vector<8x8x1xf32>
    %28 = arith.truncf %25 : vector<8x8x8xf32> to vector<8x8x8xbf16>
    "tpu.trace_start"() <{level = 10 : i32, message = "hqk,hkd->hqd"}> : () -> ()
    %cst_14 = arith.constant dense<0.000000e+00> : vector<8x8x16xf32>
    %29 = tpu.matmul %28, %19, %cst_14 {dimension_numbers = #tpu.dot_dimension_numbers<[2], [1], [1], [2], [0, 0, 0, 1, 1, 2], [0], [0]>} : vector<8x8x8xbf16>, vector<8x8x16xbf16>, vector<8x8x16xf32> -> vector<8x8x16xf32>
    "tpu.trace_stop"() : () -> ()
    %30 = tpu.reciprocal %27 {approx = true} : vector<8x8x1xf32> -> vector<8x8x1xf32>
    %31 = vector.broadcast %30 : vector<8x8x1xf32> to vector<8x8x16xf32>
    %32 = arith.mulf %29, %31 : vector<8x8x16xf32>
    %33 = vector.shape_cast %32 : vector<8x8x16xf32> to vector<2x4x8x16xf32>
    %34 = tpu.transpose %33, [0, 2, 1, 3] : vector<2x4x8x16xf32> -> vector<2x8x4x16xf32>
    %35 = vector.shape_cast %34 : vector<2x8x4x16xf32> to vector<16x64xf32>
    %c0_15 = arith.constant 0 : index
    %c0_16 = arith.constant 0 : index
    %36 = vector.load %arg5[%c0_15, %c0_16] : memref<64x32xf32, #tpu.memory_space<vmem>>, vector<64x32xf32>
    %cst_17 = arith.constant dense<0.000000e+00> : vector<16x32xf32>
    %37 = tpu.matmul %35, %36, %cst_17 {dimension_numbers = #tpu.dot_dimension_numbers<[1], [0], [0], [1], [0, 0, 1, 1], [], []>} : vector<16x64xf32>, vector<64x32xf32>, vector<16x32xf32> -> vector<16x32xf32>
    %38 = vector.shape_cast %37 : vector<16x32xf32> to vector<2x8x32xf32>
    %c0_18 = arith.constant 0 : index
    %c0_19 = arith.constant 0 : index
    %c0_20 = arith.constant 0 : index
    %39 = vector.load %arg6[%c0_18, %c0_19, %c0_20] : memref<2x8x32xf32, #tpu.memory_space<vmem>>, vector<2x8x32xf32>
    tpu.vector_store %arg6[%c0_18, %c0_19, %c0_20], %38 {strides = array<i32>} : memref<2x8x32xf32, #tpu.memory_space<vmem>>, vector<2x8x32xf32>,
    return
  }
  func.func @transform_0(%arg0: i32) -> (i32, i32, i32) {
    %c0_i32 = arith.constant 0 : i32
    %c0_i32_0 = arith.constant 0 : i32
    %c0_i32_1 = arith.constant 0 : i32
    return %arg0, %c0_i32, %c0_i32_0 : i32, i32, i32
  }
  func.func @transform_1(%arg0: i32) -> (i32, i32) {
    %c0_i32 = arith.constant 0 : i32
    %c0_i32_0 = arith.constant 0 : i32
    %c0_i32_1 = arith.constant 0 : i32
    return %c0_i32, %c0_i32_0 : i32, i32
  }
  func.func @transform_2(%arg0: i32) -> (i32, i32) {
    %c0_i32 = arith.constant 0 : i32
    %c0_i32_0 = arith.constant 0 : i32
    %c0_i32_1 = arith.constant 0 : i32
    return %c0_i32, %c0_i32_0 : i32, i32
  }
  func.func @transform_3(%arg0: i32) -> (i32, i32) {
    %c0_i32 = arith.constant 0 : i32
    %c0_i32_0 = arith.constant 0 : i32
    %c0_i32_1 = arith.constant 0 : i32
    return %c0_i32, %c0_i32_0 : i32, i32
  }
  func.func @transform_4(%arg0: i32) -> (i32, i32) {
    %c0_i32 = arith.constant 0 : i32
    %c0_i32_0 = arith.constant 0 : i32
    %c0_i32_1 = arith.constant 0 : i32
    return %c0_i32, %c0_i32_0 : i32, i32
  }
  func.func @transform_5(%arg0: i32) -> (i32, i32, i32) {
    %c0_i32 = arith.constant 0 : i32
    %c0_i32_0 = arith.constant 0 : i32
    %c0_i32_1 = arith.constant 0 : i32
    return %arg0, %c0_i32, %c0_i32_0 : i32, i32, i32
  }
}

</mosaic_0001>

<llo_original>
// kernel: tpu_custom_call.1
$region0: #{tpu_custom_call.1}
  #allocation0 [shape = 'u32[]', space=smem, size = 0x4, offset = 0x4, fixed_abs, tag = 'smem constant byte address 0x4 - core index']
  #allocation1 [shape = 'u32[144,128]{1,0:T(1,128)}', space=vmem, size = 0x12000, scoped, tag = 'internal scratch']
  %s0 = inlined_call_operand.hbm [shape: f32[2,8,32], index: 0, kind: input, shape index: {}]
  %s1 = inlined_call_operand.vmem [shape: f32[32,64], index: 1, kind: input, shape index: {}]
  %s2 = inlined_call_operand.vmem [shape: f32[32,64], index: 2, kind: input, shape index: {}]
  %s3 = inlined_call_operand.vmem [shape: f32[32,64], index: 3, kind: input, shape index: {}]
  %s4 = inlined_call_operand.vmem [shape: f32[64,32], index: 4, kind: input, shape index: {}]
  %s5 = inlined_call_operand.hbm [shape: f32[2,8,32], index: 5, kind: output, shape index: {}]
  %s6 = sld [smem:[#allocation0]]
  $region34: #{tpu_custom_call.1} parent=0
    _
  %s8 = ssub.s32 1, %s6
  %s9 = scalar_select 0, %s8, %s6
  $region1: #{tpu_custom_call.1} parent=0
    #allocation2 [shape = 'u8[8192]{0}', space=vmem, size = 0x2000, scoped, tag = 'input window, operand 0, single buffered']
    #allocation3 [shape = 's32[1]{0}', space=sflag, size = 0x4, scoped, tag = 'scoped memory for tpu_custom_call.1']
    #allocation4 [shape = 's32[1]{0}', space=sflag, size = 0x4, scoped, tag = 'scoped memory for tpu_custom_call.1']
    #allocation5 [shape = 'u8[8192]{0}', space=vmem, size = 0x2000, scoped, tag = 'output window, operand 0, single buffered']
    %10 = vsyncpa [#allocation3], 0
    %11 = vsyncpa [#allocation4], 0
    // Predicated region
    $region2: #{tpu_custom_call.1} parent=1 // pred_check
      _
    $region3: #{tpu_custom_call.1} parent=1 // pred_check_branch
      %13 = sbr.rel (0) target = $region5
    $region4: #{tpu_custom_call.1} parent=1 // pred_region
      %s15 = ssub.s32 256, 256
      %16 = vsyncadd [#allocation3], %s15
      %s17 = sshll.u32 [#allocation2], 4
      %s18 = int_to_ptr.vmem [resolvable:$true] %s17
      %23 = dma.hbm_to_vmem [thread:$0]  %s0, 256, %s18, [#allocation3], 128, 128, 8
    $region5: #{tpu_custom_call.1} parent=1 // pred_fallthru
      _
    // Predicated region
    $region6: #{tpu_custom_call.1} parent=1 // pred_check
      _
    $region7: #{tpu_custom_call.1} parent=1 // pred_check_branch
      %25 = sbr.rel (0) target = $region9
    $region8: #{tpu_custom_call.1} parent=1 // pred_region
      _
    $region9: #{tpu_custom_call.1} parent=1 // pred_fallthru
      _
    // Predicated region
    $region10: #{tpu_custom_call.1} parent=1 // pred_check
      _
    $region11: #{tpu_custom_call.1} parent=1 // pred_check_branch
      %27 = sbr.rel (0) target = $region13
    $region12: #{tpu_custom_call.1} parent=1 // pred_region
      _
    $region13: #{tpu_custom_call.1} parent=1 // pred_fallthru
      _
    // Predicated region
    $region14: #{tpu_custom_call.1} parent=1 // pred_check
      _
    $region15: #{tpu_custom_call.1} parent=1 // pred_check_branch
      %29 = sbr.rel (0) target = $region17
    $region16: #{tpu_custom_call.1} parent=1 // pred_region
      _
    $region17: #{tpu_custom_call.1} parent=1 // pred_fallthru
      _
    // Predicated region
    $region18: #{tpu_custom_call.1} parent=1 // pred_check
      _
    $region19: #{tpu_custom_call.1} parent=1 // pred_check_branch
      %31 = sbr.rel (0) target = $region21
    $region20: #{tpu_custom_call.1} parent=1 // pred_region
      _
    $region21: #{tpu_custom_call.1} parent=1 // pred_fallthru
      _
    // Predicated region
    $region22: #{tpu_custom_call.1} parent=1 // pred_check
      _
    $region23: #{tpu_custom_call.1} parent=1 // pred_check_branch
      %33 = sbr.rel (0) target = $region25
    $region24: #{tpu_custom_call.1} parent=1 // pred_region
      %34 = dma.done [#allocation3], 256
    $region25: #{tpu_custom_call.1} parent=1 // pred_fallthru
      _
    %v36 = vld [vmem:[#allocation2] sm:$0xff]
    %v37 = vld [vmem:[#allocation2 + $0x8] sm:$0xff]
    %v38 = vld [vmem:[%s1] sm:$0xff]
    %v39 = vld [vmem:[%s1 + $0x8] sm:$0xff]
    %v40 = vld [vmem:[%s1 + $0x10] sm:$0xff]
    %v41 = vld [vmem:[%s1 + $0x18] sm:$0xff]
    %vm42 = vcmask 261120
    %v44 = vsel %vm42, %v36, 0
    %v47 = vsel %vm42, %v37, 0
    %49 = vmatprep.subr.mxu0 0.0
    %50 = vmatpush1.msra.mxu0 0.0
    %51 = vmatprep.subr.mxu0 0.0
    %52 = vmatpush1.msra.mxu0 0.0
    %53 = vmatprep.subr.mxu0 0.0
    %54 = vmatpush1.msra.mxu0 0.0
    %55 = vmatprep.subr.mxu0 0.0
    %56 = vmatpush1.msra.mxu0 0.0
    %57 = vmatprep.subr.mxu0 0.0
    %58 = vmatpush1.msra.mxu0 0.0
    %59 = vmatprep.subr.mxu0 0.0
    %60 = vmatpush1.msra.mxu0 0.0
    %61 = vmatprep.subr.mxu0 0.0
    %62 = vmatpush1.msra.mxu0 0.0
    %63 = vmatprep.subr.mxu0 0.0
    %64 = vmatpush1.msra.mxu0 0.0
    %65 = vmatprep.subr.mxu0 0.0
    %66 = vmatpush1.msra.mxu0 0.0
    %67 = vmatprep.subr.mxu0 0.0
    %68 = vmatpush1.msra.mxu0 0.0
    %69 = vmatprep.subr.mxu0 0.0
    %70 = vmatpush1.msra.mxu0 0.0
    %71 = vmatprep.subr.mxu0 0.0
    %72 = vmatpush1.msra.mxu0 0.0
    %73 = vmatprep.subr.mxu0 0.0
    %74 = vmatpush1.msra.mxu0 %v41
    %75 = vmatprep.subr.mxu0 0.0
    %76 = vmatpush1.msra.mxu0 %v40
    %77 = vmatprep.subr.mxu0 0.0
    %78 = vmatpush1.msra.mxu0 %v39
    %79 = vmatprep.subr.mxu0 0.0
    %80 = vmatpush1.msra.mxu0 %v38
    %81 = vmatprep.subr.mxu0 0.0
    %82 = vmatpush2.msra.mxu0 0.0
    %83 = vmatprep.subr.mxu0 0.0
    %84 = vmatpush2.msra.mxu0 0.0
    %85 = vmatprep.subr.mxu0 0.0
    %86 = vmatpush2.msra.mxu0 0.0
    %87 = vmatprep.subr.mxu0 0.0
    %88 = vmatpush2.msra.mxu0 0.0
    %89 = vmatprep.subr.mxu0 0.0
    %90 = vmatpush2.msra.mxu0 0.0
    %91 = vmatprep.subr.mxu0 0.0
    %92 = vmatpush2.msra.mxu0 0.0
    %93 = vmatprep.subr.mxu0 0.0
    %94 = vmatpush2.msra.mxu0 0.0
    %95 = vmatprep.subr.mxu0 0.0
    %96 = vmatpush2.msra.mxu0 0.0
    %97 = vmatprep.subr.mxu0 0.0
    %98 = vmatpush2.msra.mxu0 0.0
    %99 = vmatprep.subr.mxu0 0.0
    %100 = vmatpush2.msra.mxu0 0.0
    %101 = vmatprep.subr.mxu0 0.0
    %102 = vmatpush2.msra.mxu0 0.0
    %103 = vmatprep.subr.mxu0 0.0
    %104 = vmatpush2.msra.mxu0 0.0
    %105 = vmatprep.subr.mxu0 0.0
    %106 = vmatpush2.msra.mxu0 0.0
    %107 = vmatprep.subr.mxu0 0.0
    %108 = vmatpush2.msra.mxu0 0.0
    %109 = vmatprep.subr.mxu0 0.0
    %110 = vmatpush2.msra.mxu0 0.0
    %111 = vmatprep.subr.mxu0 0.0
    %112 = vmatpush2.msra.mxu0 0.0
    %113 = vmatprep.mubr.f32.mxu0 0.0
    %114 = vmatmul.mubr.f32.gmra.mxu0 %v44
    %v115 = vpop.f32.mrf.mxu0
    %v116 = vadd.f32 0.0, %v115
    %v117 = vpop.f32.mrf.mxu0
    %118 = vmatprep.mubr.f32.mxu0 0.0
    %119 = vmatmul.mubr.f32.gmra.mxu0 %v47
    %v120 = vpop.f32.mrf.mxu0
    %v121 = vadd.f32 0.0, %v120
    %v122 = vpop.f32.mrf.mxu0
    %123 = vdwg.mxu0
    %v124 = vld [vmem:[%s2] sm:$0xff]
    %v125 = vld [vmem:[%s2 + $0x8] sm:$0xff]
    %v126 = vld [vmem:[%s2 + $0x10] sm:$0xff]
    %v127 = vld [vmem:[%s2 + $0x18] sm:$0xff]
    %128 = vmatprep.subr.mxu0 0.0
    %129 = vmatpush1.msra.mxu0 0.0
    %130 = vmatprep.subr.mxu0 0.0
    %131 = vmatpush1.msra.mxu0 0.0
    %132 = vmatprep.subr.mxu0 0.0
    %133 = vmatpush1.msra.mxu0 0.0
    %134 = vmatprep.subr.mxu0 0.0
    %135 = vmatpush1.msra.mxu0 0.0
    %136 = vmatprep.subr.mxu0 0.0
    %137 = vmatpush1.msra.mxu0 0.0
    %138 = vmatprep.subr.mxu0 0.0
    %139 = vmatpush1.msra.mxu0 0.0
    %140 = vmatprep.subr.mxu0 0.0
    %141 = vmatpush1.msra.mxu0 0.0
    %142 = vmatprep.subr.mxu0 0.0
    %143 = vmatpush1.msra.mxu0 0.0
    %144 = vmatprep.subr.mxu0 0.0
    %145 = vmatpush1.msra.mxu0 0.0
    %146 = vmatprep.subr.mxu0 0.0
    %147 = vmatpush1.msra.mxu0 0.0
    %148 = vmatprep.subr.mxu0 0.0
    %149 = vmatpush1.msra.mxu0 0.0
    %150 = vmatprep.subr.mxu0 0.0
    %151 = vmatpush1.msra.mxu0 0.0
    %152 = vmatprep.subr.mxu0 0.0
    %153 = vmatpush1.msra.mxu0 %v127
    %154 = vmatprep.subr.mxu0 0.0
    %155 = vmatpush1.msra.mxu0 %v126
    %156 = vmatprep.subr.mxu0 0.0
    %157 = vmatpush1.msra.mxu0 %v125
    %158 = vmatprep.subr.mxu0 0.0
    %159 = vmatpush1.msra.mxu0 %v124
    %160 = vmatprep.subr.mxu0 0.0
    %161 = vmatpush2.msra.mxu0 0.0
    %162 = vmatprep.subr.mxu0 0.0
    %163 = vmatpush2.msra.mxu0 0.0
    %164 = vmatprep.subr.mxu0 0.0
    %165 = vmatpush2.msra.mxu0 0.0
    %166 = vmatprep.subr.mxu0 0.0
    %167 = vmatpush2.msra.mxu0 0.0
    %168 = vmatprep.subr.mxu0 0.0
    %169 = vmatpush2.msra.mxu0 0.0
    %170 = vmatprep.subr.mxu0 0.0
    %171 = vmatpush2.msra.mxu0 0.0
    %172 = vmatprep.subr.mxu0 0.0
    %173 = vmatpush2.msra.mxu0 0.0
    %174 = vmatprep.subr.mxu0 0.0
    %175 = vmatpush2.msra.mxu0 0.0
    %176 = vmatprep.subr.mxu0 0.0
    %177 = vmatpush2.msra.mxu0 0.0
    %178 = vmatprep.subr.mxu0 0.0
    %179 = vmatpush2.msra.mxu0 0.0
    %180 = vmatprep.subr.mxu0 0.0
    %181 = vmatpush2.msra.mxu0 0.0
    %182 = vmatprep.subr.mxu0 0.0
    %183 = vmatpush2.msra.mxu0 0.0
    %184 = vmatprep.subr.mxu0 0.0
    %185 = vmatpush2.msra.mxu0 0.0
    %186 = vmatprep.subr.mxu0 0.0
    %187 = vmatpush2.msra.mxu0 0.0
    %188 = vmatprep.subr.mxu0 0.0
    %189 = vmatpush2.msra.mxu0 0.0
    %190 = vmatprep.subr.mxu0 0.0
    %191 = vmatpush2.msra.mxu0 0.0
    %192 = vmatprep.mubr.f32.mxu0 0.0
    %193 = vmatmul.mubr.f32.gmra.mxu0 %v44
    %v194 = vpop.f32.mrf.mxu0
    %v195 = vadd.f32 0.0, %v194
    %v196 = vpop.f32.mrf.mxu0
    %197 = vmatprep.mubr.f32.mxu0 0.0
    %198 = vmatmul.mubr.f32.gmra.mxu0 %v47
    %v199 = vpop.f32.mrf.mxu0
    %v200 = vadd.f32 0.0, %v199
    %v201 = vpop.f32.mrf.mxu0
    %202 = vdwg.mxu0
    %v203 = vld [vmem:[%s3] sm:$0xff]
    %v204 = vld [vmem:[%s3 + $0x8] sm:$0xff]
    %v205 = vld [vmem:[%s3 + $0x10] sm:$0xff]
    %v206 = vld [vmem:[%s3 + $0x18] sm:$0xff]
    %207 = vmatprep.subr.mxu0 0.0
    %208 = vmatpush1.msra.mxu0 0.0
    %209 = vmatprep.subr.mxu0 0.0
    %210 = vmatpush1.msra.mxu0 0.0
    %211 = vmatprep.subr.mxu0 0.0
    %212 = vmatpush1.msra.mxu0 0.0
    %213 = vmatprep.subr.mxu0 0.0
    %214 = vmatpush1.msra.mxu0 0.0
    %215 = vmatprep.subr.mxu0 0.0
    %216 = vmatpush1.msra.mxu0 0.0
    %217 = vmatprep.subr.mxu0 0.0
    %218 = vmatpush1.msra.mxu0 0.0
    %219 = vmatprep.subr.mxu0 0.0
    %220 = vmatpush1.msra.mxu0 0.0
    %221 = vmatprep.subr.mxu0 0.0
    %222 = vmatpush1.msra.mxu0 0.0
    %223 = vmatprep.subr.mxu0 0.0
    %224 = vmatpush1.msra.mxu0 0.0
    %225 = vmatprep.subr.mxu0 0.0
    %226 = vmatpush1.msra.mxu0 0.0
    %227 = vmatprep.subr.mxu0 0.0
    %228 = vmatpush1.msra.mxu0 0.0
    %229 = vmatprep.subr.mxu0 0.0
    %230 = vmatpush1.msra.mxu0 0.0
    %231 = vmatprep.subr.mxu0 0.0
    %232 = vmatpush1.msra.mxu0 %v206
    %233 = vmatprep.subr.mxu0 0.0
    %234 = vmatpush1.msra.mxu0 %v205
    %235 = vmatprep.subr.mxu0 0.0
    %236 = vmatpush1.msra.mxu0 %v204
    %237 = vmatprep.subr.mxu0 0.0
    %238 = vmatpush1.msra.mxu0 %v203
    %239 = vmatprep.subr.mxu0 0.0
    %240 = vmatpush2.msra.mxu0 0.0
    %241 = vmatprep.subr.mxu0 0.0
    %242 = vmatpush2.msra.mxu0 0.0
    %243 = vmatprep.subr.mxu0 0.0
    %244 = vmatpush2.msra.mxu0 0.0
    %245 = vmatprep.subr.mxu0 0.0
    %246 = vmatpush2.msra.mxu0 0.0
    %247 = vmatprep.subr.mxu0 0.0
    %248 = vmatpush2.msra.mxu0 0.0
    %249 = vmatprep.subr.mxu0 0.0
    %250 = vmatpush2.msra.mxu0 0.0
    %251 = vmatprep.subr.mxu0 0.0
    %252 = vmatpush2.msra.mxu0 0.0
    %253 = vmatprep.subr.mxu0 0.0
    %254 = vmatpush2.msra.mxu0 0.0
    %255 = vmatprep.subr.mxu0 0.0
    %256 = vmatpush2.msra.mxu0 0.0
    %257 = vmatprep.subr.mxu0 0.0
    %258 = vmatpush2.msra.mxu0 0.0
    %259 = vmatprep.subr.mxu0 0.0
    %260 = vmatpush2.msra.mxu0 0.0
    %261 = vmatprep.subr.mxu0 0.0
    %262 = vmatpush2.msra.mxu0 0.0
    %263 = vmatprep.subr.mxu0 0.0
    %264 = vmatpush2.msra.mxu0 0.0
    %265 = vmatprep.subr.mxu0 0.0
    %266 = vmatpush2.msra.mxu0 0.0
    %267 = vmatprep.subr.mxu0 0.0
    %268 = vmatpush2.msra.mxu0 0.0
    %269 = vmatprep.subr.mxu0 0.0
    %270 = vmatpush2.msra.mxu0 0.0
    %271 = vmatprep.mubr.f32.mxu0 0.0
    %272 = vmatmul.mubr.f32.gmra.mxu0 %v44
    %v273 = vpop.f32.mrf.mxu0
    %v274 = vadd.f32 0.0, %v273
    %v275 = vpop.f32.mrf.mxu0
    %276 = vmatprep.mubr.f32.mxu0 0.0
    %277 = vmatmul.mubr.f32.gmra.mxu0 %v47
    %v278 = vpop.f32.mrf.mxu0
    %v279 = vadd.f32 0.0, %v278
    %v280 = vpop.f32.mrf.mxu0
    %281 = vdwg.mxu0
    %v282 = vmul.f32 %v116, 0.25
    %v283 = vmul.f32 %v121, 0.25
    %286 = vrot.lane.b32.xlu0 %v282, 112
    %v287 = vpop.permute.xlu0 %286
    %288 = vrot.lane.b32.xlu0 %v283, 112
    %v289 = vpop.permute.xlu0 %288
    %292 = vrot.lane.b32.xlu0 %v282, 96
    %v293 = vpop.permute.xlu0 %292
    %294 = vrot.lane.b32.xlu0 %v283, 96
    %v295 = vpop.permute.xlu0 %294
    %298 = vrot.lane.b32.xlu0 %v282, 80
    %v299 = vpop.permute.xlu0 %298
    %300 = vrot.lane.b32.xlu0 %v283, 80
    %v301 = vpop.permute.xlu0 %300
    %v304 = vcombine.low %v282, %v293
    %v305 = vcombine.high %v282, %v293
    %v307 = vunpack.c.l.s4 1983009808
    %v308 = vunpack.c.0.s8 %v307
    %v309 = vlaneseq
    %v310 = vshrl.u32 %v309, 7
    %v311 = vsub.s32 %v308, %v310
    %v312 = vrot.slane %v304, %v311
    %v314 = vunpack.c.l.s4 1983009808
    %v315 = vunpack.c.0.s8 %v314
    %v316 = vlaneseq
    %v317 = vshrl.u32 %v316, 7
    %v318 = vsub.s32 %v315, %v317
    %v319 = vrot.slane %v305, %v318
    %v320 = vcombine.low %v287, %v299
    %v321 = vcombine.high %v287, %v299
    %v323 = vunpack.c.l.s4 1983009808
    %v324 = vunpack.c.0.s8 %v323
    %v325 = vlaneseq
    %v326 = vshrl.u32 %v325, 7
    %v327 = vsub.s32 %v324, %v326
    %v328 = vrot.slane %v320, %v327
    %v330 = vunpack.c.l.s4 1983009808
    %v331 = vunpack.c.0.s8 %v330
    %v332 = vlaneseq
    %v333 = vshrl.u32 %v332, 7
    %v334 = vsub.s32 %v331, %v333
    %v335 = vrot.slane %v321, %v334
    %v336 = vcombine.low %v312, %v328
    %v337 = vcombine.high %v312, %v328
    %v339 = vunpack.c.l.s4 1934713408
    %v340 = vunpack.c.0.s8 %v339
    %v341 = vlaneseq
    %v342 = vshrl.u32 %v341, 7
    %v343 = vsub.s32 %v340, %v342
    %v344 = vrot.slane %v336, %v343
    %v346 = vunpack.c.l.s4 1934713408
    %v347 = vunpack.c.0.s8 %v346
    %v348 = vlaneseq
    %v349 = vshrl.u32 %v348, 7
    %v350 = vsub.s32 %v347, %v349
    %v351 = vrot.slane %v337, %v350
    %v352 = vcombine.low %v319, %v335
    %v353 = vcombine.high %v319, %v335
    %v355 = vunpack.c.l.s4 1934713408
    %v356 = vunpack.c.0.s8 %v355
    %v357 = vlaneseq
    %v358 = vshrl.u32 %v357, 7
    %v359 = vsub.s32 %v356, %v358
    %v360 = vrot.slane %v352, %v359
    %v362 = vunpack.c.l.s4 1934713408
    %v363 = vunpack.c.0.s8 %v362
    %v364 = vlaneseq
    %v365 = vshrl.u32 %v364, 7
    %v366 = vsub.s32 %v363, %v365
    %v367 = vrot.slane %v353, %v366
    %v368 = vcombine.high %v344, 0.0
    %v369 = vcombine.high %v351, 0.0
    %v370 = vcombine.high %v360, 0.0
    %v371 = vcombine.high %v367, 0.0
    %v372 = vcombine.low %v283, %v295
    %v373 = vcombine.high %v283, %v295
    %v375 = vunpack.c.l.s4 1983009808
    %v376 = vunpack.c.0.s8 %v375
    %v377 = vlaneseq
    %v378 = vshrl.u32 %v377, 7
    %v379 = vsub.s32 %v376, %v378
    %v380 = vrot.slane %v372, %v379
    %v382 = vunpack.c.l.s4 1983009808
    %v383 = vunpack.c.0.s8 %v382
    %v384 = vlaneseq
    %v385 = vshrl.u32 %v384, 7
    %v386 = vsub.s32 %v383, %v385
    %v387 = vrot.slane %v373, %v386
    %v388 = vcombine.low %v289, %v301
    %v389 = vcombine.high %v289, %v301
    %v391 = vunpack.c.l.s4 1983009808
    %v392 = vunpack.c.0.s8 %v391
    %v393 = vlaneseq
    %v394 = vshrl.u32 %v393, 7
    %v395 = vsub.s32 %v392, %v394
    %v396 = vrot.slane %v388, %v395
    %v398 = vunpack.c.l.s4 1983009808
    %v399 = vunpack.c.0.s8 %v398
    %v400 = vlaneseq
    %v401 = vshrl.u32 %v400, 7
    %v402 = vsub.s32 %v399, %v401
    %v403 = vrot.slane %v389, %v402
    %v404 = vcombine.low %v380, %v396
    %v405 = vcombine.high %v380, %v396
    %v407 = vunpack.c.l.s4 1934713408
    %v408 = vunpack.c.0.s8 %v407
    %v409 = vlaneseq
    %v410 = vshrl.u32 %v409, 7
    %v411 = vsub.s32 %v408, %v410
    %v412 = vrot.slane %v404, %v411
    %v414 = vunpack.c.l.s4 1934713408
    %v415 = vunpack.c.0.s8 %v414
    %v416 = vlaneseq
    %v417 = vshrl.u32 %v416, 7
    %v418 = vsub.s32 %v415, %v417
    %v419 = vrot.slane %v405, %v418
    %v420 = vcombine.low %v387, %v403
    %v421 = vcombine.high %v387, %v403
    %v423 = vunpack.c.l.s4 1934713408
    %v424 = vunpack.c.0.s8 %v423
    %v425 = vlaneseq
    %v426 = vshrl.u32 %v425, 7
    %v427 = vsub.s32 %v424, %v426
    %v428 = vrot.slane %v420, %v427
    %v430 = vunpack.c.l.s4 1934713408
    %v431 = vunpack.c.0.s8 %v430
    %v432 = vlaneseq
    %v433 = vshrl.u32 %v432, 7
    %v434 = vsub.s32 %v431, %v433
    %v435 = vrot.slane %v421, %v434
    %v436 = vcombine.high %v412, 0.0
    %v437 = vcombine.high %v419, 0.0
    %v438 = vcombine.high %v428, 0.0
    %v439 = vcombine.high %v435, 0.0
    %v440 = vcombine.low %v344, %v351
    %v442 = vunpack.c.l.s4 1983009808
    %v443 = vunpack.c.0.s8 %v442
    %v444 = vlaneseq
    %v445 = vshrl.u32 %v444, 7
    %v446 = vsub.s32 %v443, %v445
    %v447 = vrot.slane %v440, %v446
    %v448 = vcombine.low %v368, %v369
    %v450 = vunpack.c.l.s4 1983009808
    %v451 = vunpack.c.0.s8 %v450
    %v452 = vlaneseq
    %v453 = vshrl.u32 %v452, 7
    %v454 = vsub.s32 %v451, %v453
    %v455 = vrot.slane %v448, %v454
    %v456 = vcombine.low %v360, %v367
    %v458 = vunpack.c.l.s4 1983009808
    %v459 = vunpack.c.0.s8 %v458
    %v460 = vlaneseq
    %v461 = vshrl.u32 %v460, 7
    %v462 = vsub.s32 %v459, %v461
    %v463 = vrot.slane %v456, %v462
    %v464 = vcombine.low %v370, %v371
    %v466 = vunpack.c.l.s4 1983009808
    %v467 = vunpack.c.0.s8 %v466
    %v468 = vlaneseq
    %v469 = vshrl.u32 %v468, 7
    %v470 = vsub.s32 %v467, %v469
    %v471 = vrot.slane %v464, %v470
    %v472 = vcombine.low %v447, %v455
    %v473 = vcombine.high %v447, %v455
    %v475 = vunpack.c.l.s4 1934713408
    %v476 = vunpack.c.0.s8 %v475
    %v477 = vlaneseq
    %v478 = vshrl.u32 %v477, 7
    %v479 = vsub.s32 %v476, %v478
    %v480 = vrot.slane %v472, %v479
    %v482 = vunpack.c.l.s4 1934713408
    %v483 = vunpack.c.0.s8 %v482
    %v484 = vlaneseq
    %v485 = vshrl.u32 %v484, 7
    %v486 = vsub.s32 %v483, %v485
    %v487 = vrot.slane %v473, %v486
    %v488 = vcombine.low %v463, %v471
    %v489 = vcombine.high %v463, %v471
    %v491 = vunpack.c.l.s4 1934713408
    %v492 = vunpack.c.0.s8 %v491
    %v493 = vlaneseq
    %v494 = vshrl.u32 %v493, 7
    %v495 = vsub.s32 %v492, %v494
    %v496 = vrot.slane %v488, %v495
    %v498 = vunpack.c.l.s4 1934713408
    %v499 = vunpack.c.0.s8 %v498
    %v500 = vlaneseq
    %v501 = vshrl.u32 %v500, 7
    %v502 = vsub.s32 %v499, %v501
    %v503 = vrot.slane %v489, %v502
    %v504 = vcombine.low %v480, %v496
    %v505 = vcombine.high %v480, %v496
    %v506 = vcombine.low %v487, %v503
    %v507 = vcombine.high %v487, %v503
    %v508 = vcombine.low %v412, %v419
    %v510 = vunpack.c.l.s4 1983009808
    %v511 = vunpack.c.0.s8 %v510
    %v512 = vlaneseq
    %v513 = vshrl.u32 %v512, 7
    %v514 = vsub.s32 %v511, %v513
    %v515 = vrot.slane %v508, %v514
    %v516 = vcombine.low %v436, %v437
    %v518 = vunpack.c.l.s4 1983009808
    %v519 = vunpack.c.0.s8 %v518
    %v520 = vlaneseq
    %v521 = vshrl.u32 %v520, 7
    %v522 = vsub.s32 %v519, %v521
    %v523 = vrot.slane %v516, %v522
    %v524 = vcombine.low %v428, %v435
    %v526 = vunpack.c.l.s4 1983009808
    %v527 = vunpack.c.0.s8 %v526
    %v528 = vlaneseq
    %v529 = vshrl.u32 %v528, 7
    %v530 = vsub.s32 %v527, %v529
    %v531 = vrot.slane %v524, %v530
    %v532 = vcombine.low %v438, %v439
    %v534 = vunpack.c.l.s4 1983009808
    %v535 = vunpack.c.0.s8 %v534
    %v536 = vlaneseq
    %v537 = vshrl.u32 %v536, 7
    %v538 = vsub.s32 %v535, %v537
    %v539 = vrot.slane %v532, %v538
    %v540 = vcombine.low %v515, %v523
    %v541 = vcombine.high %v515, %v523
    %v543 = vunpack.c.l.s4 1934713408
    %v544 = vunpack.c.0.s8 %v543
    %v545 = vlaneseq
    %v546 = vshrl.u32 %v545, 7
    %v547 = vsub.s32 %v544, %v546
    %v548 = vrot.slane %v540, %v547
    %v550 = vunpack.c.l.s4 1934713408
    %v551 = vunpack.c.0.s8 %v550
    %v552 = vlaneseq
    %v553 = vshrl.u32 %v552, 7
    %v554 = vsub.s32 %v551, %v553
    %v555 = vrot.slane %v541, %v554
    %v556 = vcombine.low %v531, %v539
    %v557 = vcombine.high %v531, %v539
    %v559 = vunpack.c.l.s4 1934713408
    %v560 = vunpack.c.0.s8 %v559
    %v561 = vlaneseq
    %v562 = vshrl.u32 %v561, 7
    %v563 = vsub.s32 %v560, %v562
    %v564 = vrot.slane %v556, %v563
    %v566 = vunpack.c.l.s4 1934713408
    %v567 = vunpack.c.0.s8 %v566
    %v568 = vlaneseq
    %v569 = vshrl.u32 %v568, 7
    %v570 = vsub.s32 %v567, %v569
    %v571 = vrot.slane %v557, %v570
    %v572 = vcombine.low %v548, %v564
    %v573 = vcombine.high %v548, %v564
    %v574 = vcombine.low %v555, %v571
    %v575 = vcombine.high %v555, %v571
    %578 = vrot.lane.b32.xlu0 %v195, 112
    %v579 = vpop.permute.xlu0 %578
    %580 = vrot.lane.b32.xlu0 %v200, 112
    %v581 = vpop.permute.xlu0 %580
    %584 = vrot.lane.b32.xlu0 %v195, 96
    %v585 = vpop.permute.xlu0 %584
    %586 = vrot.lane.b32.xlu0 %v200, 96
    %v587 = vpop.permute.xlu0 %586
    %590 = vrot.lane.b32.xlu0 %v195, 80
    %v591 = vpop.permute.xlu0 %590
    %592 = vrot.lane.b32.xlu0 %v200, 80
    %v593 = vpop.permute.xlu0 %592
    %v596 = vcombine.low %v195, %v585
    %v597 = vcombine.high %v195, %v585
    %v599 = vunpack.c.l.s4 1983009808
    %v600 = vunpack.c.0.s8 %v599
    %v601 = vlaneseq
    %v602 = vshrl.u32 %v601, 7
    %v603 = vsub.s32 %v600, %v602
    %v604 = vrot.slane %v596, %v603
    %v606 = vunpack.c.l.s4 1983009808
    %v607 = vunpack.c.0.s8 %v606
    %v608 = vlaneseq
    %v609 = vshrl.u32 %v608, 7
    %v610 = vsub.s32 %v607, %v609
    %v611 = vrot.slane %v597, %v610
    %v612 = vcombine.low %v579, %v591
    %v613 = vcombine.high %v579, %v591
    %v615 = vunpack.c.l.s4 1983009808
    %v616 = vunpack.c.0.s8 %v615
    %v617 = vlaneseq
    %v618 = vshrl.u32 %v617, 7
    %v619 = vsub.s32 %v616, %v618
    %v620 = vrot.slane %v612, %v619
    %v622 = vunpack.c.l.s4 1983009808
    %v623 = vunpack.c.0.s8 %v622
    %v624 = vlaneseq
    %v625 = vshrl.u32 %v624, 7
    %v626 = vsub.s32 %v623, %v625
    %v627 = vrot.slane %v613, %v626
    %v628 = vcombine.low %v604, %v620
    %v629 = vcombine.high %v604, %v620
    %v631 = vunpack.c.l.s4 1934713408
    %v632 = vunpack.c.0.s8 %v631
    %v633 = vlaneseq
    %v634 = vshrl.u32 %v633, 7
    %v635 = vsub.s32 %v632, %v634
    %v636 = vrot.slane %v628, %v635
    %v638 = vunpack.c.l.s4 1934713408
    %v639 = vunpack.c.0.s8 %v638
    %v640 = vlaneseq
    %v641 = vshrl.u32 %v640, 7
    %v642 = vsub.s32 %v639, %v641
    %v643 = vrot.slane %v629, %v642
    %v644 = vcombine.low %v611, %v627
    %v645 = vcombine.high %v611, %v627
    %v647 = vunpack.c.l.s4 1934713408
    %v648 = vunpack.c.0.s8 %v647
    %v649 = vlaneseq
    %v650 = vshrl.u32 %v649, 7
    %v651 = vsub.s32 %v648, %v650
    %v652 = vrot.slane %v644, %v651
    %v654 = vunpack.c.l.s4 1934713408
    %v655 = vunpack.c.0.s8 %v654
    %v656 = vlaneseq
    %v657 = vshrl.u32 %v656, 7
    %v658 = vsub.s32 %v655, %v657
    %v659 = vrot.slane %v645, %v658
    %v660 = vcombine.high %v636, 0.0
    %v661 = vcombine.high %v643, 0.0
    %v662 = vcombine.high %v652, 0.0
    %v663 = vcombine.high %v659, 0.0
    %v664 = vcombine.low %v200, %v587
    %v665 = vcombine.high %v200, %v587
    %v667 = vunpack.c.l.s4 1983009808
    %v668 = vunpack.c.0.s8 %v667
    %v669 = vlaneseq
    %v670 = vshrl.u32 %v669, 7
    %v671 = vsub.s32 %v668, %v670
    %v672 = vrot.slane %v664, %v671
    %v674 = vunpack.c.l.s4 1983009808
    %v675 = vunpack.c.0.s8 %v674
    %v676 = vlaneseq
    %v677 = vshrl.u32 %v676, 7
    %v678 = vsub.s32 %v675, %v677
    %v679 = vrot.slane %v665, %v678
    %v680 = vcombine.low %v581, %v593
    %v681 = vcombine.high %v581, %v593
    %v683 = vunpack.c.l.s4 1983009808
    %v684 = vunpack.c.0.s8 %v683
    %v685 = vlaneseq
    %v686 = vshrl.u32 %v685, 7
    %v687 = vsub.s32 %v684, %v686
    %v688 = vrot.slane %v680, %v687
    %v690 = vunpack.c.l.s4 1983009808
    %v691 = vunpack.c.0.s8 %v690
    %v692 = vlaneseq
    %v693 = vshrl.u32 %v692, 7
    %v694 = vsub.s32 %v691, %v693
    %v695 = vrot.slane %v681, %v694
    %v696 = vcombine.low %v672, %v688
    %v697 = vcombine.high %v672, %v688
    %v699 = vunpack.c.l.s4 1934713408
    %v700 = vunpack.c.0.s8 %v699
    %v701 = vlaneseq
    %v702 = vshrl.u32 %v701, 7
    %v703 = vsub.s32 %v700, %v702
    %v704 = vrot.slane %v696, %v703
    %v706 = vunpack.c.l.s4 1934713408
    %v707 = vunpack.c.0.s8 %v706
    %v708 = vlaneseq
    %v709 = vshrl.u32 %v708, 7
    %v710 = vsub.s32 %v707, %v709
    %v711 = vrot.slane %v697, %v710
    %v712 = vcombine.low %v679, %v695
    %v713 = vcombine.high %v679, %v695
    %v715 = vunpack.c.l.s4 1934713408
    %v716 = vunpack.c.0.s8 %v715
    %v717 = vlaneseq
    %v718 = vshrl.u32 %v717, 7
    %v719 = vsub.s32 %v716, %v718
    %v720 = vrot.slane %v712, %v719
    %v722 = vunpack.c.l.s4 1934713408
    %v723 = vunpack.c.0.s8 %v722
    %v724 = vlaneseq
    %v725 = vshrl.u32 %v724, 7
    %v726 = vsub.s32 %v723, %v725
    %v727 = vrot.slane %v713, %v726
    %v728 = vcombine.high %v704, 0.0
    %v729 = vcombine.high %v711, 0.0
    %v730 = vcombine.high %v720, 0.0
    %v731 = vcombine.high %v727, 0.0
    %v732 = vcombine.low %v636, %v643
    %v734 = vunpack.c.l.s4 1983009808
    %v735 = vunpack.c.0.s8 %v734
    %v736 = vlaneseq
    %v737 = vshrl.u32 %v736, 7
    %v738 = vsub.s32 %v735, %v737
    %v739 = vrot.slane %v732, %v738
    %v740 = vcombine.low %v660, %v661
    %v742 = vunpack.c.l.s4 1983009808
    %v743 = vunpack.c.0.s8 %v742
    %v744 = vlaneseq
    %v745 = vshrl.u32 %v744, 7
    %v746 = vsub.s32 %v743, %v745
    %v747 = vrot.slane %v740, %v746
    %v748 = vcombine.low %v652, %v659
    %v750 = vunpack.c.l.s4 1983009808
    %v751 = vunpack.c.0.s8 %v750
    %v752 = vlaneseq
    %v753 = vshrl.u32 %v752, 7
    %v754 = vsub.s32 %v751, %v753
    %v755 = vrot.slane %v748, %v754
    %v756 = vcombine.low %v662, %v663
    %v758 = vunpack.c.l.s4 1983009808
    %v759 = vunpack.c.0.s8 %v758
    %v760 = vlaneseq
    %v761 = vshrl.u32 %v760, 7
    %v762 = vsub.s32 %v759, %v761
    %v763 = vrot.slane %v756, %v762
    %v764 = vcombine.low %v739, %v747
    %v765 = vcombine.high %v739, %v747
    %v767 = vunpack.c.l.s4 1934713408
    %v768 = vunpack.c.0.s8 %v767
    %v769 = vlaneseq
    %v770 = vshrl.u32 %v769, 7
    %v771 = vsub.s32 %v768, %v770
    %v772 = vrot.slane %v764, %v771
    %v774 = vunpack.c.l.s4 1934713408
    %v775 = vunpack.c.0.s8 %v774
    %v776 = vlaneseq
    %v777 = vshrl.u32 %v776, 7
    %v778 = vsub.s32 %v775, %v777
    %v779 = vrot.slane %v765, %v778
    %v780 = vcombine.low %v755, %v763
    %v781 = vcombine.high %v755, %v763
    %v783 = vunpack.c.l.s4 1934713408
    %v784 = vunpack.c.0.s8 %v783
    %v785 = vlaneseq
    %v786 = vshrl.u32 %v785, 7
    %v787 = vsub.s32 %v784, %v786
    %v788 = vrot.slane %v780, %v787
    %v790 = vunpack.c.l.s4 1934713408
    %v791 = vunpack.c.0.s8 %v790
    %v792 = vlaneseq
    %v793 = vshrl.u32 %v792, 7
    %v794 = vsub.s32 %v791, %v793
    %v795 = vrot.slane %v781, %v794
    %v796 = vcombine.low %v772, %v788
    %v797 = vcombine.high %v772, %v788
    %v798 = vcombine.low %v779, %v795
    %v799 = vcombine.high %v779, %v795
    %v800 = vcombine.low %v704, %v711
    %v802 = vunpack.c.l.s4 1983009808
    %v803 = vunpack.c.0.s8 %v802
    %v804 = vlaneseq
    %v805 = vshrl.u32 %v804, 7
    %v806 = vsub.s32 %v803, %v805
    %v807 = vrot.slane %v800, %v806
    %v808 = vcombine.low %v728, %v729
    %v810 = vunpack.c.l.s4 1983009808
    %v811 = vunpack.c.0.s8 %v810
    %v812 = vlaneseq
    %v813 = vshrl.u32 %v812, 7
    %v814 = vsub.s32 %v811, %v813
    %v815 = vrot.slane %v808, %v814
    %v816 = vcombine.low %v720, %v727
    %v818 = vunpack.c.l.s4 1983009808
    %v819 = vunpack.c.0.s8 %v818
    %v820 = vlaneseq
    %v821 = vshrl.u32 %v820, 7
    %v822 = vsub.s32 %v819, %v821
    %v823 = vrot.slane %v816, %v822
    %v824 = vcombine.low %v730, %v731
    %v826 = vunpack.c.l.s4 1983009808
    %v827 = vunpack.c.0.s8 %v826
    %v828 = vlaneseq
    %v829 = vshrl.u32 %v828, 7
    %v830 = vsub.s32 %v827, %v829
    %v831 = vrot.slane %v824, %v830
    %v832 = vcombine.low %v807, %v815
    %v833 = vcombine.high %v807, %v815
    %v835 = vunpack.c.l.s4 1934713408
    %v836 = vunpack.c.0.s8 %v835
    %v837 = vlaneseq
    %v838 = vshrl.u32 %v837, 7
    %v839 = vsub.s32 %v836, %v838
    %v840 = vrot.slane %v832, %v839
    %v842 = vunpack.c.l.s4 1934713408
    %v843 = vunpack.c.0.s8 %v842
    %v844 = vlaneseq
    %v845 = vshrl.u32 %v844, 7
    %v846 = vsub.s32 %v843, %v845
    %v847 = vrot.slane %v833, %v846
    %v848 = vcombine.low %v823, %v831
    %v849 = vcombine.high %v823, %v831
    %v851 = vunpack.c.l.s4 1934713408
    %v852 = vunpack.c.0.s8 %v851
    %v853 = vlaneseq
    %v854 = vshrl.u32 %v853, 7
    %v855 = vsub.s32 %v852, %v854
    %v856 = vrot.slane %v848, %v855
    %v858 = vunpack.c.l.s4 1934713408
    %v859 = vunpack.c.0.s8 %v858
    %v860 = vlaneseq
    %v861 = vshrl.u32 %v860, 7
    %v862 = vsub.s32 %v859, %v861
    %v863 = vrot.slane %v849, %v862
    %v864 = vcombine.low %v840, %v856
    %v865 = vcombine.high %v840, %v856
    %v866 = vcombine.low %v847, %v863
    %v867 = vcombine.high %v847, %v863
    %870 = vrot.lane.b32.xlu0 %v274, 112
    %v871 = vpop.permute.xlu0 %870
    %872 = vrot.lane.b32.xlu0 %v279, 112
    %v873 = vpop.permute.xlu0 %872
    %876 = vrot.lane.b32.xlu0 %v274, 96
    %v877 = vpop.permute.xlu0 %876
    %878 = vrot.lane.b32.xlu0 %v279, 96
    %v879 = vpop.permute.xlu0 %878
    %882 = vrot.lane.b32.xlu0 %v274, 80
    %v883 = vpop.permute.xlu0 %882
    %884 = vrot.lane.b32.xlu0 %v279, 80
    %v885 = vpop.permute.xlu0 %884
    %v888 = vcombine.low %v274, %v877
    %v889 = vcombine.high %v274, %v877
    %v891 = vunpack.c.l.s4 1983009808
    %v892 = vunpack.c.0.s8 %v891
    %v893 = vlaneseq
    %v894 = vshrl.u32 %v893, 7
    %v895 = vsub.s32 %v892, %v894
    %v896 = vrot.slane %v888, %v895
    %v898 = vunpack.c.l.s4 1983009808
    %v899 = vunpack.c.0.s8 %v898
    %v900 = vlaneseq
    %v901 = vshrl.u32 %v900, 7
    %v902 = vsub.s32 %v899, %v901
    %v903 = vrot.slane %v889, %v902
    %v904 = vcombine.low %v871, %v883
    %v905 = vcombine.high %v871, %v883
    %v907 = vunpack.c.l.s4 1983009808
    %v908 = vunpack.c.0.s8 %v907
    %v909 = vlaneseq
    %v910 = vshrl.u32 %v909, 7
    %v911 = vsub.s32 %v908, %v910
    %v912 = vrot.slane %v904, %v911
    %v914 = vunpack.c.l.s4 1983009808
    %v915 = vunpack.c.0.s8 %v914
    %v916 = vlaneseq
    %v917 = vshrl.u32 %v916, 7
    %v918 = vsub.s32 %v915, %v917
    %v919 = vrot.slane %v905, %v918
    %v920 = vcombine.low %v896, %v912
    %v921 = vcombine.high %v896, %v912
    %v923 = vunpack.c.l.s4 1934713408
    %v924 = vunpack.c.0.s8 %v923
    %v925 = vlaneseq
    %v926 = vshrl.u32 %v925, 7
    %v927 = vsub.s32 %v924, %v926
    %v928 = vrot.slane %v920, %v927
    %v930 = vunpack.c.l.s4 1934713408
    %v931 = vunpack.c.0.s8 %v930
    %v932 = vlaneseq
    %v933 = vshrl.u32 %v932, 7
    %v934 = vsub.s32 %v931, %v933
    %v935 = vrot.slane %v921, %v934
    %v936 = vcombine.low %v903, %v919
    %v937 = vcombine.high %v903, %v919
    %v939 = vunpack.c.l.s4 1934713408
    %v940 = vunpack.c.0.s8 %v939
    %v941 = vlaneseq
    %v942 = vshrl.u32 %v941, 7
    %v943 = vsub.s32 %v940, %v942
    %v944 = vrot.slane %v936, %v943
    %v946 = vunpack.c.l.s4 1934713408
    %v947 = vunpack.c.0.s8 %v946
    %v948 = vlaneseq
    %v949 = vshrl.u32 %v948, 7
    %v950 = vsub.s32 %v947, %v949
    %v951 = vrot.slane %v937, %v950
    %v952 = vcombine.high %v928, 0.0
    %v953 = vcombine.high %v935, 0.0
    %v954 = vcombine.high %v944, 0.0
    %v955 = vcombine.high %v951, 0.0
    %v956 = vcombine.low %v279, %v879
    %v957 = vcombine.high %v279, %v879
    %v959 = vunpack.c.l.s4 1983009808
    %v960 = vunpack.c.0.s8 %v959
    %v961 = vlaneseq
    %v962 = vshrl.u32 %v961, 7
    %v963 = vsub.s32 %v960, %v962
    %v964 = vrot.slane %v956, %v963
    %v966 = vunpack.c.l.s4 1983009808
    %v967 = vunpack.c.0.s8 %v966
    %v968 = vlaneseq
    %v969 = vshrl.u32 %v968, 7
    %v970 = vsub.s32 %v967, %v969
    %v971 = vrot.slane %v957, %v970
    %v972 = vcombine.low %v873, %v885
    %v973 = vcombine.high %v873, %v885
    %v975 = vunpack.c.l.s4 1983009808
    %v976 = vunpack.c.0.s8 %v975
    %v977 = vlaneseq
    %v978 = vshrl.u32 %v977, 7
    %v979 = vsub.s32 %v976, %v978
    %v980 = vrot.slane %v972, %v979
    %v982 = vunpack.c.l.s4 1983009808
    %v983 = vunpack.c.0.s8 %v982
    %v984 = vlaneseq
    %v985 = vshrl.u32 %v984, 7
    %v986 = vsub.s32 %v983, %v985
    %v987 = vrot.slane %v973, %v986
    %v988 = vcombine.low %v964, %v980
    %v989 = vcombine.high %v964, %v980
    %v991 = vunpack.c.l.s4 1934713408
    %v992 = vunpack.c.0.s8 %v991
    %v993 = vlaneseq
    %v994 = vshrl.u32 %v993, 7
    %v995 = vsub.s32 %v992, %v994
    %v996 = vrot.slane %v988, %v995
    %v998 = vunpack.c.l.s4 1934713408
    %v999 = vunpack.c.0.s8 %v998
    %v1000 = vlaneseq
    %v1001 = vshrl.u32 %v1000, 7
    %v1002 = vsub.s32 %v999, %v1001
    %v1003 = vrot.slane %v989, %v1002
    %v1004 = vcombine.low %v971, %v987
    %v1005 = vcombine.high %v971, %v987
    %v1007 = vunpack.c.l.s4 1934713408
    %v1008 = vunpack.c.0.s8 %v1007
    %v1009 = vlaneseq
    %v1010 = vshrl.u32 %v1009, 7
    %v1011 = vsub.s32 %v1008, %v1010
    %v1012 = vrot.slane %v1004, %v1011
    %v1014 = vunpack.c.l.s4 1934713408
    %v1015 = vunpack.c.0.s8 %v1014
    %v1016 = vlaneseq
    %v1017 = vshrl.u32 %v1016, 7
    %v1018 = vsub.s32 %v1015, %v1017
    %v1019 = vrot.slane %v1005, %v1018
    %v1020 = vcombine.high %v996, 0.0
    %v1021 = vcombine.high %v1003, 0.0
    %v1022 = vcombine.high %v1012, 0.0
    %v1023 = vcombine.high %v1019, 0.0
    %v1024 = vcombine.low %v928, %v935
    %v1026 = vunpack.c.l.s4 1983009808
    %v1027 = vunpack.c.0.s8 %v1026
    %v1028 = vlaneseq
    %v1029 = vshrl.u32 %v1028, 7
    %v1030 = vsub.s32 %v1027, %v1029
    %v1031 = vrot.slane %v1024, %v1030
    %v1032 = vcombine.low %v952, %v953
    %v1034 = vunpack.c.l.s4 1983009808
    %v1035 = vunpack.c.0.s8 %v1034
    %v1036 = vlaneseq
    %v1037 = vshrl.u32 %v1036, 7
    %v1038 = vsub.s32 %v1035, %v1037
    %v1039 = vrot.slane %v1032, %v1038
    %v1040 = vcombine.low %v944, %v951
    %v1042 = vunpack.c.l.s4 1983009808
    %v1043 = vunpack.c.0.s8 %v1042
    %v1044 = vlaneseq
    %v1045 = vshrl.u32 %v1044, 7
    %v1046 = vsub.s32 %v1043, %v1045
    %v1047 = vrot.slane %v1040, %v1046
    %v1048 = vcombine.low %v954, %v955
    %v1050 = vunpack.c.l.s4 1983009808
    %v1051 = vunpack.c.0.s8 %v1050
    %v1052 = vlaneseq
    %v1053 = vshrl.u32 %v1052, 7
    %v1054 = vsub.s32 %v1051, %v1053
    %v1055 = vrot.slane %v1048, %v1054
    %v1056 = vcombine.low %v1031, %v1039
    %v1057 = vcombine.high %v1031, %v1039
    %v1059 = vunpack.c.l.s4 1934713408
    %v1060 = vunpack.c.0.s8 %v1059
    %v1061 = vlaneseq
    %v1062 = vshrl.u32 %v1061, 7
    %v1063 = vsub.s32 %v1060, %v1062
    %v1064 = vrot.slane %v1056, %v1063
    %v1066 = vunpack.c.l.s4 1934713408
    %v1067 = vunpack.c.0.s8 %v1066
    %v1068 = vlaneseq
    %v1069 = vshrl.u32 %v1068, 7
    %v1070 = vsub.s32 %v1067, %v1069
    %v1071 = vrot.slane %v1057, %v1070
    %v1072 = vcombine.low %v1047, %v1055
    %v1073 = vcombine.high %v1047, %v1055
    %v1075 = vunpack.c.l.s4 1934713408
    %v1076 = vunpack.c.0.s8 %v1075
    %v1077 = vlaneseq
    %v1078 = vshrl.u32 %v1077, 7
    %v1079 = vsub.s32 %v1076, %v1078
    %v1080 = vrot.slane %v1072, %v1079
    %v1082 = vunpack.c.l.s4 1934713408
    %v1083 = vunpack.c.0.s8 %v1082
    %v1084 = vlaneseq
    %v1085 = vshrl.u32 %v1084, 7
    %v1086 = vsub.s32 %v1083, %v1085
    %v1087 = vrot.slane %v1073, %v1086
    %v1088 = vcombine.low %v1064, %v1080
    %v1089 = vcombine.high %v1064, %v1080
    %v1090 = vcombine.low %v1071, %v1087
    %v1091 = vcombine.high %v1071, %v1087
    %v1092 = vcombine.low %v996, %v1003
    %v1094 = vunpack.c.l.s4 1983009808
    %v1095 = vunpack.c.0.s8 %v1094
    %v1096 = vlaneseq
    %v1097 = vshrl.u32 %v1096, 7
    %v1098 = vsub.s32 %v1095, %v1097
    %v1099 = vrot.slane %v1092, %v1098
    %v1100 = vcombine.low %v1020, %v1021
    %v1102 = vunpack.c.l.s4 1983009808
    %v1103 = vunpack.c.0.s8 %v1102
    %v1104 = vlaneseq
    %v1105 = vshrl.u32 %v1104, 7
    %v1106 = vsub.s32 %v1103, %v1105
    %v1107 = vrot.slane %v1100, %v1106
    %v1108 = vcombine.low %v1012, %v1019
    %v1110 = vunpack.c.l.s4 1983009808
    %v1111 = vunpack.c.0.s8 %v1110
    %v1112 = vlaneseq
    %v1113 = vshrl.u32 %v1112, 7
    %v1114 = vsub.s32 %v1111, %v1113
    %v1115 = vrot.slane %v1108, %v1114
    %v1116 = vcombine.low %v1022, %v1023
    %v1118 = vunpack.c.l.s4 1983009808
    %v1119 = vunpack.c.0.s8 %v1118
    %v1120 = vlaneseq
    %v1121 = vshrl.u32 %v1120, 7
    %v1122 = vsub.s32 %v1119, %v1121
    %v1123 = vrot.slane %v1116, %v1122
    %v1124 = vcombine.low %v1099, %v1107
    %v1125 = vcombine.high %v1099, %v1107
    %v1127 = vunpack.c.l.s4 1934713408
    %v1128 = vunpack.c.0.s8 %v1127
    %v1129 = vlaneseq
    %v1130 = vshrl.u32 %v1129, 7
    %v1131 = vsub.s32 %v1128, %v1130
    %v1132 = vrot.slane %v1124, %v1131
    %v1134 = vunpack.c.l.s4 1934713408
    %v1135 = vunpack.c.0.s8 %v1134
    %v1136 = vlaneseq
    %v1137 = vshrl.u32 %v1136, 7
    %v1138 = vsub.s32 %v1135, %v1137
    %v1139 = vrot.slane %v1125, %v1138
    %v1140 = vcombine.low %v1115, %v1123
    %v1141 = vcombine.high %v1115, %v1123
    %v1143 = vunpack.c.l.s4 1934713408
    %v1144 = vunpack.c.0.s8 %v1143
    %v1145 = vlaneseq
    %v1146 = vshrl.u32 %v1145, 7
    %v1147 = vsub.s32 %v1144, %v1146
    %v1148 = vrot.slane %v1140, %v1147
    %v1150 = vunpack.c.l.s4 1934713408
    %v1151 = vunpack.c.0.s8 %v1150
    %v1152 = vlaneseq
    %v1153 = vshrl.u32 %v1152, 7
    %v1154 = vsub.s32 %v1151, %v1153
    %v1155 = vrot.slane %v1141, %v1154
    %v1156 = vcombine.low %v1132, %v1148
    %v1157 = vcombine.high %v1132, %v1148
    %v1158 = vcombine.low %v1139, %v1155
    %v1159 = vcombine.high %v1139, %v1155
    %v1160 = vpack.c.bf16 %v1088, %v1088
    %v1161 = vpack.c.bf16 %v1089, %v1089
    %v1162 = vpack.c.bf16 %v1090, %v1090
    %v1163 = vpack.c.bf16 %v1091, %v1091
    %v1164 = vpack.c.bf16 %v1156, %v1156
    %v1165 = vpack.c.bf16 %v1157, %v1157
    %v1166 = vpack.c.bf16 %v1158, %v1158
    %v1167 = vpack.c.bf16 %v1159, %v1159
    %vm1168 = vcmask 130048
    %v1170 = vsel %vm1168, %v504, 0
    %v1173 = vsel %vm1168, %v796, 0
    %1175 = vmatprep.subr.mxu0 0.0
    %1176 = vmatpush1.xpose.msra.mxu0 0.0
    %1177 = vmatprep.subr.mxu0 0.0
    %1178 = vmatpush1.xpose.msra.mxu0 0.0
    %1179 = vmatprep.subr.mxu0 0.0
    %1180 = vmatpush1.xpose.msra.mxu0 0.0
    %1181 = vmatprep.subr.mxu0 0.0
    %1182 = vmatpush1.xpose.msra.mxu0 0.0
    %1183 = vmatprep.subr.mxu0 0.0
    %1184 = vmatpush1.xpose.msra.mxu0 0.0
    %1185 = vmatprep.subr.mxu0 0.0
    %1186 = vmatpush1.xpose.msra.mxu0 0.0
    %1187 = vmatprep.subr.mxu0 0.0
    %1188 = vmatpush1.xpose.msra.mxu0 0.0
    %1189 = vmatprep.subr.mxu0 0.0
    %1190 = vmatpush1.xpose.msra.mxu0 0.0
    %1191 = vmatprep.subr.mxu0 0.0
    %1192 = vmatpush1.xpose.msra.mxu0 0.0
    %1193 = vmatprep.subr.mxu0 0.0
    %1194 = vmatpush1.xpose.msra.mxu0 0.0
    %1195 = vmatprep.subr.mxu0 0.0
    %1196 = vmatpush1.xpose.msra.mxu0 0.0
    %1197 = vmatprep.subr.mxu0 0.0
    %1198 = vmatpush1.xpose.msra.mxu0 0.0
    %1199 = vmatprep.subr.mxu0 0.0
    %1200 = vmatpush1.xpose.msra.mxu0 0.0
    %1201 = vmatprep.subr.mxu0 0.0
    %1202 = vmatpush1.xpose.msra.mxu0 0.0
    %1203 = vmatprep.subr.mxu0 0.0
    %1204 = vmatpush1.xpose.msra.mxu0 0.0
    %1205 = vmatprep.subr.mxu0 0.0
    %1206 = vmatpush1.xpose.msra.mxu0 %v1173
    %1207 = vmatprep.subr.mxu0 0.0
    %1208 = vmatpush2.xpose.msra.mxu0 0.0
    %1209 = vmatprep.subr.mxu0 0.0
    %1210 = vmatpush2.xpose.msra.mxu0 0.0
    %1211 = vmatprep.subr.mxu0 0.0
    %1212 = vmatpush2.xpose.msra.mxu0 0.0
    %1213 = vmatprep.subr.mxu0 0.0
    %1214 = vmatpush2.xpose.msra.mxu0 0.0
    %1215 = vmatprep.subr.mxu0 0.0
    %1216 = vmatpush2.xpose.msra.mxu0 0.0
    %1217 = vmatprep.subr.mxu0 0.0
    %1218 = vmatpush2.xpose.msra.mxu0 0.0
    %1219 = vmatprep.subr.mxu0 0.0
    %1220 = vmatpush2.xpose.msra.mxu0 0.0
    %1221 = vmatprep.subr.mxu0 0.0
    %1222 = vmatpush2.xpose.msra.mxu0 0.0
    %1223 = vmatprep.subr.mxu0 0.0
    %1224 = vmatpush2.xpose.msra.mxu0 0.0
    %1225 = vmatprep.subr.mxu0 0.0
    %1226 = vmatpush2.xpose.msra.mxu0 0.0
    %1227 = vmatprep.subr.mxu0 0.0
    %1228 = vmatpush2.xpose.msra.mxu0 0.0
    %1229 = vmatprep.subr.mxu0 0.0
    %1230 = vmatpush2.xpose.msra.mxu0 0.0
    %1231 = vmatprep.subr.mxu0 0.0
    %1232 = vmatpush2.xpose.msra.mxu0 0.0
    %1233 = vmatprep.subr.mxu0 0.0
    %1234 = vmatpush2.xpose.msra.mxu0 0.0
    %1235 = vmatprep.subr.mxu0 0.0
    %1236 = vmatpush2.xpose.msra.mxu0 0.0
    %1237 = vmatprep.subr.mxu0 0.0
    %1238 = vmatpush2.xpose.msra.mxu0 0.0
    %1239 = vmatprep.mubr.f32.mxu0 0.0
    %1240 = vmatmul.mubr.f32.gmra.mxu0 %v1170
    %v1241 = vpop.f32.mrf.mxu0
    %v1242 = vadd.f32 0.0, %v1241
    %v1243 = vpop.f32.mrf.mxu0
    %1244 = vdwg.mxu0
    %v1246 = vsel %vm1168, %v505, 0
    %v1249 = vsel %vm1168, %v797, 0
    %1251 = vmatprep.subr.mxu0 0.0
    %1252 = vmatpush1.xpose.msra.mxu0 0.0
    %1253 = vmatprep.subr.mxu0 0.0
    %1254 = vmatpush1.xpose.msra.mxu0 0.0
    %1255 = vmatprep.subr.mxu0 0.0
    %1256 = vmatpush1.xpose.msra.mxu0 0.0
    %1257 = vmatprep.subr.mxu0 0.0
    %1258 = vmatpush1.xpose.msra.mxu0 0.0
    %1259 = vmatprep.subr.mxu0 0.0
    %1260 = vmatpush1.xpose.msra.mxu0 0.0
    %1261 = vmatprep.subr.mxu0 0.0
    %1262 = vmatpush1.xpose.msra.mxu0 0.0
    %1263 = vmatprep.subr.mxu0 0.0
    %1264 = vmatpush1.xpose.msra.mxu0 0.0
    %1265 = vmatprep.subr.mxu0 0.0
    %1266 = vmatpush1.xpose.msra.mxu0 0.0
    %1267 = vmatprep.subr.mxu0 0.0
    %1268 = vmatpush1.xpose.msra.mxu0 0.0
    %1269 = vmatprep.subr.mxu0 0.0
    %1270 = vmatpush1.xpose.msra.mxu0 0.0
    %1271 = vmatprep.subr.mxu0 0.0
    %1272 = vmatpush1.xpose.msra.mxu0 0.0
    %1273 = vmatprep.subr.mxu0 0.0
    %1274 = vmatpush1.xpose.msra.mxu0 0.0
    %1275 = vmatprep.subr.mxu0 0.0
    %1276 = vmatpush1.xpose.msra.mxu0 0.0
    %1277 = vmatprep.subr.mxu0 0.0
    %1278 = vmatpush1.xpose.msra.mxu0 0.0
    %1279 = vmatprep.subr.mxu0 0.0
    %1280 = vmatpush1.xpose.msra.mxu0 0.0
    %1281 = vmatprep.subr.mxu0 0.0
    %1282 = vmatpush1.xpose.msra.mxu0 %v1249
    %1283 = vmatprep.subr.mxu0 0.0
    %1284 = vmatpush2.xpose.msra.mxu0 0.0
    %1285 = vmatprep.subr.mxu0 0.0
    %1286 = vmatpush2.xpose.msra.mxu0 0.0
    %1287 = vmatprep.subr.mxu0 0.0
    %1288 = vmatpush2.xpose.msra.mxu0 0.0
    %1289 = vmatprep.subr.mxu0 0.0
    %1290 = vmatpush2.xpose.msra.mxu0 0.0
    %1291 = vmatprep.subr.mxu0 0.0
    %1292 = vmatpush2.xpose.msra.mxu0 0.0
    %1293 = vmatprep.subr.mxu0 0.0
    %1294 = vmatpush2.xpose.msra.mxu0 0.0
    %1295 = vmatprep.subr.mxu0 0.0
    %1296 = vmatpush2.xpose.msra.mxu0 0.0
    %1297 = vmatprep.subr.mxu0 0.0
    %1298 = vmatpush2.xpose.msra.mxu0 0.0
    %1299 = vmatprep.subr.mxu0 0.0
    %1300 = vmatpush2.xpose.msra.mxu0 0.0
    %1301 = vmatprep.subr.mxu0 0.0
    %1302 = vmatpush2.xpose.msra.mxu0 0.0
    %1303 = vmatprep.subr.mxu0 0.0
    %1304 = vmatpush2.xpose.msra.mxu0 0.0
    %1305 = vmatprep.subr.mxu0 0.0
    %1306 = vmatpush2.xpose.msra.mxu0 0.0
    %1307 = vmatprep.subr.mxu0 0.0
    %1308 = vmatpush2.xpose.msra.mxu0 0.0
    %1309 = vmatprep.subr.mxu0 0.0
    %1310 = vmatpush2.xpose.msra.mxu0 0.0
    %1311 = vmatprep.subr.mxu0 0.0
    %1312 = vmatpush2.xpose.msra.mxu0 0.0
    %1313 = vmatprep.subr.mxu0 0.0
    %1314 = vmatpush2.xpose.msra.mxu0 0.0
    %1315 = vmatprep.mubr.f32.mxu0 0.0
    %1316 = vmatmul.mubr.f32.gmra.mxu0 %v1246
    %v1317 = vpop.f32.mrf.mxu0
    %v1318 = vadd.f32 0.0, %v1317
    %v1319 = vpop.f32.mrf.mxu0
    %1320 = vdwg.mxu0
    %v1322 = vsel %vm1168, %v506, 0
    %v1325 = vsel %vm1168, %v798, 0
    %1327 = vmatprep.subr.mxu0 0.0
    %1328 = vmatpush1.xpose.msra.mxu0 0.0
    %1329 = vmatprep.subr.mxu0 0.0
    %1330 = vmatpush1.xpose.msra.mxu0 0.0
    %1331 = vmatprep.subr.mxu0 0.0
    %1332 = vmatpush1.xpose.msra.mxu0 0.0
    %1333 = vmatprep.subr.mxu0 0.0
    %1334 = vmatpush1.xpose.msra.mxu0 0.0
    %1335 = vmatprep.subr.mxu0 0.0
    %1336 = vmatpush1.xpose.msra.mxu0 0.0
    %1337 = vmatprep.subr.mxu0 0.0
    %1338 = vmatpush1.xpose.msra.mxu0 0.0
    %1339 = vmatprep.subr.mxu0 0.0
    %1340 = vmatpush1.xpose.msra.mxu0 0.0
    %1341 = vmatprep.subr.mxu0 0.0
    %1342 = vmatpush1.xpose.msra.mxu0 0.0
    %1343 = vmatprep.subr.mxu0 0.0
    %1344 = vmatpush1.xpose.msra.mxu0 0.0
    %1345 = vmatprep.subr.mxu0 0.0
    %1346 = vmatpush1.xpose.msra.mxu0 0.0
    %1347 = vmatprep.subr.mxu0 0.0
    %1348 = vmatpush1.xpose.msra.mxu0 0.0
    %1349 = vmatprep.subr.mxu0 0.0
    %1350 = vmatpush1.xpose.msra.mxu0 0.0
    %1351 = vmatprep.subr.mxu0 0.0
    %1352 = vmatpush1.xpose.msra.mxu0 0.0
    %1353 = vmatprep.subr.mxu0 0.0
    %1354 = vmatpush1.xpose.msra.mxu0 0.0
    %1355 = vmatprep.subr.mxu0 0.0
    %1356 = vmatpush1.xpose.msra.mxu0 0.0
    %1357 = vmatprep.subr.mxu0 0.0
    %1358 = vmatpush1.xpose.msra.mxu0 %v1325
    %1359 = vmatprep.subr.mxu0 0.0
    %1360 = vmatpush2.xpose.msra.mxu0 0.0
    %1361 = vmatprep.subr.mxu0 0.0
    %1362 = vmatpush2.xpose.msra.mxu0 0.0
    %1363 = vmatprep.subr.mxu0 0.0
    %1364 = vmatpush2.xpose.msra.mxu0 0.0
    %1365 = vmatprep.subr.mxu0 0.0
    %1366 = vmatpush2.xpose.msra.mxu0 0.0
    %1367 = vmatprep.subr.mxu0 0.0
    %1368 = vmatpush2.xpose.msra.mxu0 0.0
    %1369 = vmatprep.subr.mxu0 0.0
    %1370 = vmatpush2.xpose.msra.mxu0 0.0
    %1371 = vmatprep.subr.mxu0 0.0
    %1372 = vmatpush2.xpose.msra.mxu0 0.0
    %1373 = vmatprep.subr.mxu0 0.0
    %1374 = vmatpush2.xpose.msra.mxu0 0.0
    %1375 = vmatprep.subr.mxu0 0.0
    %1376 = vmatpush2.xpose.msra.mxu0 0.0
    %1377 = vmatprep.subr.mxu0 0.0
    %1378 = vmatpush2.xpose.msra.mxu0 0.0
    %1379 = vmatprep.subr.mxu0 0.0
    %1380 = vmatpush2.xpose.msra.mxu0 0.0
    %1381 = vmatprep.subr.mxu0 0.0
    %1382 = vmatpush2.xpose.msra.mxu0 0.0
    %1383 = vmatprep.subr.mxu0 0.0
    %1384 = vmatpush2.xpose.msra.mxu0 0.0
    %1385 = vmatprep.subr.mxu0 0.0
    %1386 = vmatpush2.xpose.msra.mxu0 0.0
    %1387 = vmatprep.subr.mxu0 0.0
    %1388 = vmatpush2.xpose.msra.mxu0 0.0
    %1389 = vmatprep.subr.mxu0 0.0
    %1390 = vmatpush2.xpose.msra.mxu0 0.0
    %1391 = vmatprep.mubr.f32.mxu0 0.0
    %1392 = vmatmul.mubr.f32.gmra.mxu0 %v1322
    %v1393 = vpop.f32.mrf.mxu0
    %v1394 = vadd.f32 0.0, %v1393
    %v1395 = vpop.f32.mrf.mxu0
    %1396 = vdwg.mxu0
    %v1398 = vsel %vm1168, %v507, 0
    %v1401 = vsel %vm1168, %v799, 0
    %1403 = vmatprep.subr.mxu0 0.0
    %1404 = vmatpush1.xpose.msra.mxu0 0.0
    %1405 = vmatprep.subr.mxu0 0.0
    %1406 = vmatpush1.xpose.msra.mxu0 0.0
    %1407 = vmatprep.subr.mxu0 0.0
    %1408 = vmatpush1.xpose.msra.mxu0 0.0
    %1409 = vmatprep.subr.mxu0 0.0
    %1410 = vmatpush1.xpose.msra.mxu0 0.0
    %1411 = vmatprep.subr.mxu0 0.0
    %1412 = vmatpush1.xpose.msra.mxu0 0.0
    %1413 = vmatprep.subr.mxu0 0.0
    %1414 = vmatpush1.xpose.msra.mxu0 0.0
    %1415 = vmatprep.subr.mxu0 0.0
    %1416 = vmatpush1.xpose.msra.mxu0 0.0
    %1417 = vmatprep.subr.mxu0 0.0
    %1418 = vmatpush1.xpose.msra.mxu0 0.0
    %1419 = vmatprep.subr.mxu0 0.0
    %1420 = vmatpush1.xpose.msra.mxu0 0.0
    %1421 = vmatprep.subr.mxu0 0.0
    %1422 = vmatpush1.xpose.msra.mxu0 0.0
    %1423 = vmatprep.subr.mxu0 0.0
    %1424 = vmatpush1.xpose.msra.mxu0 0.0
    %1425 = vmatprep.subr.mxu0 0.0
    %1426 = vmatpush1.xpose.msra.mxu0 0.0
    %1427 = vmatprep.subr.mxu0 0.0
    %1428 = vmatpush1.xpose.msra.mxu0 0.0
    %1429 = vmatprep.subr.mxu0 0.0
    %1430 = vmatpush1.xpose.msra.mxu0 0.0
    %1431 = vmatprep.subr.mxu0 0.0
    %1432 = vmatpush1.xpose.msra.mxu0 0.0
    %1433 = vmatprep.subr.mxu0 0.0
    %1434 = vmatpush1.xpose.msra.mxu0 %v1401
    %1435 = vmatprep.subr.mxu0 0.0
    %1436 = vmatpush2.xpose.msra.mxu0 0.0
    %1437 = vmatprep.subr.mxu0 0.0
    %1438 = vmatpush2.xpose.msra.mxu0 0.0
    %1439 = vmatprep.subr.mxu0 0.0
    %1440 = vmatpush2.xpose.msra.mxu0 0.0
    %1441 = vmatprep.subr.mxu0 0.0
    %1442 = vmatpush2.xpose.msra.mxu0 0.0
    %1443 = vmatprep.subr.mxu0 0.0
    %1444 = vmatpush2.xpose.msra.mxu0 0.0
    %1445 = vmatprep.subr.mxu0 0.0
    %1446 = vmatpush2.xpose.msra.mxu0 0.0
    %1447 = vmatprep.subr.mxu0 0.0
    %1448 = vmatpush2.xpose.msra.mxu0 0.0
    %1449 = vmatprep.subr.mxu0 0.0
    %1450 = vmatpush2.xpose.msra.mxu0 0.0
    %1451 = vmatprep.subr.mxu0 0.0
    %1452 = vmatpush2.xpose.msra.mxu0 0.0
    %1453 = vmatprep.subr.mxu0 0.0
    %1454 = vmatpush2.xpose.msra.mxu0 0.0
    %1455 = vmatprep.subr.mxu0 0.0
    %1456 = vmatpush2.xpose.msra.mxu0 0.0
    %1457 = vmatprep.subr.mxu0 0.0
    %1458 = vmatpush2.xpose.msra.mxu0 0.0
    %1459 = vmatprep.subr.mxu0 0.0
    %1460 = vmatpush2.xpose.msra.mxu0 0.0
    %1461 = vmatprep.subr.mxu0 0.0
    %1462 = vmatpush2.xpose.msra.mxu0 0.0
    %1463 = vmatprep.subr.mxu0 0.0
    %1464 = vmatpush2.xpose.msra.mxu0 0.0
    %1465 = vmatprep.subr.mxu0 0.0
    %1466 = vmatpush2.xpose.msra.mxu0 0.0
    %1467 = vmatprep.mubr.f32.mxu0 0.0
    %1468 = vmatmul.mubr.f32.gmra.mxu0 %v1398
    %v1469 = vpop.f32.mrf.mxu0
    %v1470 = vadd.f32 0.0, %v1469
    %v1471 = vpop.f32.mrf.mxu0
    %1472 = vdwg.mxu0
    %v1474 = vsel %vm1168, %v572, 0
    %v1477 = vsel %vm1168, %v864, 0
    %1479 = vmatprep.subr.mxu0 0.0
    %1480 = vmatpush1.xpose.msra.mxu0 0.0
    %1481 = vmatprep.subr.mxu0 0.0
    %1482 = vmatpush1.xpose.msra.mxu0 0.0
    %1483 = vmatprep.subr.mxu0 0.0
    %1484 = vmatpush1.xpose.msra.mxu0 0.0
    %1485 = vmatprep.subr.mxu0 0.0
    %1486 = vmatpush1.xpose.msra.mxu0 0.0
    %1487 = vmatprep.subr.mxu0 0.0
    %1488 = vmatpush1.xpose.msra.mxu0 0.0
    %1489 = vmatprep.subr.mxu0 0.0
    %1490 = vmatpush1.xpose.msra.mxu0 0.0
    %1491 = vmatprep.subr.mxu0 0.0
    %1492 = vmatpush1.xpose.msra.mxu0 0.0
    %1493 = vmatprep.subr.mxu0 0.0
    %1494 = vmatpush1.xpose.msra.mxu0 0.0
    %1495 = vmatprep.subr.mxu0 0.0
    %1496 = vmatpush1.xpose.msra.mxu0 0.0
    %1497 = vmatprep.subr.mxu0 0.0
    %1498 = vmatpush1.xpose.msra.mxu0 0.0
    %1499 = vmatprep.subr.mxu0 0.0
    %1500 = vmatpush1.xpose.msra.mxu0 0.0
    %1501 = vmatprep.subr.mxu0 0.0
    %1502 = vmatpush1.xpose.msra.mxu0 0.0
    %1503 = vmatprep.subr.mxu0 0.0
    %1504 = vmatpush1.xpose.msra.mxu0 0.0
    %1505 = vmatprep.subr.mxu0 0.0
    %1506 = vmatpush1.xpose.msra.mxu0 0.0
    %1507 = vmatprep.subr.mxu0 0.0
    %1508 = vmatpush1.xpose.msra.mxu0 0.0
    %1509 = vmatprep.subr.mxu0 0.0
    %1510 = vmatpush1.xpose.msra.mxu0 %v1477
    %1511 = vmatprep.subr.mxu0 0.0
    %1512 = vmatpush2.xpose.msra.mxu0 0.0
    %1513 = vmatprep.subr.mxu0 0.0
    %1514 = vmatpush2.xpose.msra.mxu0 0.0
    %1515 = vmatprep.subr.mxu0 0.0
    %1516 = vmatpush2.xpose.msra.mxu0 0.0
    %1517 = vmatprep.subr.mxu0 0.0
    %1518 = vmatpush2.xpose.msra.mxu0 0.0
    %1519 = vmatprep.subr.mxu0 0.0
    %1520 = vmatpush2.xpose.msra.mxu0 0.0
    %1521 = vmatprep.subr.mxu0 0.0
    %1522 = vmatpush2.xpose.msra.mxu0 0.0
    %1523 = vmatprep.subr.mxu0 0.0
    %1524 = vmatpush2.xpose.msra.mxu0 0.0
    %1525 = vmatprep.subr.mxu0 0.0
    %1526 = vmatpush2.xpose.msra.mxu0 0.0
    %1527 = vmatprep.subr.mxu0 0.0
    %1528 = vmatpush2.xpose.msra.mxu0 0.0
    %1529 = vmatprep.subr.mxu0 0.0
    %1530 = vmatpush2.xpose.msra.mxu0 0.0
    %1531 = vmatprep.subr.mxu0 0.0
    %1532 = vmatpush2.xpose.msra.mxu0 0.0
    %1533 = vmatprep.subr.mxu0 0.0
    %1534 = vmatpush2.xpose.msra.mxu0 0.0
    %1535 = vmatprep.subr.mxu0 0.0
    %1536 = vmatpush2.xpose.msra.mxu0 0.0
    %1537 = vmatprep.subr.mxu0 0.0
    %1538 = vmatpush2.xpose.msra.mxu0 0.0
    %1539 = vmatprep.subr.mxu0 0.0
    %1540 = vmatpush2.xpose.msra.mxu0 0.0
    %1541 = vmatprep.subr.mxu0 0.0
    %1542 = vmatpush2.xpose.msra.mxu0 0.0
    %1543 = vmatprep.mubr.f32.mxu0 0.0
    %1544 = vmatmul.mubr.f32.gmra.mxu0 %v1474
    %v1545 = vpop.f32.mrf.mxu0
    %v1546 = vadd.f32 0.0, %v1545
    %v1547 = vpop.f32.mrf.mxu0
    %1548 = vdwg.mxu0
    %v1550 = vsel %vm1168, %v573, 0
    %v1553 = vsel %vm1168, %v865, 0
    %1555 = vmatprep.subr.mxu0 0.0
    %1556 = vmatpush1.xpose.msra.mxu0 0.0
    %1557 = vmatprep.subr.mxu0 0.0
    %1558 = vmatpush1.xpose.msra.mxu0 0.0
    %1559 = vmatprep.subr.mxu0 0.0
    %1560 = vmatpush1.xpose.msra.mxu0 0.0
    %1561 = vmatprep.subr.mxu0 0.0
    %1562 = vmatpush1.xpose.msra.mxu0 0.0
    %1563 = vmatprep.subr.mxu0 0.0
    %1564 = vmatpush1.xpose.msra.mxu0 0.0
    %1565 = vmatprep.subr.mxu0 0.0
    %1566 = vmatpush1.xpose.msra.mxu0 0.0
    %1567 = vmatprep.subr.mxu0 0.0
    %1568 = vmatpush1.xpose.msra.mxu0 0.0
    %1569 = vmatprep.subr.mxu0 0.0
    %1570 = vmatpush1.xpose.msra.mxu0 0.0
    %1571 = vmatprep.subr.mxu0 0.0
    %1572 = vmatpush1.xpose.msra.mxu0 0.0
    %1573 = vmatprep.subr.mxu0 0.0
    %1574 = vmatpush1.xpose.msra.mxu0 0.0
    %1575 = vmatprep.subr.mxu0 0.0
    %1576 = vmatpush1.xpose.msra.mxu0 0.0
    %1577 = vmatprep.subr.mxu0 0.0
    %1578 = vmatpush1.xpose.msra.mxu0 0.0
    %1579 = vmatprep.subr.mxu0 0.0
    %1580 = vmatpush1.xpose.msra.mxu0 0.0
    %1581 = vmatprep.subr.mxu0 0.0
    %1582 = vmatpush1.xpose.msra.mxu0 0.0
    %1583 = vmatprep.subr.mxu0 0.0
    %1584 = vmatpush1.xpose.msra.mxu0 0.0
    %1585 = vmatprep.subr.mxu0 0.0
    %1586 = vmatpush1.xpose.msra.mxu0 %v1553
    %1587 = vmatprep.subr.mxu0 0.0
    %1588 = vmatpush2.xpose.msra.mxu0 0.0
    %1589 = vmatprep.subr.mxu0 0.0
    %1590 = vmatpush2.xpose.msra.mxu0 0.0
    %1591 = vmatprep.subr.mxu0 0.0
    %1592 = vmatpush2.xpose.msra.mxu0 0.0
    %1593 = vmatprep.subr.mxu0 0.0
    %1594 = vmatpush2.xpose.msra.mxu0 0.0
    %1595 = vmatprep.subr.mxu0 0.0
    %1596 = vmatpush2.xpose.msra.mxu0 0.0
    %1597 = vmatprep.subr.mxu0 0.0
    %1598 = vmatpush2.xpose.msra.mxu0 0.0
    %1599 = vmatprep.subr.mxu0 0.0
    %1600 = vmatpush2.xpose.msra.mxu0 0.0
    %1601 = vmatprep.subr.mxu0 0.0
    %1602 = vmatpush2.xpose.msra.mxu0 0.0
    %1603 = vmatprep.subr.mxu0 0.0
    %1604 = vmatpush2.xpose.msra.mxu0 0.0
    %1605 = vmatprep.subr.mxu0 0.0
    %1606 = vmatpush2.xpose.msra.mxu0 0.0
    %1607 = vmatprep.subr.mxu0 0.0
    %1608 = vmatpush2.xpose.msra.mxu0 0.0
    %1609 = vmatprep.subr.mxu0 0.0
    %1610 = vmatpush2.xpose.msra.mxu0 0.0
    %1611 = vmatprep.subr.mxu0 0.0
    %1612 = vmatpush2.xpose.msra.mxu0 0.0
    %1613 = vmatprep.subr.mxu0 0.0
    %1614 = vmatpush2.xpose.msra.mxu0 0.0
    %1615 = vmatprep.subr.mxu0 0.0
    %1616 = vmatpush2.xpose.msra.mxu0 0.0
    %1617 = vmatprep.subr.mxu0 0.0
    %1618 = vmatpush2.xpose.msra.mxu0 0.0
    %1619 = vmatprep.mubr.f32.mxu0 0.0
    %1620 = vmatmul.mubr.f32.gmra.mxu0 %v1550
    %v1621 = vpop.f32.mrf.mxu0
    %v1622 = vadd.f32 0.0, %v1621
    %v1623 = vpop.f32.mrf.mxu0
    %1624 = vdwg.mxu0
    %v1626 = vsel %vm1168, %v574, 0
    %v1629 = vsel %vm1168, %v866, 0
    %1631 = vmatprep.subr.mxu0 0.0
    %1632 = vmatpush1.xpose.msra.mxu0 0.0
    %1633 = vmatprep.subr.mxu0 0.0
    %1634 = vmatpush1.xpose.msra.mxu0 0.0
    %1635 = vmatprep.subr.mxu0 0.0
    %1636 = vmatpush1.xpose.msra.mxu0 0.0
    %1637 = vmatprep.subr.mxu0 0.0
    %1638 = vmatpush1.xpose.msra.mxu0 0.0
    %1639 = vmatprep.subr.mxu0 0.0
    %1640 = vmatpush1.xpose.msra.mxu0 0.0
    %1641 = vmatprep.subr.mxu0 0.0
    %1642 = vmatpush1.xpose.msra.mxu0 0.0
    %1643 = vmatprep.subr.mxu0 0.0
    %1644 = vmatpush1.xpose.msra.mxu0 0.0
    %1645 = vmatprep.subr.mxu0 0.0
    %1646 = vmatpush1.xpose.msra.mxu0 0.0
    %1647 = vmatprep.subr.mxu0 0.0
    %1648 = vmatpush1.xpose.msra.mxu0 0.0
    %1649 = vmatprep.subr.mxu0 0.0
    %1650 = vmatpush1.xpose.msra.mxu0 0.0
    %1651 = vmatprep.subr.mxu0 0.0
    %1652 = vmatpush1.xpose.msra.mxu0 0.0
    %1653 = vmatprep.subr.mxu0 0.0
    %1654 = vmatpush1.xpose.msra.mxu0 0.0
    %1655 = vmatprep.subr.mxu0 0.0
    %1656 = vmatpush1.xpose.msra.mxu0 0.0
    %1657 = vmatprep.subr.mxu0 0.0
    %1658 = vmatpush1.xpose.msra.mxu0 0.0
    %1659 = vmatprep.subr.mxu0 0.0
    %1660 = vmatpush1.xpose.msra.mxu0 0.0
    %1661 = vmatprep.subr.mxu0 0.0
    %1662 = vmatpush1.xpose.msra.mxu0 %v1629
    %1663 = vmatprep.subr.mxu0 0.0
    %1664 = vmatpush2.xpose.msra.mxu0 0.0
    %1665 = vmatprep.subr.mxu0 0.0
    %1666 = vmatpush2.xpose.msra.mxu0 0.0
    %1667 = vmatprep.subr.mxu0 0.0
    %1668 = vmatpush2.xpose.msra.mxu0 0.0
    %1669 = vmatprep.subr.mxu0 0.0
    %1670 = vmatpush2.xpose.msra.mxu0 0.0
    %1671 = vmatprep.subr.mxu0 0.0
    %1672 = vmatpush2.xpose.msra.mxu0 0.0
    %1673 = vmatprep.subr.mxu0 0.0
    %1674 = vmatpush2.xpose.msra.mxu0 0.0
    %1675 = vmatprep.subr.mxu0 0.0
    %1676 = vmatpush2.xpose.msra.mxu0 0.0
    %1677 = vmatprep.subr.mxu0 0.0
    %1678 = vmatpush2.xpose.msra.mxu0 0.0
    %1679 = vmatprep.subr.mxu0 0.0
    %1680 = vmatpush2.xpose.msra.mxu0 0.0
    %1681 = vmatprep.subr.mxu0 0.0
    %1682 = vmatpush2.xpose.msra.mxu0 0.0
    %1683 = vmatprep.subr.mxu0 0.0
    %1684 = vmatpush2.xpose.msra.mxu0 0.0
    %1685 = vmatprep.subr.mxu0 0.0
    %1686 = vmatpush2.xpose.msra.mxu0 0.0
    %1687 = vmatprep.subr.mxu0 0.0
    %1688 = vmatpush2.xpose.msra.mxu0 0.0
    %1689 = vmatprep.subr.mxu0 0.0
    %1690 = vmatpush2.xpose.msra.mxu0 0.0
    %1691 = vmatprep.subr.mxu0 0.0
    %1692 = vmatpush2.xpose.msra.mxu0 0.0
    %1693 = vmatprep.subr.mxu0 0.0
    %1694 = vmatpush2.xpose.msra.mxu0 0.0
    %1695 = vmatprep.mubr.f32.mxu0 0.0
    %1696 = vmatmul.mubr.f32.gmra.mxu0 %v1626
    %v1697 = vpop.f32.mrf.mxu0
    %v1698 = vadd.f32 0.0, %v1697
    %v1699 = vpop.f32.mrf.mxu0
    %1700 = vdwg.mxu0
    %v1702 = vsel %vm1168, %v575, 0
    %v1705 = vsel %vm1168, %v867, 0
    %1707 = vmatprep.subr.mxu0 0.0
    %1708 = vmatpush1.xpose.msra.mxu0 0.0
    %1709 = vmatprep.subr.mxu0 0.0
    %1710 = vmatpush1.xpose.msra.mxu0 0.0
    %1711 = vmatprep.subr.mxu0 0.0
    %1712 = vmatpush1.xpose.msra.mxu0 0.0
    %1713 = vmatprep.subr.mxu0 0.0
    %1714 = vmatpush1.xpose.msra.mxu0 0.0
    %1715 = vmatprep.subr.mxu0 0.0
    %1716 = vmatpush1.xpose.msra.mxu0 0.0
    %1717 = vmatprep.subr.mxu0 0.0
    %1718 = vmatpush1.xpose.msra.mxu0 0.0
    %1719 = vmatprep.subr.mxu0 0.0
    %1720 = vmatpush1.xpose.msra.mxu0 0.0
    %1721 = vmatprep.subr.mxu0 0.0
    %1722 = vmatpush1.xpose.msra.mxu0 0.0
    %1723 = vmatprep.subr.mxu0 0.0
    %1724 = vmatpush1.xpose.msra.mxu0 0.0
    %1725 = vmatprep.subr.mxu0 0.0
    %1726 = vmatpush1.xpose.msra.mxu0 0.0
    %1727 = vmatprep.subr.mxu0 0.0
    %1728 = vmatpush1.xpose.msra.mxu0 0.0
    %1729 = vmatprep.subr.mxu0 0.0
    %1730 = vmatpush1.xpose.msra.mxu0 0.0
    %1731 = vmatprep.subr.mxu0 0.0
    %1732 = vmatpush1.xpose.msra.mxu0 0.0
    %1733 = vmatprep.subr.mxu0 0.0
    %1734 = vmatpush1.xpose.msra.mxu0 0.0
    %1735 = vmatprep.subr.mxu0 0.0
    %1736 = vmatpush1.xpose.msra.mxu0 0.0
    %1737 = vmatprep.subr.mxu0 0.0
    %1738 = vmatpush1.xpose.msra.mxu0 %v1705
    %1739 = vmatprep.subr.mxu0 0.0
    %1740 = vmatpush2.xpose.msra.mxu0 0.0
    %1741 = vmatprep.subr.mxu0 0.0
    %1742 = vmatpush2.xpose.msra.mxu0 0.0
    %1743 = vmatprep.subr.mxu0 0.0
    %1744 = vmatpush2.xpose.msra.mxu0 0.0
    %1745 = vmatprep.subr.mxu0 0.0
    %1746 = vmatpush2.xpose.msra.mxu0 0.0
    %1747 = vmatprep.subr.mxu0 0.0
    %1748 = vmatpush2.xpose.msra.mxu0 0.0
    %1749 = vmatprep.subr.mxu0 0.0
    %1750 = vmatpush2.xpose.msra.mxu0 0.0
    %1751 = vmatprep.subr.mxu0 0.0
    %1752 = vmatpush2.xpose.msra.mxu0 0.0
    %1753 = vmatprep.subr.mxu0 0.0
    %1754 = vmatpush2.xpose.msra.mxu0 0.0
    %1755 = vmatprep.subr.mxu0 0.0
    %1756 = vmatpush2.xpose.msra.mxu0 0.0
    %1757 = vmatprep.subr.mxu0 0.0
    %1758 = vmatpush2.xpose.msra.mxu0 0.0
    %1759 = vmatprep.subr.mxu0 0.0
    %1760 = vmatpush2.xpose.msra.mxu0 0.0
    %1761 = vmatprep.subr.mxu0 0.0
    %1762 = vmatpush2.xpose.msra.mxu0 0.0
    %1763 = vmatprep.subr.mxu0 0.0
    %1764 = vmatpush2.xpose.msra.mxu0 0.0
    %1765 = vmatprep.subr.mxu0 0.0
    %1766 = vmatpush2.xpose.msra.mxu0 0.0
    %1767 = vmatprep.subr.mxu0 0.0
    %1768 = vmatpush2.xpose.msra.mxu0 0.0
    %1769 = vmatprep.subr.mxu0 0.0
    %1770 = vmatpush2.xpose.msra.mxu0 0.0
    %1771 = vmatprep.mubr.f32.mxu0 0.0
    %1772 = vmatmul.mubr.f32.gmra.mxu0 %v1702
    %v1773 = vpop.f32.mrf.mxu0
    %v1774 = vadd.f32 0.0, %v1773
    %v1775 = vpop.f32.mrf.mxu0
    %1776 = vdwg.mxu0
    %vm1777 = vcmask 64512
    %v1778 = vsel %vm1777, %v1242, -inf
    %1779 = vmax.xlane.f32.xlu0 %v1778
    %v1780 = vpop.xlane.xlu0 %1779
    %v1781 = vsel %vm1777, %v1318, -inf
    %1782 = vmax.xlane.f32.xlu0 %v1781
    %v1783 = vpop.xlane.xlu0 %1782
    %v1784 = vsel %vm1777, %v1394, -inf
    %1785 = vmax.xlane.f32.xlu0 %v1784
    %v1786 = vpop.xlane.xlu0 %1785
    %v1787 = vsel %vm1777, %v1470, -inf
    %1788 = vmax.xlane.f32.xlu0 %v1787
    %v1789 = vpop.xlane.xlu0 %1788
    %v1790 = vsel %vm1777, %v1546, -inf
    %1791 = vmax.xlane.f32.xlu0 %v1790
    %v1792 = vpop.xlane.xlu0 %1791
    %v1793 = vsel %vm1777, %v1622, -inf
    %1794 = vmax.xlane.f32.xlu0 %v1793
    %v1795 = vpop.xlane.xlu0 %1794
    %v1796 = vsel %vm1777, %v1698, -inf
    %1797 = vmax.xlane.f32.xlu0 %v1796
    %v1798 = vpop.xlane.xlu0 %1797
    %v1799 = vsel %vm1777, %v1774, -inf
    %1800 = vmax.xlane.f32.xlu0 %v1799
    %v1801 = vpop.xlane.xlu0 %1800
    %v1802 = vsub.f32 %v1242, %v1780
    %v1803 = vsub.f32 %v1318, %v1783
    %v1804 = vsub.f32 %v1394, %v1786
    %v1805 = vsub.f32 %v1470, %v1789
    %v1806 = vsub.f32 %v1546, %v1792
    %v1807 = vsub.f32 %v1622, %v1795
    %v1808 = vsub.f32 %v1698, %v1798
    %v1809 = vsub.f32 %v1774, %v1801
    %v1810 = vmul.f32 %v1802, 1.442695
    %v1811 = vpow.pop %v1810
    %v1812 = vmul.f32 %v1803, 1.442695
    %v1813 = vpow.pop %v1812
    %v1814 = vmul.f32 %v1804, 1.442695
    %v1815 = vpow.pop %v1814
    %v1816 = vmul.f32 %v1805, 1.442695
    %v1817 = vpow.pop %v1816
    %v1818 = vmul.f32 %v1806, 1.442695
    %v1819 = vpow.pop %v1818
    %v1820 = vmul.f32 %v1807, 1.442695
    %v1821 = vpow.pop %v1820
    %v1822 = vmul.f32 %v1808, 1.442695
    %v1823 = vpow.pop %v1822
    %v1824 = vmul.f32 %v1809, 1.442695
    %v1825 = vpow.pop %v1824
    %v1826 = vsel %vm1777, %v1811, 0.0
    %1827 = vadd.xlane.f32.xlu0 %v1826
    %v1828 = vpop.xlane.xlu0 %1827
    %v1829 = vsel %vm1777, %v1813, 0.0
    %1830 = vadd.xlane.f32.xlu0 %v1829
    %v1831 = vpop.xlane.xlu0 %1830
    %v1832 = vsel %vm1777, %v1815, 0.0
    %1833 = vadd.xlane.f32.xlu0 %v1832
    %v1834 = vpop.xlane.xlu0 %1833
    %v1835 = vsel %vm1777, %v1817, 0.0
    %1836 = vadd.xlane.f32.xlu0 %v1835
    %v1837 = vpop.xlane.xlu0 %1836
    %v1838 = vsel %vm1777, %v1819, 0.0
    %1839 = vadd.xlane.f32.xlu0 %v1838
    %v1840 = vpop.xlane.xlu0 %1839
    %v1841 = vsel %vm1777, %v1821, 0.0
    %1842 = vadd.xlane.f32.xlu0 %v1841
    %v1843 = vpop.xlane.xlu0 %1842
    %v1844 = vsel %vm1777, %v1823, 0.0
    %1845 = vadd.xlane.f32.xlu0 %v1844
    %v1846 = vpop.xlane.xlu0 %1845
    %v1847 = vsel %vm1777, %v1825, 0.0
    %1848 = vadd.xlane.f32.xlu0 %v1847
    %v1849 = vpop.xlane.xlu0 %1848
    %v1850 = vpack.c.bf16 %v1811, %v1811
    %v1851 = vpack.c.bf16 %v1813, %v1813
    %v1852 = vpack.c.bf16 %v1815, %v1815
    %v1853 = vpack.c.bf16 %v1817, %v1817
    %v1854 = vpack.c.bf16 %v1819, %v1819
    %v1855 = vpack.c.bf16 %v1821, %v1821
    %v1856 = vpack.c.bf16 %v1823, %v1823
    %v1857 = vpack.c.bf16 %v1825, %v1825
    %v1859 = vsel %vm1777, %v1850, 0
    %vm1861 = vcmask 1043456
    %v1863 = vsel %vm1861, %v1160, 0
    %1865 = vmatprep.subr.bf16.mxu0 0
    %1866 = vmatpush1.bf16.msra.mxu0 0
    %1867 = vmatprep.subr.bf16.mxu0 0
    %1868 = vmatpush1.bf16.msra.mxu0 0
    %1869 = vmatprep.subr.bf16.mxu0 0
    %1870 = vmatpush1.bf16.msra.mxu0 0
    %1871 = vmatprep.subr.bf16.mxu0 0
    %1872 = vmatpush1.bf16.msra.mxu0 0
    %1873 = vmatprep.subr.bf16.mxu0 0
    %1874 = vmatpush1.bf16.msra.mxu0 0
    %1875 = vmatprep.subr.bf16.mxu0 0
    %1876 = vmatpush1.bf16.msra.mxu0 0
    %1877 = vmatprep.subr.bf16.mxu0 0
    %1878 = vmatpush1.bf16.msra.mxu0 0
    %1879 = vmatprep.subr.bf16.mxu0 0
    %1880 = vmatpush1.bf16.msra.mxu0 %v1863
    %1881 = vmatprep.subr.bf16.mxu0 0
    %1882 = vmatpush2.bf16.msra.mxu0 0
    %1883 = vmatprep.subr.bf16.mxu0 0
    %1884 = vmatpush2.bf16.msra.mxu0 0
    %1885 = vmatprep.subr.bf16.mxu0 0
    %1886 = vmatpush2.bf16.msra.mxu0 0
    %1887 = vmatprep.subr.bf16.mxu0 0
    %1888 = vmatpush2.bf16.msra.mxu0 0
    %1889 = vmatprep.subr.bf16.mxu0 0
    %1890 = vmatpush2.bf16.msra.mxu0 0
    %1891 = vmatprep.subr.bf16.mxu0 0
    %1892 = vmatpush2.bf16.msra.mxu0 0
    %1893 = vmatprep.subr.bf16.mxu0 0
    %1894 = vmatpush2.bf16.msra.mxu0 0
    %1895 = vmatprep.subr.bf16.mxu0 0
    %1896 = vmatpush2.bf16.msra.mxu0 0
    %1897 = vmatprep.mubr.bf16.mxu0 0
    %1898 = vmatmul.mubr.bf16.gmra.mxu0 %v1859
    %v1899 = vpop.f32.mrf.mxu0
    %v1900 = vadd.f32 0.0, %v1899
    %v1901 = vpop.f32.mrf.mxu0
    %v1902 = vpop.f32.mrf.mxu0
    %v1903 = vpop.f32.mrf.mxu0
    %1904 = vdwg.mxu0
    %v1906 = vsel %vm1777, %v1851, 0
    %v1909 = vsel %vm1861, %v1161, 0
    %1911 = vmatprep.subr.bf16.mxu0 0
    %1912 = vmatpush1.bf16.msra.mxu0 0
    %1913 = vmatprep.subr.bf16.mxu0 0
    %1914 = vmatpush1.bf16.msra.mxu0 0
    %1915 = vmatprep.subr.bf16.mxu0 0
    %1916 = vmatpush1.bf16.msra.mxu0 0
    %1917 = vmatprep.subr.bf16.mxu0 0
    %1918 = vmatpush1.bf16.msra.mxu0 0
    %1919 = vmatprep.subr.bf16.mxu0 0
    %1920 = vmatpush1.bf16.msra.mxu0 0
    %1921 = vmatprep.subr.bf16.mxu0 0
    %1922 = vmatpush1.bf16.msra.mxu0 0
    %1923 = vmatprep.subr.bf16.mxu0 0
    %1924 = vmatpush1.bf16.msra.mxu0 0
    %1925 = vmatprep.subr.bf16.mxu0 0
    %1926 = vmatpush1.bf16.msra.mxu0 %v1909
    %1927 = vmatprep.subr.bf16.mxu0 0
    %1928 = vmatpush2.bf16.msra.mxu0 0
    %1929 = vmatprep.subr.bf16.mxu0 0
    %1930 = vmatpush2.bf16.msra.mxu0 0
    %1931 = vmatprep.subr.bf16.mxu0 0
    %1932 = vmatpush2.bf16.msra.mxu0 0
    %1933 = vmatprep.subr.bf16.mxu0 0
    %1934 = vmatpush2.bf16.msra.mxu0 0
    %1935 = vmatprep.subr.bf16.mxu0 0
    %1936 = vmatpush2.bf16.msra.mxu0 0
    %1937 = vmatprep.subr.bf16.mxu0 0
    %1938 = vmatpush2.bf16.msra.mxu0 0
    %1939 = vmatprep.subr.bf16.mxu0 0
    %1940 = vmatpush2.bf16.msra.mxu0 0
    %1941 = vmatprep.subr.bf16.mxu0 0
    %1942 = vmatpush2.bf16.msra.mxu0 0
    %1943 = vmatprep.mubr.bf16.mxu0 0
    %1944 = vmatmul.mubr.bf16.gmra.mxu0 %v1906
    %v1945 = vpop.f32.mrf.mxu0
    %v1946 = vadd.f32 0.0, %v1945
    %v1947 = vpop.f32.mrf.mxu0
    %v1948 = vpop.f32.mrf.mxu0
    %v1949 = vpop.f32.mrf.mxu0
    %1950 = vdwg.mxu0
    %v1952 = vsel %vm1777, %v1852, 0
    %v1955 = vsel %vm1861, %v1162, 0
    %1957 = vmatprep.subr.bf16.mxu0 0
    %1958 = vmatpush1.bf16.msra.mxu0 0
    %1959 = vmatprep.subr.bf16.mxu0 0
    %1960 = vmatpush1.bf16.msra.mxu0 0
    %1961 = vmatprep.subr.bf16.mxu0 0
    %1962 = vmatpush1.bf16.msra.mxu0 0
    %1963 = vmatprep.subr.bf16.mxu0 0
    %1964 = vmatpush1.bf16.msra.mxu0 0
    %1965 = vmatprep.subr.bf16.mxu0 0
    %1966 = vmatpush1.bf16.msra.mxu0 0
    %1967 = vmatprep.subr.bf16.mxu0 0
    %1968 = vmatpush1.bf16.msra.mxu0 0
    %1969 = vmatprep.subr.bf16.mxu0 0
    %1970 = vmatpush1.bf16.msra.mxu0 0
    %1971 = vmatprep.subr.bf16.mxu0 0
    %1972 = vmatpush1.bf16.msra.mxu0 %v1955
    %1973 = vmatprep.subr.bf16.mxu0 0
    %1974 = vmatpush2.bf16.msra.mxu0 0
    %1975 = vmatprep.subr.bf16.mxu0 0
    %1976 = vmatpush2.bf16.msra.mxu0 0
    %1977 = vmatprep.subr.bf16.mxu0 0
    %1978 = vmatpush2.bf16.msra.mxu0 0
    %1979 = vmatprep.subr.bf16.mxu0 0
    %1980 = vmatpush2.bf16.msra.mxu0 0
    %1981 = vmatprep.subr.bf16.mxu0 0
    %1982 = vmatpush2.bf16.msra.mxu0 0
    %1983 = vmatprep.subr.bf16.mxu0 0
    %1984 = vmatpush2.bf16.msra.mxu0 0
    %1985 = vmatprep.subr.bf16.mxu0 0
    %1986 = vmatpush2.bf16.msra.mxu0 0
    %1987 = vmatprep.subr.bf16.mxu0 0
    %1988 = vmatpush2.bf16.msra.mxu0 0
    %1989 = vmatprep.mubr.bf16.mxu0 0
    %1990 = vmatmul.mubr.bf16.gmra.mxu0 %v1952
    %v1991 = vpop.f32.mrf.mxu0
    %v1992 = vadd.f32 0.0, %v1991
    %v1993 = vpop.f32.mrf.mxu0
    %v1994 = vpop.f32.mrf.mxu0
    %v1995 = vpop.f32.mrf.mxu0
    %1996 = vdwg.mxu0
    %v1998 = vsel %vm1777, %v1853, 0
    %v2001 = vsel %vm1861, %v1163, 0
    %2003 = vmatprep.subr.bf16.mxu0 0
    %2004 = vmatpush1.bf16.msra.mxu0 0
    %2005 = vmatprep.subr.bf16.mxu0 0
    %2006 = vmatpush1.bf16.msra.mxu0 0
    %2007 = vmatprep.subr.bf16.mxu0 0
    %2008 = vmatpush1.bf16.msra.mxu0 0
    %2009 = vmatprep.subr.bf16.mxu0 0
    %2010 = vmatpush1.bf16.msra.mxu0 0
    %2011 = vmatprep.subr.bf16.mxu0 0
    %2012 = vmatpush1.bf16.msra.mxu0 0
    %2013 = vmatprep.subr.bf16.mxu0 0
    %2014 = vmatpush1.bf16.msra.mxu0 0
    %2015 = vmatprep.subr.bf16.mxu0 0
    %2016 = vmatpush1.bf16.msra.mxu0 0
    %2017 = vmatprep.subr.bf16.mxu0 0
    %2018 = vmatpush1.bf16.msra.mxu0 %v2001
    %2019 = vmatprep.subr.bf16.mxu0 0
    %2020 = vmatpush2.bf16.msra.mxu0 0
    %2021 = vmatprep.subr.bf16.mxu0 0
    %2022 = vmatpush2.bf16.msra.mxu0 0
    %2023 = vmatprep.subr.bf16.mxu0 0
    %2024 = vmatpush2.bf16.msra.mxu0 0
    %2025 = vmatprep.subr.bf16.mxu0 0
    %2026 = vmatpush2.bf16.msra.mxu0 0
    %2027 = vmatprep.subr.bf16.mxu0 0
    %2028 = vmatpush2.bf16.msra.mxu0 0
    %2029 = vmatprep.subr.bf16.mxu0 0
    %2030 = vmatpush2.bf16.msra.mxu0 0
    %2031 = vmatprep.subr.bf16.mxu0 0
    %2032 = vmatpush2.bf16.msra.mxu0 0
    %2033 = vmatprep.subr.bf16.mxu0 0
    %2034 = vmatpush2.bf16.msra.mxu0 0
    %2035 = vmatprep.mubr.bf16.mxu0 0
    %2036 = vmatmul.mubr.bf16.gmra.mxu0 %v1998
    %v2037 = vpop.f32.mrf.mxu0
    %v2038 = vadd.f32 0.0, %v2037
    %v2039 = vpop.f32.mrf.mxu0
    %v2040 = vpop.f32.mrf.mxu0
    %v2041 = vpop.f32.mrf.mxu0
    %2042 = vdwg.mxu0
    %v2044 = vsel %vm1777, %v1854, 0
    %v2047 = vsel %vm1861, %v1164, 0
    %2049 = vmatprep.subr.bf16.mxu0 0
    %2050 = vmatpush1.bf16.msra.mxu0 0
    %2051 = vmatprep.subr.bf16.mxu0 0
    %2052 = vmatpush1.bf16.msra.mxu0 0
    %2053 = vmatprep.subr.bf16.mxu0 0
    %2054 = vmatpush1.bf16.msra.mxu0 0
    %2055 = vmatprep.subr.bf16.mxu0 0
    %2056 = vmatpush1.bf16.msra.mxu0 0
    %2057 = vmatprep.subr.bf16.mxu0 0
    %2058 = vmatpush1.bf16.msra.mxu0 0
    %2059 = vmatprep.subr.bf16.mxu0 0
    %2060 = vmatpush1.bf16.msra.mxu0 0
    %2061 = vmatprep.subr.bf16.mxu0 0
    %2062 = vmatpush1.bf16.msra.mxu0 0
    %2063 = vmatprep.subr.bf16.mxu0 0
    %2064 = vmatpush1.bf16.msra.mxu0 %v2047
    %2065 = vmatprep.subr.bf16.mxu0 0
    %2066 = vmatpush2.bf16.msra.mxu0 0
    %2067 = vmatprep.subr.bf16.mxu0 0
    %2068 = vmatpush2.bf16.msra.mxu0 0
    %2069 = vmatprep.subr.bf16.mxu0 0
    %2070 = vmatpush2.bf16.msra.mxu0 0
    %2071 = vmatprep.subr.bf16.mxu0 0
    %2072 = vmatpush2.bf16.msra.mxu0 0
    %2073 = vmatprep.subr.bf16.mxu0 0
    %2074 = vmatpush2.bf16.msra.mxu0 0
    %2075 = vmatprep.subr.bf16.mxu0 0
    %2076 = vmatpush2.bf16.msra.mxu0 0
    %2077 = vmatprep.subr.bf16.mxu0 0
    %2078 = vmatpush2.bf16.msra.mxu0 0
    %2079 = vmatprep.subr.bf16.mxu0 0
    %2080 = vmatpush2.bf16.msra.mxu0 0
    %2081 = vmatprep.mubr.bf16.mxu0 0
    %2082 = vmatmul.mubr.bf16.gmra.mxu0 %v2044
    %v2083 = vpop.f32.mrf.mxu0
    %v2084 = vadd.f32 0.0, %v2083
    %v2085 = vpop.f32.mrf.mxu0
    %v2086 = vpop.f32.mrf.mxu0
    %v2087 = vpop.f32.mrf.mxu0
    %2088 = vdwg.mxu0
    %v2090 = vsel %vm1777, %v1855, 0
    %v2093 = vsel %vm1861, %v1165, 0
    %2095 = vmatprep.subr.bf16.mxu0 0
    %2096 = vmatpush1.bf16.msra.mxu0 0
    %2097 = vmatprep.subr.bf16.mxu0 0
    %2098 = vmatpush1.bf16.msra.mxu0 0
    %2099 = vmatprep.subr.bf16.mxu0 0
    %2100 = vmatpush1.bf16.msra.mxu0 0
    %2101 = vmatprep.subr.bf16.mxu0 0
    %2102 = vmatpush1.bf16.msra.mxu0 0
    %2103 = vmatprep.subr.bf16.mxu0 0
    %2104 = vmatpush1.bf16.msra.mxu0 0
    %2105 = vmatprep.subr.bf16.mxu0 0
    %2106 = vmatpush1.bf16.msra.mxu0 0
    %2107 = vmatprep.subr.bf16.mxu0 0
    %2108 = vmatpush1.bf16.msra.mxu0 0
    %2109 = vmatprep.subr.bf16.mxu0 0
    %2110 = vmatpush1.bf16.msra.mxu0 %v2093
    %2111 = vmatprep.subr.bf16.mxu0 0
    %2112 = vmatpush2.bf16.msra.mxu0 0
    %2113 = vmatprep.subr.bf16.mxu0 0
    %2114 = vmatpush2.bf16.msra.mxu0 0
    %2115 = vmatprep.subr.bf16.mxu0 0
    %2116 = vmatpush2.bf16.msra.mxu0 0
    %2117 = vmatprep.subr.bf16.mxu0 0
    %2118 = vmatpush2.bf16.msra.mxu0 0
    %2119 = vmatprep.subr.bf16.mxu0 0
    %2120 = vmatpush2.bf16.msra.mxu0 0
    %2121 = vmatprep.subr.bf16.mxu0 0
    %2122 = vmatpush2.bf16.msra.mxu0 0
    %2123 = vmatprep.subr.bf16.mxu0 0
    %2124 = vmatpush2.bf16.msra.mxu0 0
    %2125 = vmatprep.subr.bf16.mxu0 0
    %2126 = vmatpush2.bf16.msra.mxu0 0
    %2127 = vmatprep.mubr.bf16.mxu0 0
    %2128 = vmatmul.mubr.bf16.gmra.mxu0 %v2090
    %v2129 = vpop.f32.mrf.mxu0
    %v2130 = vadd.f32 0.0, %v2129
    %v2131 = vpop.f32.mrf.mxu0
    %v2132 = vpop.f32.mrf.mxu0
    %v2133 = vpop.f32.mrf.mxu0
    %2134 = vdwg.mxu0
    %v2136 = vsel %vm1777, %v1856, 0
    %v2139 = vsel %vm1861, %v1166, 0
    %2141 = vmatprep.subr.bf16.mxu0 0
    %2142 = vmatpush1.bf16.msra.mxu0 0
    %2143 = vmatprep.subr.bf16.mxu0 0
    %2144 = vmatpush1.bf16.msra.mxu0 0
    %2145 = vmatprep.subr.bf16.mxu0 0
    %2146 = vmatpush1.bf16.msra.mxu0 0
    %2147 = vmatprep.subr.bf16.mxu0 0
    %2148 = vmatpush1.bf16.msra.mxu0 0
    %2149 = vmatprep.subr.bf16.mxu0 0
    %2150 = vmatpush1.bf16.msra.mxu0 0
    %2151 = vmatprep.subr.bf16.mxu0 0
    %2152 = vmatpush1.bf16.msra.mxu0 0
    %2153 = vmatprep.subr.bf16.mxu0 0
    %2154 = vmatpush1.bf16.msra.mxu0 0
    %2155 = vmatprep.subr.bf16.mxu0 0
    %2156 = vmatpush1.bf16.msra.mxu0 %v2139
    %2157 = vmatprep.subr.bf16.mxu0 0
    %2158 = vmatpush2.bf16.msra.mxu0 0
    %2159 = vmatprep.subr.bf16.mxu0 0
    %2160 = vmatpush2.bf16.msra.mxu0 0
    %2161 = vmatprep.subr.bf16.mxu0 0
    %2162 = vmatpush2.bf16.msra.mxu0 0
    %2163 = vmatprep.subr.bf16.mxu0 0
    %2164 = vmatpush2.bf16.msra.mxu0 0
    %2165 = vmatprep.subr.bf16.mxu0 0
    %2166 = vmatpush2.bf16.msra.mxu0 0
    %2167 = vmatprep.subr.bf16.mxu0 0
    %2168 = vmatpush2.bf16.msra.mxu0 0
    %2169 = vmatprep.subr.bf16.mxu0 0
    %2170 = vmatpush2.bf16.msra.mxu0 0
    %2171 = vmatprep.subr.bf16.mxu0 0
    %2172 = vmatpush2.bf16.msra.mxu0 0
    %2173 = vmatprep.mubr.bf16.mxu0 0
    %2174 = vmatmul.mubr.bf16.gmra.mxu0 %v2136
    %v2175 = vpop.f32.mrf.mxu0
    %v2176 = vadd.f32 0.0, %v2175
    %v2177 = vpop.f32.mrf.mxu0
    %v2178 = vpop.f32.mrf.mxu0
    %v2179 = vpop.f32.mrf.mxu0
    %2180 = vdwg.mxu0
    %v2182 = vsel %vm1777, %v1857, 0
    %v2185 = vsel %vm1861, %v1167, 0
    %2187 = vmatprep.subr.bf16.mxu0 0
    %2188 = vmatpush1.bf16.msra.mxu0 0
    %2189 = vmatprep.subr.bf16.mxu0 0
    %2190 = vmatpush1.bf16.msra.mxu0 0
    %2191 = vmatprep.subr.bf16.mxu0 0
    %2192 = vmatpush1.bf16.msra.mxu0 0
    %2193 = vmatprep.subr.bf16.mxu0 0
    %2194 = vmatpush1.bf16.msra.mxu0 0
    %2195 = vmatprep.subr.bf16.mxu0 0
    %2196 = vmatpush1.bf16.msra.mxu0 0
    %2197 = vmatprep.subr.bf16.mxu0 0
    %2198 = vmatpush1.bf16.msra.mxu0 0
    %2199 = vmatprep.subr.bf16.mxu0 0
    %2200 = vmatpush1.bf16.msra.mxu0 0
    %2201 = vmatprep.subr.bf16.mxu0 0
    %2202 = vmatpush1.bf16.msra.mxu0 %v2185
    %2203 = vmatprep.subr.bf16.mxu0 0
    %2204 = vmatpush2.bf16.msra.mxu0 0
    %2205 = vmatprep.subr.bf16.mxu0 0
    %2206 = vmatpush2.bf16.msra.mxu0 0
    %2207 = vmatprep.subr.bf16.mxu0 0
    %2208 = vmatpush2.bf16.msra.mxu0 0
    %2209 = vmatprep.subr.bf16.mxu0 0
    %2210 = vmatpush2.bf16.msra.mxu0 0
    %2211 = vmatprep.subr.bf16.mxu0 0
    %2212 = vmatpush2.bf16.msra.mxu0 0
    %2213 = vmatprep.subr.bf16.mxu0 0
    %2214 = vmatpush2.bf16.msra.mxu0 0
    %2215 = vmatprep.subr.bf16.mxu0 0
    %2216 = vmatpush2.bf16.msra.mxu0 0
    %2217 = vmatprep.subr.bf16.mxu0 0
    %2218 = vmatpush2.bf16.msra.mxu0 0
    %2219 = vmatprep.mubr.bf16.mxu0 0
    %2220 = vmatmul.mubr.bf16.gmra.mxu0 %v2182
    %v2221 = vpop.f32.mrf.mxu0
    %v2222 = vadd.f32 0.0, %v2221
    %v2223 = vpop.f32.mrf.mxu0
    %v2224 = vpop.f32.mrf.mxu0
    %v2225 = vpop.f32.mrf.mxu0
    %2226 = vdwg.mxu0
    %v2227 = vrcp.pop %v1828
    %v2228 = vrcp.pop %v1831
    %v2229 = vrcp.pop %v1834
    %v2230 = vrcp.pop %v1837
    %v2231 = vrcp.pop %v1840
    %v2232 = vrcp.pop %v1843
    %v2233 = vrcp.pop %v1846
    %v2234 = vrcp.pop %v1849
    %v2235 = vmul.f32 %v1900, %v2227
    %v2236 = vmul.f32 %v1946, %v2228
    %v2237 = vmul.f32 %v1992, %v2229
    %v2238 = vmul.f32 %v2038, %v2230
    %v2239 = vmul.f32 %v2084, %v2231
    %v2240 = vmul.f32 %v2130, %v2232
    %v2241 = vmul.f32 %v2176, %v2233
    %v2242 = vmul.f32 %v2222, %v2234
    %v2243 = vcombine.low %v2235, %v2237
    %v2244 = vcombine.high %v2235, %v2237
    %v2246 = vunpack.c.l.s4 1983009808
    %v2247 = vunpack.c.0.s8 %v2246
    %v2248 = vlaneseq
    %v2249 = vshrl.u32 %v2248, 7
    %v2250 = vsub.s32 %v2247, %v2249
    %v2251 = vrot.slane %v2243, %v2250
    %v2253 = vunpack.c.l.s4 1983009808
    %v2254 = vunpack.c.0.s8 %v2253
    %v2255 = vlaneseq
    %v2256 = vshrl.u32 %v2255, 7
    %v2257 = vsub.s32 %v2254, %v2256
    %v2258 = vrot.slane %v2244, %v2257
    %v2259 = vcombine.low %v2236, %v2238
    %v2260 = vcombine.high %v2236, %v2238
    %v2262 = vunpack.c.l.s4 1983009808
    %v2263 = vunpack.c.0.s8 %v2262
    %v2264 = vlaneseq
    %v2265 = vshrl.u32 %v2264, 7
    %v2266 = vsub.s32 %v2263, %v2265
    %v2267 = vrot.slane %v2259, %v2266
    %v2269 = vunpack.c.l.s4 1983009808
    %v2270 = vunpack.c.0.s8 %v2269
    %v2271 = vlaneseq
    %v2272 = vshrl.u32 %v2271, 7
    %v2273 = vsub.s32 %v2270, %v2272
    %v2274 = vrot.slane %v2260, %v2273
    %v2275 = vcombine.low %v2251, %v2267
    %v2276 = vcombine.high %v2251, %v2267
    %v2278 = vunpack.c.l.s4 1934713408
    %v2279 = vunpack.c.0.s8 %v2278
    %v2280 = vlaneseq
    %v2281 = vshrl.u32 %v2280, 7
    %v2282 = vsub.s32 %v2279, %v2281
    %v2283 = vrot.slane %v2275, %v2282
    %v2285 = vunpack.c.l.s4 1934713408
    %v2286 = vunpack.c.0.s8 %v2285
    %v2287 = vlaneseq
    %v2288 = vshrl.u32 %v2287, 7
    %v2289 = vsub.s32 %v2286, %v2288
    %v2290 = vrot.slane %v2276, %v2289
    %v2291 = vcombine.low %v2258, %v2274
    %v2292 = vcombine.high %v2258, %v2274
    %v2294 = vunpack.c.l.s4 1934713408
    %v2295 = vunpack.c.0.s8 %v2294
    %v2296 = vlaneseq
    %v2297 = vshrl.u32 %v2296, 7
    %v2298 = vsub.s32 %v2295, %v2297
    %v2299 = vrot.slane %v2291, %v2298
    %v2301 = vunpack.c.l.s4 1934713408
    %v2302 = vunpack.c.0.s8 %v2301
    %v2303 = vlaneseq
    %v2304 = vshrl.u32 %v2303, 7
    %v2305 = vsub.s32 %v2302, %v2304
    %v2306 = vrot.slane %v2292, %v2305
    %v2307 = vcombine.high %v2283, 0.0
    %v2308 = vcombine.high %v2290, 0.0
    %v2309 = vcombine.high %v2299, 0.0
    %v2310 = vcombine.high %v2306, 0.0
    %v2311 = vcombine.low %v2239, %v2241
    %v2312 = vcombine.high %v2239, %v2241
    %v2314 = vunpack.c.l.s4 1983009808
    %v2315 = vunpack.c.0.s8 %v2314
    %v2316 = vlaneseq
    %v2317 = vshrl.u32 %v2316, 7
    %v2318 = vsub.s32 %v2315, %v2317
    %v2319 = vrot.slane %v2311, %v2318
    %v2321 = vunpack.c.l.s4 1983009808
    %v2322 = vunpack.c.0.s8 %v2321
    %v2323 = vlaneseq
    %v2324 = vshrl.u32 %v2323, 7
    %v2325 = vsub.s32 %v2322, %v2324
    %v2326 = vrot.slane %v2312, %v2325
    %v2327 = vcombine.low %v2240, %v2242
    %v2328 = vcombine.high %v2240, %v2242
    %v2330 = vunpack.c.l.s4 1983009808
    %v2331 = vunpack.c.0.s8 %v2330
    %v2332 = vlaneseq
    %v2333 = vshrl.u32 %v2332, 7
    %v2334 = vsub.s32 %v2331, %v2333
    %v2335 = vrot.slane %v2327, %v2334
    %v2337 = vunpack.c.l.s4 1983009808
    %v2338 = vunpack.c.0.s8 %v2337
    %v2339 = vlaneseq
    %v2340 = vshrl.u32 %v2339, 7
    %v2341 = vsub.s32 %v2338, %v2340
    %v2342 = vrot.slane %v2328, %v2341
    %v2343 = vcombine.low %v2319, %v2335
    %v2344 = vcombine.high %v2319, %v2335
    %v2346 = vunpack.c.l.s4 1934713408
    %v2347 = vunpack.c.0.s8 %v2346
    %v2348 = vlaneseq
    %v2349 = vshrl.u32 %v2348, 7
    %v2350 = vsub.s32 %v2347, %v2349
    %v2351 = vrot.slane %v2343, %v2350
    %v2353 = vunpack.c.l.s4 1934713408
    %v2354 = vunpack.c.0.s8 %v2353
    %v2355 = vlaneseq
    %v2356 = vshrl.u32 %v2355, 7
    %v2357 = vsub.s32 %v2354, %v2356
    %v2358 = vrot.slane %v2344, %v2357
    %v2359 = vcombine.low %v2326, %v2342
    %v2360 = vcombine.high %v2326, %v2342
    %v2362 = vunpack.c.l.s4 1934713408
    %v2363 = vunpack.c.0.s8 %v2362
    %v2364 = vlaneseq
    %v2365 = vshrl.u32 %v2364, 7
    %v2366 = vsub.s32 %v2363, %v2365
    %v2367 = vrot.slane %v2359, %v2366
    %v2369 = vunpack.c.l.s4 1934713408
    %v2370 = vunpack.c.0.s8 %v2369
    %v2371 = vlaneseq
    %v2372 = vshrl.u32 %v2371, 7
    %v2373 = vsub.s32 %v2370, %v2372
    %v2374 = vrot.slane %v2360, %v2373
    %v2375 = vcombine.high %v2351, 0.0
    %v2376 = vcombine.high %v2358, 0.0
    %v2377 = vcombine.high %v2367, 0.0
    %v2378 = vcombine.high %v2374, 0.0
    %v2379 = vcombine.low %v2283, %v2290
    %v2381 = vunpack.c.l.s4 1983009808
    %v2382 = vunpack.c.0.s8 %v2381
    %v2383 = vlaneseq
    %v2384 = vshrl.u32 %v2383, 7
    %v2385 = vsub.s32 %v2382, %v2384
    %v2386 = vrot.slane %v2379, %v2385
    %v2387 = vcombine.low %v2307, %v2308
    %v2389 = vunpack.c.l.s4 1983009808
    %v2390 = vunpack.c.0.s8 %v2389
    %v2391 = vlaneseq
    %v2392 = vshrl.u32 %v2391, 7
    %v2393 = vsub.s32 %v2390, %v2392
    %v2394 = vrot.slane %v2387, %v2393
    %v2395 = vcombine.low %v2299, %v2306
    %v2397 = vunpack.c.l.s4 1983009808
    %v2398 = vunpack.c.0.s8 %v2397
    %v2399 = vlaneseq
    %v2400 = vshrl.u32 %v2399, 7
    %v2401 = vsub.s32 %v2398, %v2400
    %v2402 = vrot.slane %v2395, %v2401
    %v2403 = vcombine.low %v2309, %v2310
    %v2405 = vunpack.c.l.s4 1983009808
    %v2406 = vunpack.c.0.s8 %v2405
    %v2407 = vlaneseq
    %v2408 = vshrl.u32 %v2407, 7
    %v2409 = vsub.s32 %v2406, %v2408
    %v2410 = vrot.slane %v2403, %v2409
    %v2411 = vcombine.low %v2386, %v2394
    %v2412 = vcombine.high %v2386, %v2394
    %v2414 = vunpack.c.l.s4 1934713408
    %v2415 = vunpack.c.0.s8 %v2414
    %v2416 = vlaneseq
    %v2417 = vshrl.u32 %v2416, 7
    %v2418 = vsub.s32 %v2415, %v2417
    %v2419 = vrot.slane %v2411, %v2418
    %v2421 = vunpack.c.l.s4 1934713408
    %v2422 = vunpack.c.0.s8 %v2421
    %v2423 = vlaneseq
    %v2424 = vshrl.u32 %v2423, 7
    %v2425 = vsub.s32 %v2422, %v2424
    %v2426 = vrot.slane %v2412, %v2425
    %v2427 = vcombine.low %v2402, %v2410
    %v2428 = vcombine.high %v2402, %v2410
    %v2430 = vunpack.c.l.s4 1934713408
    %v2431 = vunpack.c.0.s8 %v2430
    %v2432 = vlaneseq
    %v2433 = vshrl.u32 %v2432, 7
    %v2434 = vsub.s32 %v2431, %v2433
    %v2435 = vrot.slane %v2427, %v2434
    %v2437 = vunpack.c.l.s4 1934713408
    %v2438 = vunpack.c.0.s8 %v2437
    %v2439 = vlaneseq
    %v2440 = vshrl.u32 %v2439, 7
    %v2441 = vsub.s32 %v2438, %v2440
    %v2442 = vrot.slane %v2428, %v2441
    %v2443 = vcombine.low %v2419, %v2435
    %v2444 = vcombine.high %v2419, %v2435
    %v2445 = vcombine.low %v2426, %v2442
    %v2446 = vcombine.high %v2426, %v2442
    %v2447 = vcombine.low %v2351, %v2358
    %v2449 = vunpack.c.l.s4 1983009808
    %v2450 = vunpack.c.0.s8 %v2449
    %v2451 = vlaneseq
    %v2452 = vshrl.u32 %v2451, 7
    %v2453 = vsub.s32 %v2450, %v2452
    %v2454 = vrot.slane %v2447, %v2453
    %v2455 = vcombine.low %v2375, %v2376
    %v2457 = vunpack.c.l.s4 1983009808
    %v2458 = vunpack.c.0.s8 %v2457
    %v2459 = vlaneseq
    %v2460 = vshrl.u32 %v2459, 7
    %v2461 = vsub.s32 %v2458, %v2460
    %v2462 = vrot.slane %v2455, %v2461
    %v2463 = vcombine.low %v2367, %v2374
    %v2465 = vunpack.c.l.s4 1983009808
    %v2466 = vunpack.c.0.s8 %v2465
    %v2467 = vlaneseq
    %v2468 = vshrl.u32 %v2467, 7
    %v2469 = vsub.s32 %v2466, %v2468
    %v2470 = vrot.slane %v2463, %v2469
    %v2471 = vcombine.low %v2377, %v2378
    %v2473 = vunpack.c.l.s4 1983009808
    %v2474 = vunpack.c.0.s8 %v2473
    %v2475 = vlaneseq
    %v2476 = vshrl.u32 %v2475, 7
    %v2477 = vsub.s32 %v2474, %v2476
    %v2478 = vrot.slane %v2471, %v2477
    %v2479 = vcombine.low %v2454, %v2462
    %v2480 = vcombine.high %v2454, %v2462
    %v2482 = vunpack.c.l.s4 1934713408
    %v2483 = vunpack.c.0.s8 %v2482
    %v2484 = vlaneseq
    %v2485 = vshrl.u32 %v2484, 7
    %v2486 = vsub.s32 %v2483, %v2485
    %v2487 = vrot.slane %v2479, %v2486
    %v2489 = vunpack.c.l.s4 1934713408
    %v2490 = vunpack.c.0.s8 %v2489
    %v2491 = vlaneseq
    %v2492 = vshrl.u32 %v2491, 7
    %v2493 = vsub.s32 %v2490, %v2492
    %v2494 = vrot.slane %v2480, %v2493
    %v2495 = vcombine.low %v2470, %v2478
    %v2496 = vcombine.high %v2470, %v2478
    %v2498 = vunpack.c.l.s4 1934713408
    %v2499 = vunpack.c.0.s8 %v2498
    %v2500 = vlaneseq
    %v2501 = vshrl.u32 %v2500, 7
    %v2502 = vsub.s32 %v2499, %v2501
    %v2503 = vrot.slane %v2495, %v2502
    %v2505 = vunpack.c.l.s4 1934713408
    %v2506 = vunpack.c.0.s8 %v2505
    %v2507 = vlaneseq
    %v2508 = vshrl.u32 %v2507, 7
    %v2509 = vsub.s32 %v2506, %v2508
    %v2510 = vrot.slane %v2496, %v2509
    %v2511 = vcombine.low %v2487, %v2503
    %v2512 = vcombine.high %v2487, %v2503
    %v2513 = vcombine.low %v2494, %v2510
    %v2514 = vcombine.high %v2494, %v2510
    %2517 = vrot.lane.b32.xlu0 %v2444, 16
    %v2518 = vpop.permute.xlu0 %2517
    %2519 = vrot.lane.b32.xlu0 %v2512, 16
    %v2520 = vpop.permute.xlu0 %2519
    %2525 = vrot.lane.b32.xlu0 %v2445, 32
    %v2526 = vpop.permute.xlu0 %2525
    %2527 = vrot.lane.b32.xlu0 %v2513, 32
    %v2528 = vpop.permute.xlu0 %2527
    %2533 = vrot.lane.b32.xlu0 %v2446, 48
    %v2534 = vpop.permute.xlu0 %2533
    %2535 = vrot.lane.b32.xlu0 %v2514, 48
    %v2536 = vpop.permute.xlu0 %2535
    %v2539 = vsel %vm1168, %v2443, %v2518
    %v2540 = vsel %vm1168, %v2511, %v2520
    %v2541 = vsel %vm42, %v2539, %v2526
    %v2542 = vsel %vm42, %v2540, %v2528
    %vm2543 = vcmask 392192
    %v2544 = vsel %vm2543, %v2541, %v2534
    %v2545 = vsel %vm2543, %v2542, %v2536
    %v2546 = vld [vmem:[%s4] sm:$0xff]
    %v2547 = vld [vmem:[%s4 + $0x8] sm:$0xff]
    %v2548 = vld [vmem:[%s4 + $0x10] sm:$0xff]
    %v2549 = vld [vmem:[%s4 + $0x18] sm:$0xff]
    %v2550 = vld [vmem:[%s4 + $0x20] sm:$0xff]
    %v2551 = vld [vmem:[%s4 + $0x28] sm:$0xff]
    %v2552 = vld [vmem:[%s4 + $0x30] sm:$0xff]
    %v2553 = vld [vmem:[%s4 + $0x38] sm:$0xff]
    %vm2554 = vcmask 523264
    %v2556 = vsel %vm2554, %v2544, 0
    %v2559 = vsel %vm2554, %v2545, 0
    %2561 = vmatprep.subr.mxu0 0.0
    %2562 = vmatpush1.msra.mxu0 0.0
    %2563 = vmatprep.subr.mxu0 0.0
    %2564 = vmatpush1.msra.mxu0 0.0
    %2565 = vmatprep.subr.mxu0 0.0
    %2566 = vmatpush1.msra.mxu0 0.0
    %2567 = vmatprep.subr.mxu0 0.0
    %2568 = vmatpush1.msra.mxu0 0.0
    %2569 = vmatprep.subr.mxu0 0.0
    %2570 = vmatpush1.msra.mxu0 0.0
    %2571 = vmatprep.subr.mxu0 0.0
    %2572 = vmatpush1.msra.mxu0 0.0
    %2573 = vmatprep.subr.mxu0 0.0
    %2574 = vmatpush1.msra.mxu0 0.0
    %2575 = vmatprep.subr.mxu0 0.0
    %2576 = vmatpush1.msra.mxu0 0.0
    %2577 = vmatprep.subr.mxu0 0.0
    %2578 = vmatpush1.msra.mxu0 %v2553
    %2579 = vmatprep.subr.mxu0 0.0
    %2580 = vmatpush1.msra.mxu0 %v2552
    %2581 = vmatprep.subr.mxu0 0.0
    %2582 = vmatpush1.msra.mxu0 %v2551
    %2583 = vmatprep.subr.mxu0 0.0
    %2584 = vmatpush1.msra.mxu0 %v2550
    %2585 = vmatprep.subr.mxu0 0.0
    %2586 = vmatpush1.msra.mxu0 %v2549
    %2587 = vmatprep.subr.mxu0 0.0
    %2588 = vmatpush1.msra.mxu0 %v2548
    %2589 = vmatprep.subr.mxu0 0.0
    %2590 = vmatpush1.msra.mxu0 %v2547
    %2591 = vmatprep.subr.mxu0 0.0
    %2592 = vmatpush1.msra.mxu0 %v2546
    %2593 = vmatprep.subr.mxu0 0.0
    %2594 = vmatpush2.msra.mxu0 0.0
    %2595 = vmatprep.subr.mxu0 0.0
    %2596 = vmatpush2.msra.mxu0 0.0
    %2597 = vmatprep.subr.mxu0 0.0
    %2598 = vmatpush2.msra.mxu0 0.0
    %2599 = vmatprep.subr.mxu0 0.0
    %2600 = vmatpush2.msra.mxu0 0.0
    %2601 = vmatprep.subr.mxu0 0.0
    %2602 = vmatpush2.msra.mxu0 0.0
    %2603 = vmatprep.subr.mxu0 0.0
    %2604 = vmatpush2.msra.mxu0 0.0
    %2605 = vmatprep.subr.mxu0 0.0
    %2606 = vmatpush2.msra.mxu0 0.0
    %2607 = vmatprep.subr.mxu0 0.0
    %2608 = vmatpush2.msra.mxu0 0.0
    %2609 = vmatprep.subr.mxu0 0.0
    %2610 = vmatpush2.msra.mxu0 0.0
    %2611 = vmatprep.subr.mxu0 0.0
    %2612 = vmatpush2.msra.mxu0 0.0
    %2613 = vmatprep.subr.mxu0 0.0
    %2614 = vmatpush2.msra.mxu0 0.0
    %2615 = vmatprep.subr.mxu0 0.0
    %2616 = vmatpush2.msra.mxu0 0.0
    %2617 = vmatprep.subr.mxu0 0.0
    %2618 = vmatpush2.msra.mxu0 0.0
    %2619 = vmatprep.subr.mxu0 0.0
    %2620 = vmatpush2.msra.mxu0 0.0
    %2621 = vmatprep.subr.mxu0 0.0
    %2622 = vmatpush2.msra.mxu0 0.0
    %2623 = vmatprep.subr.mxu0 0.0
    %2624 = vmatpush2.msra.mxu0 0.0
    %2625 = vmatprep.mubr.f32.mxu0 0.0
    %2626 = vmatmul.mubr.f32.gmra.mxu0 %v2556
    %v2627 = vpop.f32.mrf.mxu0
    %v2628 = vadd.f32 0.0, %v2627
    %v2629 = vpop.f32.mrf.mxu0
    %2630 = vmatprep.mubr.f32.mxu0 0.0
    %2631 = vmatmul.mubr.f32.gmra.mxu0 %v2559
    %v2632 = vpop.f32.mrf.mxu0
    %v2633 = vadd.f32 0.0, %v2632
    %v2634 = vpop.f32.mrf.mxu0
    %2635 = vdwg.mxu0
    %2636 = vst.msk [vmem:[#allocation5] sm:$0xff] %vm42, %v2628
    %2637 = vst.msk [vmem:[#allocation5 + $0x8] sm:$0xff] %vm42, %v2633
    // Predicated region
    $region26: #{tpu_custom_call.1} parent=1 // pred_check
      _
    $region27: #{tpu_custom_call.1} parent=1 // pred_check_branch
      %2639 = sbr.rel (0) target = $region29
    $region28: #{tpu_custom_call.1} parent=1 // pred_region
      %s2641 = ssub.s32 256, 256
      %2642 = vsyncadd [#allocation4], %s2641
      %s2643 = sshll.u32 [#allocation5], 4
      %s2644 = int_to_ptr.vmem [resolvable:$true] %s2643
      %2649 = dma.vmem_to_hbm [thread:$0]  %s2644, 256, %s5, [#allocation4], 128, 128, 8
    $region29: #{tpu_custom_call.1} parent=1 // pred_fallthru
      _
    // Predicated region
    $region30: #{tpu_custom_call.1} parent=1 // pred_check
      _
    $region31: #{tpu_custom_call.1} parent=1 // pred_check_branch
      %2651 = sbr.rel (0) target = $region33
    $region32: #{tpu_custom_call.1} parent=1 // pred_region
      %2652 = dma.done [#allocation4], 256
    $region33: #{tpu_custom_call.1} parent=1 // pred_fallthru
      _
    %2653 = vsyncpa [#allocation3], 1
    %2654 = vsyncpa [#allocation4], 1

// kernel: tpu_custom_call.1
$region0: #{tpu_custom_call.1}
  #allocation0 [shape = 'u32[]', space=smem, size = 0x4, offset = 0x4, fixed_abs, tag = 'smem constant byte address 0x4 - core index']
  #allocation1 [shape = 'u32[144,128]{1,0:T(1,128)}', space=vmem, size = 0x12000, scoped, tag = 'internal scratch']
  %s0 = inlined_call_operand.hbm [shape: f32[2,8,32], index: 0, kind: input, shape index: {}]
  %s1 = inlined_call_operand.vmem [shape: f32[32,64], index: 1, kind: input, shape index: {}]
  %s2 = inlined_call_operand.vmem [shape: f32[32,64], index: 2, kind: input, shape index: {}]
  %s3 = inlined_call_operand.vmem [shape: f32[32,64], index: 3, kind: input, shape index: {}]
  %s4 = inlined_call_operand.vmem [shape: f32[64,32], index: 4, kind: input, shape index: {}]
  %s5 = inlined_call_operand.hbm [shape: f32[2,8,32], index: 5, kind: output, shape index: {}]
  %s6 = sld [smem:[#allocation0]]
  $region34: #{tpu_custom_call.1} parent=0
    _
  %s8 = ssub.s32 1, %s6
  %s9 = scalar_select 0, %s8, %s6
  $region1: #{tpu_custom_call.1} parent=0
    #allocation2 [shape = 'u8[8192]{0}', space=vmem, size = 0x2000, scoped, tag = 'input window, operand 0, single buffered']
    #allocation3 [shape = 's32[1]{0}', space=sflag, size = 0x4, scoped, tag = 'scoped memory for tpu_custom_call.1']
    #allocation4 [shape = 's32[1]{0}', space=sflag, size = 0x4, scoped, tag = 'scoped memory for tpu_custom_call.1']
    #allocation5 [shape = 'u8[8192]{0}', space=vmem, size = 0x2000, scoped, tag = 'output window, operand 0, single buffered']
    %10 = vsyncpa [#allocation3], 0
    %11 = vsyncpa [#allocation4], 0
    // Predicated region
    $region2: #{tpu_custom_call.1} parent=1 // pred_check
      _
    $region3: #{tpu_custom_call.1} parent=1 // pred_check_branch
      %13 = sbr.rel (0) target = $region5
    $region4: #{tpu_custom_call.1} parent=1 // pred_region
      %s15 = ssub.s32 256, 256
      %16 = vsyncadd [#allocation3], %s15
      %s17 = sshll.u32 [#allocation2], 4
      %s18 = int_to_ptr.vmem [resolvable:$true] %s17
      %23 = dma.hbm_to_vmem [thread:$0]  %s0, 256, %s18, [#allocation3], 128, 128, 8
    $region5: #{tpu_custom_call.1} parent=1 // pred_fallthru
      _
    // Predicated region
    $region6: #{tpu_custom_call.1} parent=1 // pred_check
      _
    $region7: #{tpu_custom_call.1} parent=1 // pred_check_branch
      %25 = sbr.rel (0) target = $region9
    $region8: #{tpu_custom_call.1} parent=1 // pred_region
      _
    $region9: #{tpu_custom_call.1} parent=1 // pred_fallthru
      _
    // Predicated region
    $region10: #{tpu_custom_call.1} parent=1 // pred_check
      _
    $region11: #{tpu_custom_call.1} parent=1 // pred_check_branch
      %27 = sbr.rel (0) target = $region13
    $region12: #{tpu_custom_call.1} parent=1 // pred_region
      _
    $region13: #{tpu_custom_call.1} parent=1 // pred_fallthru
      _
    // Predicated region
    $region14: #{tpu_custom_call.1} parent=1 // pred_check
      _
    $region15: #{tpu_custom_call.1} parent=1 // pred_check_branch
      %29 = sbr.rel (0) target = $region17
    $region16: #{tpu_custom_call.1} parent=1 // pred_region
      _
    $region17: #{tpu_custom_call.1} parent=1 // pred_fallthru
      _
    // Predicated region
    $region18: #{tpu_custom_call.1} parent=1 // pred_check
      _
    $region19: #{tpu_custom_call.1} parent=1 // pred_check_branch
      %31 = sbr.rel (0) target = $region21
    $region20: #{tpu_custom_call.1} parent=1 // pred_region
      _
    $region21: #{tpu_custom_call.1} parent=1 // pred_fallthru
      _
    // Predicated region
    $region22: #{tpu_custom_call.1} parent=1 // pred_check
      _
    $region23: #{tpu_custom_call.1} parent=1 // pred_check_branch
      %33 = sbr.rel (0) target = $region25
    $region24: #{tpu_custom_call.1} parent=1 // pred_region
      %34 = dma.done [#allocation3], 256
    $region25: #{tpu_custom_call.1} parent=1 // pred_fallthru
      _
    %v36 = vld [vmem:[#allocation2] sm:$0xff]
    %v37 = vld [vmem:[#allocation2 + $0x8] sm:$0xff]
    %v38 = vld [vmem:[%s1] sm:$0xff]
    %v39 = vld [vmem:[%s1 + $0x8] sm:$0xff]
    %v40 = vld [vmem:[%s1 + $0x10] sm:$0xff]
    %v41 = vld [vmem:[%s1 + $0x18] sm:$0xff]
    %vm42 = vcmask 261120
    %v44 = vsel %vm42, %v36, 0
    %v47 = vsel %vm42, %v37, 0
    %49 = vmatprep.subr.mxu0 0.0
    %50 = vmatpush1.msra.mxu0 0.0
    %51 = vmatprep.subr.mxu0 0.0
    %52 = vmatpush1.msra.mxu0 0.0
    %53 = vmatprep.subr.mxu0 0.0
    %54 = vmatpush1.msra.mxu0 0.0
    %55 = vmatprep.subr.mxu0 0.0
    %56 = vmatpush1.msra.mxu0 0.0
    %57 = vmatprep.subr.mxu0 0.0
    %58 = vmatpush1.msra.mxu0 0.0
    %59 = vmatprep.subr.mxu0 0.0
    %60 = vmatpush1.msra.mxu0 0.0
    %61 = vmatprep.subr.mxu0 0.0
    %62 = vmatpush1.msra.mxu0 0.0
    %63 = vmatprep.subr.mxu0 0.0
    %64 = vmatpush1.msra.mxu0 0.0
    %65 = vmatprep.subr.mxu0 0.0
    %66 = vmatpush1.msra.mxu0 0.0
    %67 = vmatprep.subr.mxu0 0.0
    %68 = vmatpush1.msra.mxu0 0.0
    %69 = vmatprep.subr.mxu0 0.0
    %70 = vmatpush1.msra.mxu0 0.0
    %71 = vmatprep.subr.mxu0 0.0
    %72 = vmatpush1.msra.mxu0 0.0
    %73 = vmatprep.subr.mxu0 0.0
    %74 = vmatpush1.msra.mxu0 %v41
    %75 = vmatprep.subr.mxu0 0.0
    %76 = vmatpush1.msra.mxu0 %v40
    %77 = vmatprep.subr.mxu0 0.0
    %78 = vmatpush1.msra.mxu0 %v39
    %79 = vmatprep.subr.mxu0 0.0
    %80 = vmatpush1.msra.mxu0 %v38
    %81 = vmatprep.subr.mxu0 0.0
    %82 = vmatpush2.msra.mxu0 0.0
    %83 = vmatprep.subr.mxu0 0.0
    %84 = vmatpush2.msra.mxu0 0.0
    %85 = vmatprep.subr.mxu0 0.0
    %86 = vmatpush2.msra.mxu0 0.0
    %87 = vmatprep.subr.mxu0 0.0
    %88 = vmatpush2.msra.mxu0 0.0
    %89 = vmatprep.subr.mxu0 0.0
    %90 = vmatpush2.msra.mxu0 0.0
    %91 = vmatprep.subr.mxu0 0.0
    %92 = vmatpush2.msra.mxu0 0.0
    %93 = vmatprep.subr.mxu0 0.0
    %94 = vmatpush2.msra.mxu0 0.0
    %95 = vmatprep.subr.mxu0 0.0
    %96 = vmatpush2.msra.mxu0 0.0
    %97 = vmatprep.subr.mxu0 0.0
    %98 = vmatpush2.msra.mxu0 0.0
    %99 = vmatprep.subr.mxu0 0.0
    %100 = vmatpush2.msra.mxu0 0.0
    %101 = vmatprep.subr.mxu0 0.0
    %102 = vmatpush2.msra.mxu0 0.0
    %103 = vmatprep.subr.mxu0 0.0
    %104 = vmatpush2.msra.mxu0 0.0
    %105 = vmatprep.subr.mxu0 0.0
    %106 = vmatpush2.msra.mxu0 0.0
    %107 = vmatprep.subr.mxu0 0.0
    %108 = vmatpush2.msra.mxu0 0.0
    %109 = vmatprep.subr.mxu0 0.0
    %110 = vmatpush2.msra.mxu0 0.0
    %111 = vmatprep.subr.mxu0 0.0
    %112 = vmatpush2.msra.mxu0 0.0
    %113 = vmatprep.mubr.f32.mxu0 0.0
    %114 = vmatmul.mubr.f32.gmra.mxu0 %v44
    %v115 = vpop.f32.mrf.mxu0
    %v116 = vadd.f32 0.0, %v115
    %v117 = vpop.f32.mrf.mxu0
    %118 = vmatprep.mubr.f32.mxu0 0.0
    %119 = vmatmul.mubr.f32.gmra.mxu0 %v47
    %v120 = vpop.f32.mrf.mxu0
    %v121 = vadd.f32 0.0, %v120
    %v122 = vpop.f32.mrf.mxu0
    %123 = vdwg.mxu0
    %v124 = vld [vmem:[%s2] sm:$0xff]
    %v125 = vld [vmem:[%s2 + $0x8] sm:$0xff]
    %v126 = vld [vmem:[%s2 + $0x10] sm:$0xff]
    %v127 = vld [vmem:[%s2 + $0x18] sm:$0xff]
    %128 = vmatprep.subr.mxu0 0.0
    %129 = vmatpush1.msra.mxu0 0.0
    %130 = vmatprep.subr.mxu0 0.0
    %131 = vmatpush1.msra.mxu0 0.0
    %132 = vmatprep.subr.mxu0 0.0
    %133 = vmatpush1.msra.mxu0 0.0
    %134 = vmatprep.subr.mxu0 0.0
    %135 = vmatpush1.msra.mxu0 0.0
    %136 = vmatprep.subr.mxu0 0.0
    %137 = vmatpush1.msra.mxu0 0.0
    %138 = vmatprep.subr.mxu0 0.0
    %139 = vmatpush1.msra.mxu0 0.0
    %140 = vmatprep.subr.mxu0 0.0
    %141 = vmatpush1.msra.mxu0 0.0
    %142 = vmatprep.subr.mxu0 0.0
    %143 = vmatpush1.msra.mxu0 0.0
    %144 = vmatprep.subr.mxu0 0.0
    %145 = vmatpush1.msra.mxu0 0.0
    %146 = vmatprep.subr.mxu0 0.0
    %147 = vmatpush1.msra.mxu0 0.0
    %148 = vmatprep.subr.mxu0 0.0
    %149 = vmatpush1.msra.mxu0 0.0
    %150 = vmatprep.subr.mxu0 0.0
    %151 = vmatpush1.msra.mxu0 0.0
    %152 = vmatprep.subr.mxu0 0.0
    %153 = vmatpush1.msra.mxu0 %v127
    %154 = vmatprep.subr.mxu0 0.0
    %155 = vmatpush1.msra.mxu0 %v126
    %156 = vmatprep.subr.mxu0 0.0
    %157 = vmatpush1.msra.mxu0 %v125
    %158 = vmatprep.subr.mxu0 0.0
    %159 = vmatpush1.msra.mxu0 %v124
    %160 = vmatprep.subr.mxu0 0.0
    %161 = vmatpush2.msra.mxu0 0.0
    %162 = vmatprep.subr.mxu0 0.0
    %163 = vmatpush2.msra.mxu0 0.0
    %164 = vmatprep.subr.mxu0 0.0
    %165 = vmatpush2.msra.mxu0 0.0
    %166 = vmatprep.subr.mxu0 0.0
    %167 = vmatpush2.msra.mxu0 0.0
    %168 = vmatprep.subr.mxu0 0.0
    %169 = vmatpush2.msra.mxu0 0.0
    %170 = vmatprep.subr.mxu0 0.0
    %171 = vmatpush2.msra.mxu0 0.0
    %172 = vmatprep.subr.mxu0 0.0
    %173 = vmatpush2.msra.mxu0 0.0
    %174 = vmatprep.subr.mxu0 0.0
    %175 = vmatpush2.msra.mxu0 0.0
    %176 = vmatprep.subr.mxu0 0.0
    %177 = vmatpush2.msra.mxu0 0.0
    %178 = vmatprep.subr.mxu0 0.0
    %179 = vmatpush2.msra.mxu0 0.0
    %180 = vmatprep.subr.mxu0 0.0
    %181 = vmatpush2.msra.mxu0 0.0
    %182 = vmatprep.subr.mxu0 0.0
    %183 = vmatpush2.msra.mxu0 0.0
    %184 = vmatprep.subr.mxu0 0.0
    %185 = vmatpush2.msra.mxu0 0.0
    %186 = vmatprep.subr.mxu0 0.0
    %187 = vmatpush2.msra.mxu0 0.0
    %188 = vmatprep.subr.mxu0 0.0
    %189 = vmatpush2.msra.mxu0 0.0
    %190 = vmatprep.subr.mxu0 0.0
    %191 = vmatpush2.msra.mxu0 0.0
    %192 = vmatprep.mubr.f32.mxu0 0.0
    %193 = vmatmul.mubr.f32.gmra.mxu0 %v44
    %v194 = vpop.f32.mrf.mxu0
    %v195 = vadd.f32 0.0, %v194
    %v196 = vpop.f32.mrf.mxu0
    %197 = vmatprep.mubr.f32.mxu0 0.0
    %198 = vmatmul.mubr.f32.gmra.mxu0 %v47
    %v199 = vpop.f32.mrf.mxu0
    %v200 = vadd.f32 0.0, %v199
    %v201 = vpop.f32.mrf.mxu0
    %202 = vdwg.mxu0
    %v203 = vld [vmem:[%s3] sm:$0xff]
    %v204 = vld [vmem:[%s3 + $0x8] sm:$0xff]
    %v205 = vld [vmem:[%s3 + $0x10] sm:$0xff]
    %v206 = vld [vmem:[%s3 + $0x18] sm:$0xff]
    %207 = vmatprep.subr.mxu0 0.0
    %208 = vmatpush1.msra.mxu0 0.0
    %209 = vmatprep.subr.mxu0 0.0
    %210 = vmatpush1.msra.mxu0 0.0
    %211 = vmatprep.subr.mxu0 0.0
    %212 = vmatpush1.msra.mxu0 0.0
    %213 = vmatprep.subr.mxu0 0.0
    %214 = vmatpush1.msra.mxu0 0.0
    %215 = vmatprep.subr.mxu0 0.0
    %216 = vmatpush1.msra.mxu0 0.0
    %217 = vmatprep.subr.mxu0 0.0
    %218 = vmatpush1.msra.mxu0 0.0
    %219 = vmatprep.subr.mxu0 0.0
    %220 = vmatpush1.msra.mxu0 0.0
    %221 = vmatprep.subr.mxu0 0.0
    %222 = vmatpush1.msra.mxu0 0.0
    %223 = vmatprep.subr.mxu0 0.0
    %224 = vmatpush1.msra.mxu0 0.0
    %225 = vmatprep.subr.mxu0 0.0
    %226 = vmatpush1.msra.mxu0 0.0
    %227 = vmatprep.subr.mxu0 0.0
    %228 = vmatpush1.msra.mxu0 0.0
    %229 = vmatprep.subr.mxu0 0.0
    %230 = vmatpush1.msra.mxu0 0.0
    %231 = vmatprep.subr.mxu0 0.0
    %232 = vmatpush1.msra.mxu0 %v206
    %233 = vmatprep.subr.mxu0 0.0
    %234 = vmatpush1.msra.mxu0 %v205
    %235 = vmatprep.subr.mxu0 0.0
    %236 = vmatpush1.msra.mxu0 %v204
    %237 = vmatprep.subr.mxu0 0.0
    %238 = vmatpush1.msra.mxu0 %v203
    %239 = vmatprep.subr.mxu0 0.0
    %240 = vmatpush2.msra.mxu0 0.0
    %241 = vmatprep.subr.mxu0 0.0
    %242 = vmatpush2.msra.mxu0 0.0
    %243 = vmatprep.subr.mxu0 0.0
    %244 = vmatpush2.msra.mxu0 0.0
    %245 = vmatprep.subr.mxu0 0.0
    %246 = vmatpush2.msra.mxu0 0.0
    %247 = vmatprep.subr.mxu0 0.0
    %248 = vmatpush2.msra.mxu0 0.0
    %249 = vmatprep.subr.mxu0 0.0
    %250 = vmatpush2.msra.mxu0 0.0
    %251 = vmatprep.subr.mxu0 0.0
    %252 = vmatpush2.msra.mxu0 0.0
    %253 = vmatprep.subr.mxu0 0.0
    %254 = vmatpush2.msra.mxu0 0.0
    %255 = vmatprep.subr.mxu0 0.0
    %256 = vmatpush2.msra.mxu0 0.0
    %257 = vmatprep.subr.mxu0 0.0
    %258 = vmatpush2.msra.mxu0 0.0
    %259 = vmatprep.subr.mxu0 0.0
    %260 = vmatpush2.msra.mxu0 0.0
    %261 = vmatprep.subr.mxu0 0.0
    %262 = vmatpush2.msra.mxu0 0.0
    %263 = vmatprep.subr.mxu0 0.0
    %264 = vmatpush2.msra.mxu0 0.0
    %265 = vmatprep.subr.mxu0 0.0
    %266 = vmatpush2.msra.mxu0 0.0
    %267 = vmatprep.subr.mxu0 0.0
    %268 = vmatpush2.msra.mxu0 0.0
    %269 = vmatprep.subr.mxu0 0.0
    %270 = vmatpush2.msra.mxu0 0.0
    %271 = vmatprep.mubr.f32.mxu0 0.0
    %272 = vmatmul.mubr.f32.gmra.mxu0 %v44
    %v273 = vpop.f32.mrf.mxu0
    %v274 = vadd.f32 0.0, %v273
    %v275 = vpop.f32.mrf.mxu0
    %276 = vmatprep.mubr.f32.mxu0 0.0
    %277 = vmatmul.mubr.f32.gmra.mxu0 %v47
    %v278 = vpop.f32.mrf.mxu0
    %v279 = vadd.f32 0.0, %v278
    %v280 = vpop.f32.mrf.mxu0
    %281 = vdwg.mxu0
    %v282 = vmul.f32 %v116, 0.25
    %v283 = vmul.f32 %v121, 0.25
    %286 = vrot.lane.b32.xlu0 %v282, 112
    %v287 = vpop.permute.xlu0 %286
    %288 = vrot.lane.b32.xlu0 %v283, 112
    %v289 = vpop.permute.xlu0 %288
    %292 = vrot.lane.b32.xlu0 %v282, 96
    %v293 = vpop.permute.xlu0 %292
    %294 = vrot.lane.b32.xlu0 %v283, 96
    %v295 = vpop.permute.xlu0 %294
    %298 = vrot.lane.b32.xlu0 %v282, 80
    %v299 = vpop.permute.xlu0 %298
    %300 = vrot.lane.b32.xlu0 %v283, 80
    %v301 = vpop.permute.xlu0 %300
    %v304 = vcombine.low %v282, %v293
    %v305 = vcombine.high %v282, %v293
    %v307 = vunpack.c.l.s4 1983009808
    %v308 = vunpack.c.0.s8 %v307
    %v309 = vlaneseq
    %v310 = vshrl.u32 %v309, 7
    %v311 = vsub.s32 %v308, %v310
    %v312 = vrot.slane %v304, %v311
    %v314 = vunpack.c.l.s4 1983009808
    %v315 = vunpack.c.0.s8 %v314
    %v316 = vlaneseq
    %v317 = vshrl.u32 %v316, 7
    %v318 = vsub.s32 %v315, %v317
    %v319 = vrot.slane %v305, %v318
    %v320 = vcombine.low %v287, %v299
    %v321 = vcombine.high %v287, %v299
    %v323 = vunpack.c.l.s4 1983009808
    %v324 = vunpack.c.0.s8 %v323
    %v325 = vlaneseq
    %v326 = vshrl.u32 %v325, 7
    %v327 = vsub.s32 %v324, %v326
    %v328 = vrot.slane %v320, %v327
    %v330 = vunpack.c.l.s4 1983009808
    %v331 = vunpack.c.0.s8 %v330
    %v332 = vlaneseq
    %v333 = vshrl.u32 %v332, 7
    %v334 = vsub.s32 %v331, %v333
    %v335 = vrot.slane %v321, %v334
    %v336 = vcombine.low %v312, %v328
    %v337 = vcombine.high %v312, %v328
    %v339 = vunpack.c.l.s4 1934713408
    %v340 = vunpack.c.0.s8 %v339
    %v341 = vlaneseq
    %v342 = vshrl.u32 %v341, 7
    %v343 = vsub.s32 %v340, %v342
    %v344 = vrot.slane %v336, %v343
    %v346 = vunpack.c.l.s4 1934713408
    %v347 = vunpack.c.0.s8 %v346
    %v348 = vlaneseq
    %v349 = vshrl.u32 %v348, 7
    %v350 = vsub.s32 %v347, %v349
    %v351 = vrot.slane %v337, %v350
    %v352 = vcombine.low %v319, %v335
    %v353 = vcombine.high %v319, %v335
    %v355 = vunpack.c.l.s4 1934713408
    %v356 = vunpack.c.0.s8 %v355
    %v357 = vlaneseq
    %v358 = vshrl.u32 %v357, 7
    %v359 = vsub.s32 %v356, %v358
    %v360 = vrot.slane %v352, %v359
    %v362 = vunpack.c.l.s4 1934713408
    %v363 = vunpack.c.0.s8 %v362
    %v364 = vlaneseq
    %v365 = vshrl.u32 %v364, 7
    %v366 = vsub.s32 %v363, %v365
    %v367 = vrot.slane %v353, %v366
    %v368 = vcombine.high %v344, 0.0
    %v369 = vcombine.high %v351, 0.0
    %v370 = vcombine.high %v360, 0.0
    %v371 = vcombine.high %v367, 0.0
    %v372 = vcombine.low %v283, %v295
    %v373 = vcombine.high %v283, %v295
    %v375 = vunpack.c.l.s4 1983009808
    %v376 = vunpack.c.0.s8 %v375
    %v377 = vlaneseq
    %v378 = vshrl.u32 %v377, 7
    %v379 = vsub.s32 %v376, %v378
    %v380 = vrot.slane %v372, %v379
    %v382 = vunpack.c.l.s4 1983009808
    %v383 = vunpack.c.0.s8 %v382
    %v384 = vlaneseq
    %v385 = vshrl.u32 %v384, 7
    %v386 = vsub.s32 %v383, %v385
    %v387 = vrot.slane %v373, %v386
    %v388 = vcombine.low %v289, %v301
    %v389 = vcombine.high %v289, %v301
    %v391 = vunpack.c.l.s4 1983009808
    %v392 = vunpack.c.0.s8 %v391
    %v393 = vlaneseq
    %v394 = vshrl.u32 %v393, 7
    %v395 = vsub.s32 %v392, %v394
    %v396 = vrot.slane %v388, %v395
    %v398 = vunpack.c.l.s4 1983009808
    %v399 = vunpack.c.0.s8 %v398
    %v400 = vlaneseq
    %v401 = vshrl.u32 %v400, 7
    %v402 = vsub.s32 %v399, %v401
    %v403 = vrot.slane %v389, %v402
    %v404 = vcombine.low %v380, %v396
    %v405 = vcombine.high %v380, %v396
    %v407 = vunpack.c.l.s4 1934713408
    %v408 = vunpack.c.0.s8 %v407
    %v409 = vlaneseq
    %v410 = vshrl.u32 %v409, 7
    %v411 = vsub.s32 %v408, %v410
    %v412 = vrot.slane %v404, %v411
    %v414 = vunpack.c.l.s4 1934713408
    %v415 = vunpack.c.0.s8 %v414
    %v416 = vlaneseq
    %v417 = vshrl.u32 %v416, 7
    %v418 = vsub.s32 %v415, %v417
    %v419 = vrot.slane %v405, %v418
    %v420 = vcombine.low %v387, %v403
    %v421 = vcombine.high %v387, %v403
    %v423 = vunpack.c.l.s4 1934713408
    %v424 = vunpack.c.0.s8 %v423
    %v425 = vlaneseq
    %v426 = vshrl.u32 %v425, 7
    %v427 = vsub.s32 %v424, %v426
    %v428 = vrot.slane %v420, %v427
    %v430 = vunpack.c.l.s4 1934713408
    %v431 = vunpack.c.0.s8 %v430
    %v432 = vlaneseq
    %v433 = vshrl.u32 %v432, 7
    %v434 = vsub.s32 %v431, %v433
    %v435 = vrot.slane %v421, %v434
    %v436 = vcombine.high %v412, 0.0
    %v437 = vcombine.high %v419, 0.0
    %v438 = vcombine.high %v428, 0.0
    %v439 = vcombine.high %v435, 0.0
    %v440 = vcombine.low %v344, %v351
    %v442 = vunpack.c.l.s4 1983009808
    %v443 = vunpack.c.0.s8 %v442
    %v444 = vlaneseq
    %v445 = vshrl.u32 %v444, 7
    %v446 = vsub.s32 %v443, %v445
    %v447 = vrot.slane %v440, %v446
    %v448 = vcombine.low %v368, %v369
    %v450 = vunpack.c.l.s4 1983009808
    %v451 = vunpack.c.0.s8 %v450
    %v452 = vlaneseq
    %v453 = vshrl.u32 %v452, 7
    %v454 = vsub.s32 %v451, %v453
    %v455 = vrot.slane %v448, %v454
    %v456 = vcombine.low %v360, %v367
    %v458 = vunpack.c.l.s4 1983009808
    %v459 = vunpack.c.0.s8 %v458
    %v460 = vlaneseq
    %v461 = vshrl.u32 %v460, 7
    %v462 = vsub.s32 %v459, %v461
    %v463 = vrot.slane %v456, %v462
    %v464 = vcombine.low %v370, %v371
    %v466 = vunpack.c.l.s4 1983009808
    %v467 = vunpack.c.0.s8 %v466
    %v468 = vlaneseq
    %v469 = vshrl.u32 %v468, 7
    %v470 = vsub.s32 %v467, %v469
    %v471 = vrot.slane %v464, %v470
    %v472 = vcombine.low %v447, %v455
    %v473 = vcombine.high %v447, %v455
    %v475 = vunpack.c.l.s4 1934713408
    %v476 = vunpack.c.0.s8 %v475
    %v477 = vlaneseq
    %v478 = vshrl.u32 %v477, 7
    %v479 = vsub.s32 %v476, %v478
    %v480 = vrot.slane %v472, %v479
    %v482 = vunpack.c.l.s4 1934713408
    %v483 = vunpack.c.0.s8 %v482
    %v484 = vlaneseq
    %v485 = vshrl.u32 %v484, 7
    %v486 = vsub.s32 %v483, %v485
    %v487 = vrot.slane %v473, %v486
    %v488 = vcombine.low %v463, %v471
    %v489 = vcombine.high %v463, %v471
    %v491 = vunpack.c.l.s4 1934713408
    %v492 = vunpack.c.0.s8 %v491
    %v493 = vlaneseq
    %v494 = vshrl.u32 %v493, 7
    %v495 = vsub.s32 %v492, %v494
    %v496 = vrot.slane %v488, %v495
    %v498 = vunpack.c.l.s4 1934713408
    %v499 = vunpack.c.0.s8 %v498
    %v500 = vlaneseq
    %v501 = vshrl.u32 %v500, 7
    %v502 = vsub.s32 %v499, %v501
    %v503 = vrot.slane %v489, %v502
    %v504 = vcombine.low %v480, %v496
    %v505 = vcombine.high %v480, %v496
    %v506 = vcombine.low %v487, %v503
    %v507 = vcombine.high %v487, %v503
    %v508 = vcombine.low %v412, %v419
    %v510 = vunpack.c.l.s4 1983009808
    %v511 = vunpack.c.0.s8 %v510
    %v512 = vlaneseq
    %v513 = vshrl.u32 %v512, 7
    %v514 = vsub.s32 %v511, %v513
    %v515 = vrot.slane %v508, %v514
    %v516 = vcombine.low %v436, %v437
    %v518 = vunpack.c.l.s4 1983009808
    %v519 = vunpack.c.0.s8 %v518
    %v520 = vlaneseq
    %v521 = vshrl.u32 %v520, 7
    %v522 = vsub.s32 %v519, %v521
    %v523 = vrot.slane %v516, %v522
    %v524 = vcombine.low %v428, %v435
    %v526 = vunpack.c.l.s4 1983009808
    %v527 = vunpack.c.0.s8 %v526
    %v528 = vlaneseq
    %v529 = vshrl.u32 %v528, 7
    %v530 = vsub.s32 %v527, %v529
    %v531 = vrot.slane %v524, %v530
    %v532 = vcombine.low %v438, %v439
    %v534 = vunpack.c.l.s4 1983009808
    %v535 = vunpack.c.0.s8 %v534
    %v536 = vlaneseq
    %v537 = vshrl.u32 %v536, 7
    %v538 = vsub.s32 %v535, %v537
    %v539 = vrot.slane %v532, %v538
    %v540 = vcombine.low %v515, %v523
    %v541 = vcombine.high %v515, %v523
    %v543 = vunpack.c.l.s4 1934713408
    %v544 = vunpack.c.0.s8 %v543
    %v545 = vlaneseq
    %v546 = vshrl.u32 %v545, 7
    %v547 = vsub.s32 %v544, %v546
    %v548 = vrot.slane %v540, %v547
    %v550 = vunpack.c.l.s4 1934713408
    %v551 = vunpack.c.0.s8 %v550
    %v552 = vlaneseq
    %v553 = vshrl.u32 %v552, 7
    %v554 = vsub.s32 %v551, %v553
    %v555 = vrot.slane %v541, %v554
    %v556 = vcombine.low %v531, %v539
    %v557 = vcombine.high %v531, %v539
    %v559 = vunpack.c.l.s4 1934713408
    %v560 = vunpack.c.0.s8 %v559
    %v561 = vlaneseq
    %v562 = vshrl.u32 %v561, 7
    %v563 = vsub.s32 %v560, %v562
    %v564 = vrot.slane %v556, %v563
    %v566 = vunpack.c.l.s4 1934713408
    %v567 = vunpack.c.0.s8 %v566
    %v568 = vlaneseq
    %v569 = vshrl.u32 %v568, 7
    %v570 = vsub.s32 %v567, %v569
    %v571 = vrot.slane %v557, %v570
    %v572 = vcombine.low %v548, %v564
    %v573 = vcombine.high %v548, %v564
    %v574 = vcombine.low %v555, %v571
    %v575 = vcombine.high %v555, %v571
    %578 = vrot.lane.b32.xlu0 %v195, 112
    %v579 = vpop.permute.xlu0 %578
    %580 = vrot.lane.b32.xlu0 %v200, 112
    %v581 = vpop.permute.xlu0 %580
    %584 = vrot.lane.b32.xlu0 %v195, 96
    %v585 = vpop.permute.xlu0 %584
    %586 = vrot.lane.b32.xlu0 %v200, 96
    %v587 = vpop.permute.xlu0 %586
    %590 = vrot.lane.b32.xlu0 %v195, 80
    %v591 = vpop.permute.xlu0 %590
    %592 = vrot.lane.b32.xlu0 %v200, 80
    %v593 = vpop.permute.xlu0 %592
    %v596 = vcombine.low %v195, %v585
    %v597 = vcombine.high %v195, %v585
    %v599 = vunpack.c.l.s4 1983009808
    %v600 = vunpack.c.0.s8 %v599
    %v601 = vlaneseq
    %v602 = vshrl.u32 %v601, 7
    %v603 = vsub.s32 %v600, %v602
    %v604 = vrot.slane %v596, %v603
    %v606 = vunpack.c.l.s4 1983009808
    %v607 = vunpack.c.0.s8 %v606
    %v608 = vlaneseq
    %v609 = vshrl.u32 %v608, 7
    %v610 = vsub.s32 %v607, %v609
    %v611 = vrot.slane %v597, %v610
    %v612 = vcombine.low %v579, %v591
    %v613 = vcombine.high %v579, %v591
    %v615 = vunpack.c.l.s4 1983009808
    %v616 = vunpack.c.0.s8 %v615
    %v617 = vlaneseq
    %v618 = vshrl.u32 %v617, 7
    %v619 = vsub.s32 %v616, %v618
    %v620 = vrot.slane %v612, %v619
    %v622 = vunpack.c.l.s4 1983009808
    %v623 = vunpack.c.0.s8 %v622
    %v624 = vlaneseq
    %v625 = vshrl.u32 %v624, 7
    %v626 = vsub.s32 %v623, %v625
    %v627 = vrot.slane %v613, %v626
    %v628 = vcombine.low %v604, %v620
    %v629 = vcombine.high %v604, %v620
    %v631 = vunpack.c.l.s4 1934713408
    %v632 = vunpack.c.0.s8 %v631
    %v633 = vlaneseq
    %v634 = vshrl.u32 %v633, 7
    %v635 = vsub.s32 %v632, %v634
    %v636 = vrot.slane %v628, %v635
    %v638 = vunpack.c.l.s4 1934713408
    %v639 = vunpack.c.0.s8 %v638
    %v640 = vlaneseq
    %v641 = vshrl.u32 %v640, 7
    %v642 = vsub.s32 %v639, %v641
    %v643 = vrot.slane %v629, %v642
    %v644 = vcombine.low %v611, %v627
    %v645 = vcombine.high %v611, %v627
    %v647 = vunpack.c.l.s4 1934713408
    %v648 = vunpack.c.0.s8 %v647
    %v649 = vlaneseq
    %v650 = vshrl.u32 %v649, 7
    %v651 = vsub.s32 %v648, %v650
    %v652 = vrot.slane %v644, %v651
    %v654 = vunpack.c.l.s4 1934713408
    %v655 = vunpack.c.0.s8 %v654
    %v656 = vlaneseq
    %v657 = vshrl.u32 %v656, 7
    %v658 = vsub.s32 %v655, %v657
    %v659 = vrot.slane %v645, %v658
    %v660 = vcombine.high %v636, 0.0
    %v661 = vcombine.high %v643, 0.0
    %v662 = vcombine.high %v652, 0.0
    %v663 = vcombine.high %v659, 0.0
    %v664 = vcombine.low %v200, %v587
    %v665 = vcombine.high %v200, %v587
    %v667 = vunpack.c.l.s4 1983009808
    %v668 = vunpack.c.0.s8 %v667
    %v669 = vlaneseq
    %v670 = vshrl.u32 %v669, 7
    %v671 = vsub.s32 %v668, %v670
    %v672 = vrot.slane %v664, %v671
    %v674 = vunpack.c.l.s4 1983009808
    %v675 = vunpack.c.0.s8 %v674
    %v676 = vlaneseq
    %v677 = vshrl.u32 %v676, 7
    %v678 = vsub.s32 %v675, %v677
    %v679 = vrot.slane %v665, %v678
    %v680 = vcombine.low %v581, %v593
    %v681 = vcombine.high %v581, %v593
    %v683 = vunpack.c.l.s4 1983009808
    %v684 = vunpack.c.0.s8 %v683
    %v685 = vlaneseq
    %v686 = vshrl.u32 %v685, 7
    %v687 = vsub.s32 %v684, %v686
    %v688 = vrot.slane %v680, %v687
    %v690 = vunpack.c.l.s4 1983009808
    %v691 = vunpack.c.0.s8 %v690
    %v692 = vlaneseq
    %v693 = vshrl.u32 %v692, 7
    %v694 = vsub.s32 %v691, %v693
    %v695 = vrot.slane %v681, %v694
    %v696 = vcombine.low %v672, %v688
    %v697 = vcombine.high %v672, %v688
    %v699 = vunpack.c.l.s4 1934713408
    %v700 = vunpack.c.0.s8 %v699
    %v701 = vlaneseq
    %v702 = vshrl.u32 %v701, 7
    %v703 = vsub.s32 %v700, %v702
    %v704 = vrot.slane %v696, %v703
    %v706 = vunpack.c.l.s4 1934713408
    %v707 = vunpack.c.0.s8 %v706
    %v708 = vlaneseq
    %v709 = vshrl.u32 %v708, 7
    %v710 = vsub.s32 %v707, %v709
    %v711 = vrot.slane %v697, %v710
    %v712 = vcombine.low %v679, %v695
    %v713 = vcombine.high %v679, %v695
    %v715 = vunpack.c.l.s4 1934713408
    %v716 = vunpack.c.0.s8 %v715
    %v717 = vlaneseq
    %v718 = vshrl.u32 %v717, 7
    %v719 = vsub.s32 %v716, %v718
    %v720 = vrot.slane %v712, %v719
    %v722 = vunpack.c.l.s4 1934713408
    %v723 = vunpack.c.0.s8 %v722
    %v724 = vlaneseq
    %v725 = vshrl.u32 %v724, 7
    %v726 = vsub.s32 %v723, %v725
    %v727 = vrot.slane %v713, %v726
    %v728 = vcombine.high %v704, 0.0
    %v729 = vcombine.high %v711, 0.0
    %v730 = vcombine.high %v720, 0.0
    %v731 = vcombine.high %v727, 0.0
    %v732 = vcombine.low %v636, %v643
    %v734 = vunpack.c.l.s4 1983009808
    %v735 = vunpack.c.0.s8 %v734
    %v736 = vlaneseq
    %v737 = vshrl.u32 %v736, 7
    %v738 = vsub.s32 %v735, %v737
    %v739 = vrot.slane %v732, %v738
    %v740 = vcombine.low %v660, %v661
    %v742 = vunpack.c.l.s4 1983009808
    %v743 = vunpack.c.0.s8 %v742
    %v744 = vlaneseq
    %v745 = vshrl.u32 %v744, 7
    %v746 = vsub.s32 %v743, %v745
    %v747 = vrot.slane %v740, %v746
    %v748 = vcombine.low %v652, %v659
    %v750 = vunpack.c.l.s4 1983009808
    %v751 = vunpack.c.0.s8 %v750
    %v752 = vlaneseq
    %v753 = vshrl.u32 %v752, 7
    %v754 = vsub.s32 %v751, %v753
    %v755 = vrot.slane %v748, %v754
    %v756 = vcombine.low %v662, %v663
    %v758 = vunpack.c.l.s4 1983009808
    %v759 = vunpack.c.0.s8 %v758
    %v760 = vlaneseq
    %v761 = vshrl.u32 %v760, 7
    %v762 = vsub.s32 %v759, %v761
    %v763 = vrot.slane %v756, %v762
    %v764 = vcombine.low %v739, %v747
    %v765 = vcombine.high %v739, %v747
    %v767 = vunpack.c.l.s4 1934713408
    %v768 = vunpack.c.0.s8 %v767
    %v769 = vlaneseq
    %v770 = vshrl.u32 %v769, 7
    %v771 = vsub.s32 %v768, %v770
    %v772 = vrot.slane %v764, %v771
    %v774 = vunpack.c.l.s4 1934713408
    %v775 = vunpack.c.0.s8 %v774
    %v776 = vlaneseq
    %v777 = vshrl.u32 %v776, 7
    %v778 = vsub.s32 %v775, %v777
    %v779 = vrot.slane %v765, %v778
    %v780 = vcombine.low %v755, %v763
    %v781 = vcombine.high %v755, %v763
    %v783 = vunpack.c.l.s4 1934713408
    %v784 = vunpack.c.0.s8 %v783
    %v785 = vlaneseq
    %v786 = vshrl.u32 %v785, 7
    %v787 = vsub.s32 %v784, %v786
    %v788 = vrot.slane %v780, %v787
    %v790 = vunpack.c.l.s4 1934713408
    %v791 = vunpack.c.0.s8 %v790
    %v792 = vlaneseq
    %v793 = vshrl.u32 %v792, 7
    %v794 = vsub.s32 %v791, %v793
    %v795 = vrot.slane %v781, %v794
    %v796 = vcombine.low %v772, %v788
    %v797 = vcombine.high %v772, %v788
    %v798 = vcombine.low %v779, %v795
    %v799 = vcombine.high %v779, %v795
    %v800 = vcombine.low %v704, %v711
    %v802 = vunpack.c.l.s4 1983009808
    %v803 = vunpack.c.0.s8 %v802
    %v804 = vlaneseq
    %v805 = vshrl.u32 %v804, 7
    %v806 = vsub.s32 %v803, %v805
    %v807 = vrot.slane %v800, %v806
    %v808 = vcombine.low %v728, %v729
    %v810 = vunpack.c.l.s4 1983009808
    %v811 = vunpack.c.0.s8 %v810
    %v812 = vlaneseq
    %v813 = vshrl.u32 %v812, 7
    %v814 = vsub.s32 %v811, %v813
    %v815 = vrot.slane %v808, %v814
    %v816 = vcombine.low %v720, %v727
    %v818 = vunpack.c.l.s4 1983009808
    %v819 = vunpack.c.0.s8 %v818
    %v820 = vlaneseq
    %v821 = vshrl.u32 %v820, 7
    %v822 = vsub.s32 %v819, %v821
    %v823 = vrot.slane %v816, %v822
    %v824 = vcombine.low %v730, %v731
    %v826 = vunpack.c.l.s4 1983009808
    %v827 = vunpack.c.0.s8 %v826
    %v828 = vlaneseq
    %v829 = vshrl.u32 %v828, 7
    %v830 = vsub.s32 %v827, %v829
    %v831 = vrot.slane %v824, %v830
    %v832 = vcombine.low %v807, %v815
    %v833 = vcombine.high %v807, %v815
    %v835 = vunpack.c.l.s4 1934713408
    %v836 = vunpack.c.0.s8 %v835
    %v837 = vlaneseq
    %v838 = vshrl.u32 %v837, 7
    %v839 = vsub.s32 %v836, %v838
    %v840 = vrot.slane %v832, %v839
    %v842 = vunpack.c.l.s4 1934713408
    %v843 = vunpack.c.0.s8 %v842
    %v844 = vlaneseq
    %v845 = vshrl.u32 %v844, 7
    %v846 = vsub.s32 %v843, %v845
    %v847 = vrot.slane %v833, %v846
    %v848 = vcombine.low %v823, %v831
    %v849 = vcombine.high %v823, %v831
    %v851 = vunpack.c.l.s4 1934713408
    %v852 = vunpack.c.0.s8 %v851
    %v853 = vlaneseq
    %v854 = vshrl.u32 %v853, 7
    %v855 = vsub.s32 %v852, %v854
    %v856 = vrot.slane %v848, %v855
    %v858 = vunpack.c.l.s4 1934713408
    %v859 = vunpack.c.0.s8 %v858
    %v860 = vlaneseq
    %v861 = vshrl.u32 %v860, 7
    %v862 = vsub.s32 %v859, %v861
    %v863 = vrot.slane %v849, %v862
    %v864 = vcombine.low %v840, %v856
    %v865 = vcombine.high %v840, %v856
    %v866 = vcombine.low %v847, %v863
    %v867 = vcombine.high %v847, %v863
    %870 = vrot.lane.b32.xlu0 %v274, 112
    %v871 = vpop.permute.xlu0 %870
    %872 = vrot.lane.b32.xlu0 %v279, 112
    %v873 = vpop.permute.xlu0 %872
    %876 = vrot.lane.b32.xlu0 %v274, 96
    %v877 = vpop.permute.xlu0 %876
    %878 = vrot.lane.b32.xlu0 %v279, 96
    %v879 = vpop.permute.xlu0 %878
    %882 = vrot.lane.b32.xlu0 %v274, 80
    %v883 = vpop.permute.xlu0 %882
    %884 = vrot.lane.b32.xlu0 %v279, 80
    %v885 = vpop.permute.xlu0 %884
    %v888 = vcombine.low %v274, %v877
    %v889 = vcombine.high %v274, %v877
    %v891 = vunpack.c.l.s4 1983009808
    %v892 = vunpack.c.0.s8 %v891
    %v893 = vlaneseq
    %v894 = vshrl.u32 %v893, 7
    %v895 = vsub.s32 %v892, %v894
    %v896 = vrot.slane %v888, %v895
    %v898 = vunpack.c.l.s4 1983009808
    %v899 = vunpack.c.0.s8 %v898
    %v900 = vlaneseq
    %v901 = vshrl.u32 %v900, 7
    %v902 = vsub.s32 %v899, %v901
    %v903 = vrot.slane %v889, %v902
    %v904 = vcombine.low %v871, %v883
    %v905 = vcombine.high %v871, %v883
    %v907 = vunpack.c.l.s4 1983009808
    %v908 = vunpack.c.0.s8 %v907
    %v909 = vlaneseq
    %v910 = vshrl.u32 %v909, 7
    %v911 = vsub.s32 %v908, %v910
    %v912 = vrot.slane %v904, %v911
    %v914 = vunpack.c.l.s4 1983009808
    %v915 = vunpack.c.0.s8 %v914
    %v916 = vlaneseq
    %v917 = vshrl.u32 %v916, 7
    %v918 = vsub.s32 %v915, %v917
    %v919 = vrot.slane %v905, %v918
    %v920 = vcombine.low %v896, %v912
    %v921 = vcombine.high %v896, %v912
    %v923 = vunpack.c.l.s4 1934713408
    %v924 = vunpack.c.0.s8 %v923
    %v925 = vlaneseq
    %v926 = vshrl.u32 %v925, 7
    %v927 = vsub.s32 %v924, %v926
    %v928 = vrot.slane %v920, %v927
    %v930 = vunpack.c.l.s4 1934713408
    %v931 = vunpack.c.0.s8 %v930
    %v932 = vlaneseq
    %v933 = vshrl.u32 %v932, 7
    %v934 = vsub.s32 %v931, %v933
    %v935 = vrot.slane %v921, %v934
    %v936 = vcombine.low %v903, %v919
    %v937 = vcombine.high %v903, %v919
    %v939 = vunpack.c.l.s4 1934713408
    %v940 = vunpack.c.0.s8 %v939
    %v941 = vlaneseq
    %v942 = vshrl.u32 %v941, 7
    %v943 = vsub.s32 %v940, %v942
    %v944 = vrot.slane %v936, %v943
    %v946 = vunpack.c.l.s4 1934713408
    %v947 = vunpack.c.0.s8 %v946
    %v948 = vlaneseq
    %v949 = vshrl.u32 %v948, 7
    %v950 = vsub.s32 %v947, %v949
    %v951 = vrot.slane %v937, %v950
    %v952 = vcombine.high %v928, 0.0
    %v953 = vcombine.high %v935, 0.0
    %v954 = vcombine.high %v944, 0.0
    %v955 = vcombine.high %v951, 0.0
    %v956 = vcombine.low %v279, %v879
    %v957 = vcombine.high %v279, %v879
    %v959 = vunpack.c.l.s4 1983009808
    %v960 = vunpack.c.0.s8 %v959
    %v961 = vlaneseq
    %v962 = vshrl.u32 %v961, 7
    %v963 = vsub.s32 %v960, %v962
    %v964 = vrot.slane %v956, %v963
    %v966 = vunpack.c.l.s4 1983009808
    %v967 = vunpack.c.0.s8 %v966
    %v968 = vlaneseq
    %v969 = vshrl.u32 %v968, 7
    %v970 = vsub.s32 %v967, %v969
    %v971 = vrot.slane %v957, %v970
    %v972 = vcombine.low %v873, %v885
    %v973 = vcombine.high %v873, %v885
    %v975 = vunpack.c.l.s4 1983009808
    %v976 = vunpack.c.0.s8 %v975
    %v977 = vlaneseq
    %v978 = vshrl.u32 %v977, 7
    %v979 = vsub.s32 %v976, %v978
    %v980 = vrot.slane %v972, %v979
    %v982 = vunpack.c.l.s4 1983009808
    %v983 = vunpack.c.0.s8 %v982
    %v984 = vlaneseq
    %v985 = vshrl.u32 %v984, 7
    %v986 = vsub.s32 %v983, %v985
    %v987 = vrot.slane %v973, %v986
    %v988 = vcombine.low %v964, %v980
    %v989 = vcombine.high %v964, %v980
    %v991 = vunpack.c.l.s4 1934713408
    %v992 = vunpack.c.0.s8 %v991
    %v993 = vlaneseq
    %v994 = vshrl.u32 %v993, 7
    %v995 = vsub.s32 %v992, %v994
    %v996 = vrot.slane %v988, %v995
    %v998 = vunpack.c.l.s4 1934713408
    %v999 = vunpack.c.0.s8 %v998
    %v1000 = vlaneseq
    %v1001 = vshrl.u32 %v1000, 7
    %v1002 = vsub.s32 %v999, %v1001
    %v1003 = vrot.slane %v989, %v1002
    %v1004 = vcombine.low %v971, %v987
    %v1005 = vcombine.high %v971, %v987
    %v1007 = vunpack.c.l.s4 1934713408
    %v1008 = vunpack.c.0.s8 %v1007
    %v1009 = vlaneseq
    %v1010 = vshrl.u32 %v1009, 7
    %v1011 = vsub.s32 %v1008, %v1010
    %v1012 = vrot.slane %v1004, %v1011
    %v1014 = vunpack.c.l.s4 1934713408
    %v1015 = vunpack.c.0.s8 %v1014
    %v1016 = vlaneseq
    %v1017 = vshrl.u32 %v1016, 7
    %v1018 = vsub.s32 %v1015, %v1017
    %v1019 = vrot.slane %v1005, %v1018
    %v1020 = vcombine.high %v996, 0.0
    %v1021 = vcombine.high %v1003, 0.0
    %v1022 = vcombine.high %v1012, 0.0
    %v1023 = vcombine.high %v1019, 0.0
    %v1024 = vcombine.low %v928, %v935
    %v1026 = vunpack.c.l.s4 1983009808
    %v1027 = vunpack.c.0.s8 %v1026
    %v1028 = vlaneseq
    %v1029 = vshrl.u32 %v1028, 7
    %v1030 = vsub.s32 %v1027, %v1029
    %v1031 = vrot.slane %v1024, %v1030
    %v1032 = vcombine.low %v952, %v953
    %v1034 = vunpack.c.l.s4 1983009808
    %v1035 = vunpack.c.0.s8 %v1034
    %v1036 = vlaneseq
    %v1037 = vshrl.u32 %v1036, 7
    %v1038 = vsub.s32 %v1035, %v1037
    %v1039 = vrot.slane %v1032, %v1038
    %v1040 = vcombine.low %v944, %v951
    %v1042 = vunpack.c.l.s4 1983009808
    %v1043 = vunpack.c.0.s8 %v1042
    %v1044 = vlaneseq
    %v1045 = vshrl.u32 %v1044, 7
    %v1046 = vsub.s32 %v1043, %v1045
    %v1047 = vrot.slane %v1040, %v1046
    %v1048 = vcombine.low %v954, %v955
    %v1050 = vunpack.c.l.s4 1983009808
    %v1051 = vunpack.c.0.s8 %v1050
    %v1052 = vlaneseq
    %v1053 = vshrl.u32 %v1052, 7
    %v1054 = vsub.s32 %v1051, %v1053
    %v1055 = vrot.slane %v1048, %v1054
    %v1056 = vcombine.low %v1031, %v1039
    %v1057 = vcombine.high %v1031, %v1039
    %v1059 = vunpack.c.l.s4 1934713408
    %v1060 = vunpack.c.0.s8 %v1059
    %v1061 = vlaneseq
    %v1062 = vshrl.u32 %v1061, 7
    %v1063 = vsub.s32 %v1060, %v1062
    %v1064 = vrot.slane %v1056, %v1063
    %v1066 = vunpack.c.l.s4 1934713408
    %v1067 = vunpack.c.0.s8 %v1066
    %v1068 = vlaneseq
    %v1069 = vshrl.u32 %v1068, 7
    %v1070 = vsub.s32 %v1067, %v1069
    %v1071 = vrot.slane %v1057, %v1070
    %v1072 = vcombine.low %v1047, %v1055
    %v1073 = vcombine.high %v1047, %v1055
    %v1075 = vunpack.c.l.s4 1934713408
    %v1076 = vunpack.c.0.s8 %v1075
    %v1077 = vlaneseq
    %v1078 = vshrl.u32 %v1077, 7
    %v1079 = vsub.s32 %v1076, %v1078
    %v1080 = vrot.slane %v1072, %v1079
    %v1082 = vunpack.c.l.s4 1934713408
    %v1083 = vunpack.c.0.s8 %v1082
    %v1084 = vlaneseq
    %v1085 = vshrl.u32 %v1084, 7
    %v1086 = vsub.s32 %v1083, %v1085
    %v1087 = vrot.slane %v1073, %v1086
    %v1088 = vcombine.low %v1064, %v1080
    %v1089 = vcombine.high %v1064, %v1080
    %v1090 = vcombine.low %v1071, %v1087
    %v1091 = vcombine.high %v1071, %v1087
    %v1092 = vcombine.low %v996, %v1003
    %v1094 = vunpack.c.l.s4 1983009808
    %v1095 = vunpack.c.0.s8 %v1094
    %v1096 = vlaneseq
    %v1097 = vshrl.u32 %v1096, 7
    %v1098 = vsub.s32 %v1095, %v1097
    %v1099 = vrot.slane %v1092, %v1098
    %v1100 = vcombine.low %v1020, %v1021
    %v1102 = vunpack.c.l.s4 1983009808
    %v1103 = vunpack.c.0.s8 %v1102
    %v1104 = vlaneseq
    %v1105 = vshrl.u32 %v1104, 7
    %v1106 = vsub.s32 %v1103, %v1105
    %v1107 = vrot.slane %v1100, %v1106
    %v1108 = vcombine.low %v1012, %v1019
    %v1110 = vunpack.c.l.s4 1983009808
    %v1111 = vunpack.c.0.s8 %v1110
    %v1112 = vlaneseq
    %v1113 = vshrl.u32 %v1112, 7
    %v1114 = vsub.s32 %v1111, %v1113
    %v1115 = vrot.slane %v1108, %v1114
    %v1116 = vcombine.low %v1022, %v1023
    %v1118 = vunpack.c.l.s4 1983009808
    %v1119 = vunpack.c.0.s8 %v1118
    %v1120 = vlaneseq
    %v1121 = vshrl.u32 %v1120, 7
    %v1122 = vsub.s32 %v1119, %v1121
    %v1123 = vrot.slane %v1116, %v1122
    %v1124 = vcombine.low %v1099, %v1107
    %v1125 = vcombine.high %v1099, %v1107
    %v1127 = vunpack.c.l.s4 1934713408
    %v1128 = vunpack.c.0.s8 %v1127
    %v1129 = vlaneseq
    %v1130 = vshrl.u32 %v1129, 7
    %v1131 = vsub.s32 %v1128, %v1130
    %v1132 = vrot.slane %v1124, %v1131
    %v1134 = vunpack.c.l.s4 1934713408
    %v1135 = vunpack.c.0.s8 %v1134
    %v1136 = vlaneseq
    %v1137 = vshrl.u32 %v1136, 7
    %v1138 = vsub.s32 %v1135, %v1137
    %v1139 = vrot.slane %v1125, %v1138
    %v1140 = vcombine.low %v1115, %v1123
    %v1141 = vcombine.high %v1115, %v1123
    %v1143 = vunpack.c.l.s4 1934713408
    %v1144 = vunpack.c.0.s8 %v1143
    %v1145 = vlaneseq
    %v1146 = vshrl.u32 %v1145, 7
    %v1147 = vsub.s32 %v1144, %v1146
    %v1148 = vrot.slane %v1140, %v1147
    %v1150 = vunpack.c.l.s4 1934713408
    %v1151 = vunpack.c.0.s8 %v1150
    %v1152 = vlaneseq
    %v1153 = vshrl.u32 %v1152, 7
    %v1154 = vsub.s32 %v1151, %v1153
    %v1155 = vrot.slane %v1141, %v1154
    %v1156 = vcombine.low %v1132, %v1148
    %v1157 = vcombine.high %v1132, %v1148
    %v1158 = vcombine.low %v1139, %v1155
    %v1159 = vcombine.high %v1139, %v1155
    %v1160 = vpack.c.bf16 %v1088, %v1088
    %v1161 = vpack.c.bf16 %v1089, %v1089
    %v1162 = vpack.c.bf16 %v1090, %v1090
    %v1163 = vpack.c.bf16 %v1091, %v1091
    %v1164 = vpack.c.bf16 %v1156, %v1156
    %v1165 = vpack.c.bf16 %v1157, %v1157
    %v1166 = vpack.c.bf16 %v1158, %v1158
    %v1167 = vpack.c.bf16 %v1159, %v1159
    %vm1168 = vcmask 130048
    %v1170 = vsel %vm1168, %v504, 0
    %v1173 = vsel %vm1168, %v796, 0
    %1175 = vmatprep.subr.mxu0 0.0
    %1176 = vmatpush1.xpose.msra.mxu0 0.0
    %1177 = vmatprep.subr.mxu0 0.0
    %1178 = vmatpush1.xpose.msra.mxu0 0.0
    %1179 = vmatprep.subr.mxu0 0.0
    %1180 = vmatpush1.xpose.msra.mxu0 0.0
    %1181 = vmatprep.subr.mxu0 0.0
    %1182 = vmatpush1.xpose.msra.mxu0 0.0
    %1183 = vmatprep.subr.mxu0 0.0
    %1184 = vmatpush1.xpose.msra.mxu0 0.0
    %1185 = vmatprep.subr.mxu0 0.0
    %1186 = vmatpush1.xpose.msra.mxu0 0.0
    %1187 = vmatprep.subr.mxu0 0.0
    %1188 = vmatpush1.xpose.msra.mxu0 0.0
    %1189 = vmatprep.subr.mxu0 0.0
    %1190 = vmatpush1.xpose.msra.mxu0 0.0
    %1191 = vmatprep.subr.mxu0 0.0
    %1192 = vmatpush1.xpose.msra.mxu0 0.0
    %1193 = vmatprep.subr.mxu0 0.0
    %1194 = vmatpush1.xpose.msra.mxu0 0.0
    %1195 = vmatprep.subr.mxu0 0.0
    %1196 = vmatpush1.xpose.msra.mxu0 0.0
    %1197 = vmatprep.subr.mxu0 0.0
    %1198 = vmatpush1.xpose.msra.mxu0 0.0
    %1199 = vmatprep.subr.mxu0 0.0
    %1200 = vmatpush1.xpose.msra.mxu0 0.0
    %1201 = vmatprep.subr.mxu0 0.0
    %1202 = vmatpush1.xpose.msra.mxu0 0.0
    %1203 = vmatprep.subr.mxu0 0.0
    %1204 = vmatpush1.xpose.msra.mxu0 0.0
    %1205 = vmatprep.subr.mxu0 0.0
    %1206 = vmatpush1.xpose.msra.mxu0 %v1173
    %1207 = vmatprep.subr.mxu0 0.0
    %1208 = vmatpush2.xpose.msra.mxu0 0.0
    %1209 = vmatprep.subr.mxu0 0.0
    %1210 = vmatpush2.xpose.msra.mxu0 0.0
    %1211 = vmatprep.subr.mxu0 0.0
    %1212 = vmatpush2.xpose.msra.mxu0 0.0
    %1213 = vmatprep.subr.mxu0 0.0
    %1214 = vmatpush2.xpose.msra.mxu0 0.0
    %1215 = vmatprep.subr.mxu0 0.0
    %1216 = vmatpush2.xpose.msra.mxu0 0.0
    %1217 = vmatprep.subr.mxu0 0.0
    %1218 = vmatpush2.xpose.msra.mxu0 0.0
    %1219 = vmatprep.subr.mxu0 0.0
    %1220 = vmatpush2.xpose.msra.mxu0 0.0
    %1221 = vmatprep.subr.mxu0 0.0
    %1222 = vmatpush2.xpose.msra.mxu0 0.0
    %1223 = vmatprep.subr.mxu0 0.0
    %1224 = vmatpush2.xpose.msra.mxu0 0.0
    %1225 = vmatprep.subr.mxu0 0.0
    %1226 = vmatpush2.xpose.msra.mxu0 0.0
    %1227 = vmatprep.subr.mxu0 0.0
    %1228 = vmatpush2.xpose.msra.mxu0 0.0
    %1229 = vmatprep.subr.mxu0 0.0
    %1230 = vmatpush2.xpose.msra.mxu0 0.0
    %1231 = vmatprep.subr.mxu0 0.0
    %1232 = vmatpush2.xpose.msra.mxu0 0.0
    %1233 = vmatprep.subr.mxu0 0.0
    %1234 = vmatpush2.xpose.msra.mxu0 0.0
    %1235 = vmatprep.subr.mxu0 0.0
    %1236 = vmatpush2.xpose.msra.mxu0 0.0
    %1237 = vmatprep.subr.mxu0 0.0
    %1238 = vmatpush2.xpose.msra.mxu0 0.0
    %1239 = vmatprep.mubr.f32.mxu0 0.0
    %1240 = vmatmul.mubr.f32.gmra.mxu0 %v1170
    %v1241 = vpop.f32.mrf.mxu0
    %v1242 = vadd.f32 0.0, %v1241
    %v1243 = vpop.f32.mrf.mxu0
    %1244 = vdwg.mxu0
    %v1246 = vsel %vm1168, %v505, 0
    %v1249 = vsel %vm1168, %v797, 0
    %1251 = vmatprep.subr.mxu0 0.0
    %1252 = vmatpush1.xpose.msra.mxu0 0.0
    %1253 = vmatprep.subr.mxu0 0.0
    %1254 = vmatpush1.xpose.msra.mxu0 0.0
    %1255 = vmatprep.subr.mxu0 0.0
    %1256 = vmatpush1.xpose.msra.mxu0 0.0
    %1257 = vmatprep.subr.mxu0 0.0
    %1258 = vmatpush1.xpose.msra.mxu0 0.0
    %1259 = vmatprep.subr.mxu0 0.0
    %1260 = vmatpush1.xpose.msra.mxu0 0.0
    %1261 = vmatprep.subr.mxu0 0.0
    %1262 = vmatpush1.xpose.msra.mxu0 0.0
    %1263 = vmatprep.subr.mxu0 0.0
    %1264 = vmatpush1.xpose.msra.mxu0 0.0
    %1265 = vmatprep.subr.mxu0 0.0
    %1266 = vmatpush1.xpose.msra.mxu0 0.0
    %1267 = vmatprep.subr.mxu0 0.0
    %1268 = vmatpush1.xpose.msra.mxu0 0.0
    %1269 = vmatprep.subr.mxu0 0.0
    %1270 = vmatpush1.xpose.msra.mxu0 0.0
    %1271 = vmatprep.subr.mxu0 0.0
    %1272 = vmatpush1.xpose.msra.mxu0 0.0
    %1273 = vmatprep.subr.mxu0 0.0
    %1274 = vmatpush1.xpose.msra.mxu0 0.0
    %1275 = vmatprep.subr.mxu0 0.0
    %1276 = vmatpush1.xpose.msra.mxu0 0.0
    %1277 = vmatprep.subr.mxu0 0.0
    %1278 = vmatpush1.xpose.msra.mxu0 0.0
    %1279 = vmatprep.subr.mxu0 0.0
    %1280 = vmatpush1.xpose.msra.mxu0 0.0
    %1281 = vmatprep.subr.mxu0 0.0
    %1282 = vmatpush1.xpose.msra.mxu0 %v1249
    %1283 = vmatprep.subr.mxu0 0.0
    %1284 = vmatpush2.xpose.msra.mxu0 0.0
    %1285 = vmatprep.subr.mxu0 0.0
    %1286 = vmatpush2.xpose.msra.mxu0 0.0
    %1287 = vmatprep.subr.mxu0 0.0
    %1288 = vmatpush2.xpose.msra.mxu0 0.0
    %1289 = vmatprep.subr.mxu0 0.0
    %1290 = vmatpush2.xpose.msra.mxu0 0.0
    %1291 = vmatprep.subr.mxu0 0.0
    %1292 = vmatpush2.xpose.msra.mxu0 0.0
    %1293 = vmatprep.subr.mxu0 0.0
    %1294 = vmatpush2.xpose.msra.mxu0 0.0
    %1295 = vmatprep.subr.mxu0 0.0
    %1296 = vmatpush2.xpose.msra.mxu0 0.0
    %1297 = vmatprep.subr.mxu0 0.0
    %1298 = vmatpush2.xpose.msra.mxu0 0.0
    %1299 = vmatprep.subr.mxu0 0.0
    %1300 = vmatpush2.xpose.msra.mxu0 0.0
    %1301 = vmatprep.subr.mxu0 0.0
    %1302 = vmatpush2.xpose.msra.mxu0 0.0
    %1303 = vmatprep.subr.mxu0 0.0
    %1304 = vmatpush2.xpose.msra.mxu0 0.0
    %1305 = vmatprep.subr.mxu0 0.0
    %1306 = vmatpush2.xpose.msra.mxu0 0.0
    %1307 = vmatprep.subr.mxu0 0.0
    %1308 = vmatpush2.xpose.msra.mxu0 0.0
    %1309 = vmatprep.subr.mxu0 0.0
    %1310 = vmatpush2.xpose.msra.mxu0 0.0
    %1311 = vmatprep.subr.mxu0 0.0
    %1312 = vmatpush2.xpose.msra.mxu0 0.0
    %1313 = vmatprep.subr.mxu0 0.0
    %1314 = vmatpush2.xpose.msra.mxu0 0.0
    %1315 = vmatprep.mubr.f32.mxu0 0.0
    %1316 = vmatmul.mubr.f32.gmra.mxu0 %v1246
    %v1317 = vpop.f32.mrf.mxu0
    %v1318 = vadd.f32 0.0, %v1317
    %v1319 = vpop.f32.mrf.mxu0
    %1320 = vdwg.mxu0
    %v1322 = vsel %vm1168, %v506, 0
    %v1325 = vsel %vm1168, %v798, 0
    %1327 = vmatprep.subr.mxu0 0.0
    %1328 = vmatpush1.xpose.msra.mxu0 0.0
    %1329 = vmatprep.subr.mxu0 0.0
    %1330 = vmatpush1.xpose.msra.mxu0 0.0
    %1331 = vmatprep.subr.mxu0 0.0
    %1332 = vmatpush1.xpose.msra.mxu0 0.0
    %1333 = vmatprep.subr.mxu0 0.0
    %1334 = vmatpush1.xpose.msra.mxu0 0.0
    %1335 = vmatprep.subr.mxu0 0.0
    %1336 = vmatpush1.xpose.msra.mxu0 0.0
    %1337 = vmatprep.subr.mxu0 0.0
    %1338 = vmatpush1.xpose.msra.mxu0 0.0
    %1339 = vmatprep.subr.mxu0 0.0
    %1340 = vmatpush1.xpose.msra.mxu0 0.0
    %1341 = vmatprep.subr.mxu0 0.0
    %1342 = vmatpush1.xpose.msra.mxu0 0.0
    %1343 = vmatprep.subr.mxu0 0.0
    %1344 = vmatpush1.xpose.msra.mxu0 0.0
    %1345 = vmatprep.subr.mxu0 0.0
    %1346 = vmatpush1.xpose.msra.mxu0 0.0
    %1347 = vmatprep.subr.mxu0 0.0
    %1348 = vmatpush1.xpose.msra.mxu0 0.0
    %1349 = vmatprep.subr.mxu0 0.0
    %1350 = vmatpush1.xpose.msra.mxu0 0.0
    %1351 = vmatprep.subr.mxu0 0.0
    %1352 = vmatpush1.xpose.msra.mxu0 0.0
    %1353 = vmatprep.subr.mxu0 0.0
    %1354 = vmatpush1.xpose.msra.mxu0 0.0
    %1355 = vmatprep.subr.mxu0 0.0
    %1356 = vmatpush1.xpose.msra.mxu0 0.0
    %1357 = vmatprep.subr.mxu0 0.0
    %1358 = vmatpush1.xpose.msra.mxu0 %v1325
    %1359 = vmatprep.subr.mxu0 0.0
    %1360 = vmatpush2.xpose.msra.mxu0 0.0
    %1361 = vmatprep.subr.mxu0 0.0
    %1362 = vmatpush2.xpose.msra.mxu0 0.0
    %1363 = vmatprep.subr.mxu0 0.0
    %1364 = vmatpush2.xpose.msra.mxu0 0.0
    %1365 = vmatprep.subr.mxu0 0.0
    %1366 = vmatpush2.xpose.msra.mxu0 0.0
    %1367 = vmatprep.subr.mxu0 0.0
    %1368 = vmatpush2.xpose.msra.mxu0 0.0
    %1369 = vmatprep.subr.mxu0 0.0
    %1370 = vmatpush2.xpose.msra.mxu0 0.0
    %1371 = vmatprep.subr.mxu0 0.0
    %1372 = vmatpush2.xpose.msra.mxu0 0.0
    %1373 = vmatprep.subr.mxu0 0.0
    %1374 = vmatpush2.xpose.msra.mxu0 0.0
    %1375 = vmatprep.subr.mxu0 0.0
    %1376 = vmatpush2.xpose.msra.mxu0 0.0
    %1377 = vmatprep.subr.mxu0 0.0
    %1378 = vmatpush2.xpose.msra.mxu0 0.0
    %1379 = vmatprep.subr.mxu0 0.0
    %1380 = vmatpush2.xpose.msra.mxu0 0.0
    %1381 = vmatprep.subr.mxu0 0.0
    %1382 = vmatpush2.xpose.msra.mxu0 0.0
    %1383 = vmatprep.subr.mxu0 0.0
    %1384 = vmatpush2.xpose.msra.mxu0 0.0
    %1385 = vmatprep.subr.mxu0 0.0
    %1386 = vmatpush2.xpose.msra.mxu0 0.0
    %1387 = vmatprep.subr.mxu0 0.0
    %1388 = vmatpush2.xpose.msra.mxu0 0.0
    %1389 = vmatprep.subr.mxu0 0.0
    %1390 = vmatpush2.xpose.msra.mxu0 0.0
    %1391 = vmatprep.mubr.f32.mxu0 0.0
    %1392 = vmatmul.mubr.f32.gmra.mxu0 %v1322
    %v1393 = vpop.f32.mrf.mxu0
    %v1394 = vadd.f32 0.0, %v1393
    %v1395 = vpop.f32.mrf.mxu0
    %1396 = vdwg.mxu0
    %v1398 = vsel %vm1168, %v507, 0
    %v1401 = vsel %vm1168, %v799, 0
    %1403 = vmatprep.subr.mxu0 0.0
    %1404 = vmatpush1.xpose.msra.mxu0 0.0
    %1405 = vmatprep.subr.mxu0 0.0
    %1406 = vmatpush1.xpose.msra.mxu0 0.0
    %1407 = vmatprep.subr.mxu0 0.0
    %1408 = vmatpush1.xpose.msra.mxu0 0.0
    %1409 = vmatprep.subr.mxu0 0.0
    %1410 = vmatpush1.xpose.msra.mxu0 0.0
    %1411 = vmatprep.subr.mxu0 0.0
    %1412 = vmatpush1.xpose.msra.mxu0 0.0
    %1413 = vmatprep.subr.mxu0 0.0
    %1414 = vmatpush1.xpose.msra.mxu0 0.0
    %1415 = vmatprep.subr.mxu0 0.0
    %1416 = vmatpush1.xpose.msra.mxu0 0.0
    %1417 = vmatprep.subr.mxu0 0.0
    %1418 = vmatpush1.xpose.msra.mxu0 0.0
    %1419 = vmatprep.subr.mxu0 0.0
    %1420 = vmatpush1.xpose.msra.mxu0 0.0
    %1421 = vmatprep.subr.mxu0 0.0
    %1422 = vmatpush1.xpose.msra.mxu0 0.0
    %1423 = vmatprep.subr.mxu0 0.0
    %1424 = vmatpush1.xpose.msra.mxu0 0.0
    %1425 = vmatprep.subr.mxu0 0.0
    %1426 = vmatpush1.xpose.msra.mxu0 0.0
    %1427 = vmatprep.subr.mxu0 0.0
    %1428 = vmatpush1.xpose.msra.mxu0 0.0
    %1429 = vmatprep.subr.mxu0 0.0
    %1430 = vmatpush1.xpose.msra.mxu0 0.0
    %1431 = vmatprep.subr.mxu0 0.0
    %1432 = vmatpush1.xpose.msra.mxu0 0.0
    %1433 = vmatprep.subr.mxu0 0.0
    %1434 = vmatpush1.xpose.msra.mxu0 %v1401
    %1435 = vmatprep.subr.mxu0 0.0
    %1436 = vmatpush2.xpose.msra.mxu0 0.0
    %1437 = vmatprep.subr.mxu0 0.0
    %1438 = vmatpush2.xpose.msra.mxu0 0.0
    %1439 = vmatprep.subr.mxu0 0.0
    %1440 = vmatpush2.xpose.msra.mxu0 0.0
    %1441 = vmatprep.subr.mxu0 0.0
    %1442 = vmatpush2.xpose.msra.mxu0 0.0
    %1443 = vmatprep.subr.mxu0 0.0
    %1444 = vmatpush2.xpose.msra.mxu0 0.0
    %1445 = vmatprep.subr.mxu0 0.0
    %1446 = vmatpush2.xpose.msra.mxu0 0.0
    %1447 = vmatprep.subr.mxu0 0.0
    %1448 = vmatpush2.xpose.msra.mxu0 0.0
    %1449 = vmatprep.subr.mxu0 0.0
    %1450 = vmatpush2.xpose.msra.mxu0 0.0
    %1451 = vmatprep.subr.mxu0 0.0
    %1452 = vmatpush2.xpose.msra.mxu0 0.0
    %1453 = vmatprep.subr.mxu0 0.0
    %1454 = vmatpush2.xpose.msra.mxu0 0.0
    %1455 = vmatprep.subr.mxu0 0.0
    %1456 = vmatpush2.xpose.msra.mxu0 0.0
    %1457 = vmatprep.subr.mxu0 0.0
    %1458 = vmatpush2.xpose.msra.mxu0 0.0
    %1459 = vmatprep.subr.mxu0 0.0
    %1460 = vmatpush2.xpose.msra.mxu0 0.0
    %1461 = vmatprep.subr.mxu0 0.0
    %1462 = vmatpush2.xpose.msra.mxu0 0.0
    %1463 = vmatprep.subr.mxu0 0.0
    %1464 = vmatpush2.xpose.msra.mxu0 0.0
    %1465 = vmatprep.subr.mxu0 0.0
    %1466 = vmatpush2.xpose.msra.mxu0 0.0
    %1467 = vmatprep.mubr.f32.mxu0 0.0
    %1468 = vmatmul.mubr.f32.gmra.mxu0 %v1398
    %v1469 = vpop.f32.mrf.mxu0
    %v1470 = vadd.f32 0.0, %v1469
    %v1471 = vpop.f32.mrf.mxu0
    %1472 = vdwg.mxu0
    %v1474 = vsel %vm1168, %v572, 0
    %v1477 = vsel %vm1168, %v864, 0
    %1479 = vmatprep.subr.mxu0 0.0
    %1480 = vmatpush1.xpose.msra.mxu0 0.0
    %1481 = vmatprep.subr.mxu0 0.0
    %1482 = vmatpush1.xpose.msra.mxu0 0.0
    %1483 = vmatprep.subr.mxu0 0.0
    %1484 = vmatpush1.xpose.msra.mxu0 0.0
    %1485 = vmatprep.subr.mxu0 0.0
    %1486 = vmatpush1.xpose.msra.mxu0 0.0
    %1487 = vmatprep.subr.mxu0 0.0
    %1488 = vmatpush1.xpose.msra.mxu0 0.0
    %1489 = vmatprep.subr.mxu0 0.0
    %1490 = vmatpush1.xpose.msra.mxu0 0.0
    %1491 = vmatprep.subr.mxu0 0.0
    %1492 = vmatpush1.xpose.msra.mxu0 0.0
    %1493 = vmatprep.subr.mxu0 0.0
    %1494 = vmatpush1.xpose.msra.mxu0 0.0
    %1495 = vmatprep.subr.mxu0 0.0
    %1496 = vmatpush1.xpose.msra.mxu0 0.0
    %1497 = vmatprep.subr.mxu0 0.0
    %1498 = vmatpush1.xpose.msra.mxu0 0.0
    %1499 = vmatprep.subr.mxu0 0.0
    %1500 = vmatpush1.xpose.msra.mxu0 0.0
    %1501 = vmatprep.subr.mxu0 0.0
    %1502 = vmatpush1.xpose.msra.mxu0 0.0
    %1503 = vmatprep.subr.mxu0 0.0
    %1504 = vmatpush1.xpose.msra.mxu0 0.0
    %1505 = vmatprep.subr.mxu0 0.0
    %1506 = vmatpush1.xpose.msra.mxu0 0.0
    %1507 = vmatprep.subr.mxu0 0.0
    %1508 = vmatpush1.xpose.msra.mxu0 0.0
    %1509 = vmatprep.subr.mxu0 0.0
    %1510 = vmatpush1.xpose.msra.mxu0 %v1477
    %1511 = vmatprep.subr.mxu0 0.0
    %1512 = vmatpush2.xpose.msra.mxu0 0.0
    %1513 = vmatprep.subr.mxu0 0.0
    %1514 = vmatpush2.xpose.msra.mxu0 0.0
    %1515 = vmatprep.subr.mxu0 0.0
    %1516 = vmatpush2.xpose.msra.mxu0 0.0
    %1517 = vmatprep.subr.mxu0 0.0
    %1518 = vmatpush2.xpose.msra.mxu0 0.0
    %1519 = vmatprep.subr.mxu0 0.0
    %1520 = vmatpush2.xpose.msra.mxu0 0.0
    %1521 = vmatprep.subr.mxu0 0.0
    %1522 = vmatpush2.xpose.msra.mxu0 0.0
    %1523 = vmatprep.subr.mxu0 0.0
    %1524 = vmatpush2.xpose.msra.mxu0 0.0
    %1525 = vmatprep.subr.mxu0 0.0
    %1526 = vmatpush2.xpose.msra.mxu0 0.0
    %1527 = vmatprep.subr.mxu0 0.0
    %1528 = vmatpush2.xpose.msra.mxu0 0.0
    %1529 = vmatprep.subr.mxu0 0.0
    %1530 = vmatpush2.xpose.msra.mxu0 0.0
    %1531 = vmatprep.subr.mxu0 0.0
    %1532 = vmatpush2.xpose.msra.mxu0 0.0
    %1533 = vmatprep.subr.mxu0 0.0
    %1534 = vmatpush2.xpose.msra.mxu0 0.0
    %1535 = vmatprep.subr.mxu0 0.0
    %1536 = vmatpush2.xpose.msra.mxu0 0.0
    %1537 = vmatprep.subr.mxu0 0.0
    %1538 = vmatpush2.xpose.msra.mxu0 0.0
    %1539 = vmatprep.subr.mxu0 0.0
    %1540 = vmatpush2.xpose.msra.mxu0 0.0
    %1541 = vmatprep.subr.mxu0 0.0
    %1542 = vmatpush2.xpose.msra.mxu0 0.0
    %1543 = vmatprep.mubr.f32.mxu0 0.0
    %1544 = vmatmul.mubr.f32.gmra.mxu0 %v1474
    %v1545 = vpop.f32.mrf.mxu0
    %v1546 = vadd.f32 0.0, %v1545
    %v1547 = vpop.f32.mrf.mxu0
    %1548 = vdwg.mxu0
    %v1550 = vsel %vm1168, %v573, 0
    %v1553 = vsel %vm1168, %v865, 0
    %1555 = vmatprep.subr.mxu0 0.0
    %1556 = vmatpush1.xpose.msra.mxu0 0.0
    %1557 = vmatprep.subr.mxu0 0.0
    %1558 = vmatpush1.xpose.msra.mxu0 0.0
    %1559 = vmatprep.subr.mxu0 0.0
    %1560 = vmatpush1.xpose.msra.mxu0 0.0
    %1561 = vmatprep.subr.mxu0 0.0
    %1562 = vmatpush1.xpose.msra.mxu0 0.0
    %1563 = vmatprep.subr.mxu0 0.0
    %1564 = vmatpush1.xpose.msra.mxu0 0.0
    %1565 = vmatprep.subr.mxu0 0.0
    %1566 = vmatpush1.xpose.msra.mxu0 0.0
    %1567 = vmatprep.subr.mxu0 0.0
    %1568 = vmatpush1.xpose.msra.mxu0 0.0
    %1569 = vmatprep.subr.mxu0 0.0
    %1570 = vmatpush1.xpose.msra.mxu0 0.0
    %1571 = vmatprep.subr.mxu0 0.0
    %1572 = vmatpush1.xpose.msra.mxu0 0.0
    %1573 = vmatprep.subr.mxu0 0.0
    %1574 = vmatpush1.xpose.msra.mxu0 0.0
    %1575 = vmatprep.subr.mxu0 0.0
    %1576 = vmatpush1.xpose.msra.mxu0 0.0
    %1577 = vmatprep.subr.mxu0 0.0
    %1578 = vmatpush1.xpose.msra.mxu0 0.0
    %1579 = vmatprep.subr.mxu0 0.0
    %1580 = vmatpush1.xpose.msra.mxu0 0.0
    %1581 = vmatprep.subr.mxu0 0.0
    %1582 = vmatpush1.xpose.msra.mxu0 0.0
    %1583 = vmatprep.subr.mxu0 0.0
    %1584 = vmatpush1.xpose.msra.mxu0 0.0
    %1585 = vmatprep.subr.mxu0 0.0
    %1586 = vmatpush1.xpose.msra.mxu0 %v1553
    %1587 = vmatprep.subr.mxu0 0.0
    %1588 = vmatpush2.xpose.msra.mxu0 0.0
    %1589 = vmatprep.subr.mxu0 0.0
    %1590 = vmatpush2.xpose.msra.mxu0 0.0
    %1591 = vmatprep.subr.mxu0 0.0
    %1592 = vmatpush2.xpose.msra.mxu0 0.0
    %1593 = vmatprep.subr.mxu0 0.0
    %1594 = vmatpush2.xpose.msra.mxu0 0.0
    %1595 = vmatprep.subr.mxu0 0.0
    %1596 = vmatpush2.xpose.msra.mxu0 0.0
    %1597 = vmatprep.subr.mxu0 0.0
    %1598 = vmatpush2.xpose.msra.mxu0 0.0
    %1599 = vmatprep.subr.mxu0 0.0
    %1600 = vmatpush2.xpose.msra.mxu0 0.0
    %1601 = vmatprep.subr.mxu0 0.0
    %1602 = vmatpush2.xpose.msra.mxu0 0.0
    %1603 = vmatprep.subr.mxu0 0.0
    %1604 = vmatpush2.xpose.msra.mxu0 0.0
    %1605 = vmatprep.subr.mxu0 0.0
    %1606 = vmatpush2.xpose.msra.mxu0 0.0
    %1607 = vmatprep.subr.mxu0 0.0
    %1608 = vmatpush2.xpose.msra.mxu0 0.0
    %1609 = vmatprep.subr.mxu0 0.0
    %1610 = vmatpush2.xpose.msra.mxu0 0.0
    %1611 = vmatprep.subr.mxu0 0.0
    %1612 = vmatpush2.xpose.msra.mxu0 0.0
    %1613 = vmatprep.subr.mxu0 0.0
    %1614 = vmatpush2.xpose.msra.mxu0 0.0
    %1615 = vmatprep.subr.mxu0 0.0
    %1616 = vmatpush2.xpose.msra.mxu0 0.0
    %1617 = vmatprep.subr.mxu0 0.0
    %1618 = vmatpush2.xpose.msra.mxu0 0.0
    %1619 = vmatprep.mubr.f32.mxu0 0.0
    %1620 = vmatmul.mubr.f32.gmra.mxu0 %v1550
    %v1621 = vpop.f32.mrf.mxu0
    %v1622 = vadd.f32 0.0, %v1621
    %v1623 = vpop.f32.mrf.mxu0
    %1624 = vdwg.mxu0
    %v1626 = vsel %vm1168, %v574, 0
    %v1629 = vsel %vm1168, %v866, 0
    %1631 = vmatprep.subr.mxu0 0.0
    %1632 = vmatpush1.xpose.msra.mxu0 0.0
    %1633 = vmatprep.subr.mxu0 0.0
    %1634 = vmatpush1.xpose.msra.mxu0 0.0
    %1635 = vmatprep.subr.mxu0 0.0
    %1636 = vmatpush1.xpose.msra.mxu0 0.0
    %1637 = vmatprep.subr.mxu0 0.0
    %1638 = vmatpush1.xpose.msra.mxu0 0.0
    %1639 = vmatprep.subr.mxu0 0.0
    %1640 = vmatpush1.xpose.msra.mxu0 0.0
    %1641 = vmatprep.subr.mxu0 0.0
    %1642 = vmatpush1.xpose.msra.mxu0 0.0
    %1643 = vmatprep.subr.mxu0 0.0
    %1644 = vmatpush1.xpose.msra.mxu0 0.0
    %1645 = vmatprep.subr.mxu0 0.0
    %1646 = vmatpush1.xpose.msra.mxu0 0.0
    %1647 = vmatprep.subr.mxu0 0.0
    %1648 = vmatpush1.xpose.msra.mxu0 0.0
    %1649 = vmatprep.subr.mxu0 0.0
    %1650 = vmatpush1.xpose.msra.mxu0 0.0
    %1651 = vmatprep.subr.mxu0 0.0
    %1652 = vmatpush1.xpose.msra.mxu0 0.0
    %1653 = vmatprep.subr.mxu0 0.0
    %1654 = vmatpush1.xpose.msra.mxu0 0.0
    %1655 = vmatprep.subr.mxu0 0.0
    %1656 = vmatpush1.xpose.msra.mxu0 0.0
    %1657 = vmatprep.subr.mxu0 0.0
    %1658 = vmatpush1.xpose.msra.mxu0 0.0
    %1659 = vmatprep.subr.mxu0 0.0
    %1660 = vmatpush1.xpose.msra.mxu0 0.0
    %1661 = vmatprep.subr.mxu0 0.0
    %1662 = vmatpush1.xpose.msra.mxu0 %v1629
    %1663 = vmatprep.subr.mxu0 0.0
    %1664 = vmatpush2.xpose.msra.mxu0 0.0
    %1665 = vmatprep.subr.mxu0 0.0
    %1666 = vmatpush2.xpose.msra.mxu0 0.0
    %1667 = vmatprep.subr.mxu0 0.0
    %1668 = vmatpush2.xpose.msra.mxu0 0.0
    %1669 = vmatprep.subr.mxu0 0.0
    %1670 = vmatpush2.xpose.msra.mxu0 0.0
    %1671 = vmatprep.subr.mxu0 0.0
    %1672 = vmatpush2.xpose.msra.mxu0 0.0
    %1673 = vmatprep.subr.mxu0 0.0
    %1674 = vmatpush2.xpose.msra.mxu0 0.0
    %1675 = vmatprep.subr.mxu0 0.0
    %1676 = vmatpush2.xpose.msra.mxu0 0.0
    %1677 = vmatprep.subr.mxu0 0.0
    %1678 = vmatpush2.xpose.msra.mxu0 0.0
    %1679 = vmatprep.subr.mxu0 0.0
    %1680 = vmatpush2.xpose.msra.mxu0 0.0
    %1681 = vmatprep.subr.mxu0 0.0
    %1682 = vmatpush2.xpose.msra.mxu0 0.0
    %1683 = vmatprep.subr.mxu0 0.0
    %1684 = vmatpush2.xpose.msra.mxu0 0.0
    %1685 = vmatprep.subr.mxu0 0.0
    %1686 = vmatpush2.xpose.msra.mxu0 0.0
    %1687 = vmatprep.subr.mxu0 0.0
    %1688 = vmatpush2.xpose.msra.mxu0 0.0
    %1689 = vmatprep.subr.mxu0 0.0
    %1690 = vmatpush2.xpose.msra.mxu0 0.0
    %1691 = vmatprep.subr.mxu0 0.0
    %1692 = vmatpush2.xpose.msra.mxu0 0.0
    %1693 = vmatprep.subr.mxu0 0.0
    %1694 = vmatpush2.xpose.msra.mxu0 0.0
    %1695 = vmatprep.mubr.f32.mxu0 0.0
    %1696 = vmatmul.mubr.f32.gmra.mxu0 %v1626
    %v1697 = vpop.f32.mrf.mxu0
    %v1698 = vadd.f32 0.0, %v1697
    %v1699 = vpop.f32.mrf.mxu0
    %1700 = vdwg.mxu0
    %v1702 = vsel %vm1168, %v575, 0
    %v1705 = vsel %vm1168, %v867, 0
    %1707 = vmatprep.subr.mxu0 0.0
    %1708 = vmatpush1.xpose.msra.mxu0 0.0
    %1709 = vmatprep.subr.mxu0 0.0
    %1710 = vmatpush1.xpose.msra.mxu0 0.0
    %1711 = vmatprep.subr.mxu0 0.0
    %1712 = vmatpush1.xpose.msra.mxu0 0.0
    %1713 = vmatprep.subr.mxu0 0.0
    %1714 = vmatpush1.xpose.msra.mxu0 0.0
    %1715 = vmatprep.subr.mxu0 0.0
    %1716 = vmatpush1.xpose.msra.mxu0 0.0
    %1717 = vmatprep.subr.mxu0 0.0
    %1718 = vmatpush1.xpose.msra.mxu0 0.0
    %1719 = vmatprep.subr.mxu0 0.0
    %1720 = vmatpush1.xpose.msra.mxu0 0.0
    %1721 = vmatprep.subr.mxu0 0.0
    %1722 = vmatpush1.xpose.msra.mxu0 0.0
    %1723 = vmatprep.subr.mxu0 0.0
    %1724 = vmatpush1.xpose.msra.mxu0 0.0
    %1725 = vmatprep.subr.mxu0 0.0
    %1726 = vmatpush1.xpose.msra.mxu0 0.0
    %1727 = vmatprep.subr.mxu0 0.0
    %1728 = vmatpush1.xpose.msra.mxu0 0.0
    %1729 = vmatprep.subr.mxu0 0.0
    %1730 = vmatpush1.xpose.msra.mxu0 0.0
    %1731 = vmatprep.subr.mxu0 0.0
    %1732 = vmatpush1.xpose.msra.mxu0 0.0
    %1733 = vmatprep.subr.mxu0 0.0
    %1734 = vmatpush1.xpose.msra.mxu0 0.0
    %1735 = vmatprep.subr.mxu0 0.0
    %1736 = vmatpush1.xpose.msra.mxu0 0.0
    %1737 = vmatprep.subr.mxu0 0.0
    %1738 = vmatpush1.xpose.msra.mxu0 %v1705
    %1739 = vmatprep.subr.mxu0 0.0
    %1740 = vmatpush2.xpose.msra.mxu0 0.0
    %1741 = vmatprep.subr.mxu0 0.0
    %1742 = vmatpush2.xpose.msra.mxu0 0.0
    %1743 = vmatprep.subr.mxu0 0.0
    %1744 = vmatpush2.xpose.msra.mxu0 0.0
    %1745 = vmatprep.subr.mxu0 0.0
    %1746 = vmatpush2.xpose.msra.mxu0 0.0
    %1747 = vmatprep.subr.mxu0 0.0
    %1748 = vmatpush2.xpose.msra.mxu0 0.0
    %1749 = vmatprep.subr.mxu0 0.0
    %1750 = vmatpush2.xpose.msra.mxu0 0.0
    %1751 = vmatprep.subr.mxu0 0.0
    %1752 = vmatpush2.xpose.msra.mxu0 0.0
    %1753 = vmatprep.subr.mxu0 0.0
    %1754 = vmatpush2.xpose.msra.mxu0 0.0
    %1755 = vmatprep.subr.mxu0 0.0
    %1756 = vmatpush2.xpose.msra.mxu0 0.0
    %1757 = vmatprep.subr.mxu0 0.0
    %1758 = vmatpush2.xpose.msra.mxu0 0.0
    %1759 = vmatprep.subr.mxu0 0.0
    %1760 = vmatpush2.xpose.msra.mxu0 0.0
    %1761 = vmatprep.subr.mxu0 0.0
    %1762 = vmatpush2.xpose.msra.mxu0 0.0
    %1763 = vmatprep.subr.mxu0 0.0
    %1764 = vmatpush2.xpose.msra.mxu0 0.0
    %1765 = vmatprep.subr.mxu0 0.0
    %1766 = vmatpush2.xpose.msra.mxu0 0.0
    %1767 = vmatprep.subr.mxu0 0.0
    %1768 = vmatpush2.xpose.msra.mxu0 0.0
    %1769 = vmatprep.subr.mxu0 0.0
    %1770 = vmatpush2.xpose.msra.mxu0 0.0
    %1771 = vmatprep.mubr.f32.mxu0 0.0
    %1772 = vmatmul.mubr.f32.gmra.mxu0 %v1702
    %v1773 = vpop.f32.mrf.mxu0
    %v1774 = vadd.f32 0.0, %v1773
    %v1775 = vpop.f32.mrf.mxu0
    %1776 = vdwg.mxu0
    %vm1777 = vcmask 64512
    %v1778 = vsel %vm1777, %v1242, -inf
    %1779 = vmax.xlane.f32.xlu0 %v1778
    %v1780 = vpop.xlane.xlu0 %1779
    %v1781 = vsel %vm1777, %v1318, -inf
    %1782 = vmax.xlane.f32.xlu0 %v1781
    %v1783 = vpop.xlane.xlu0 %1782
    %v1784 = vsel %vm1777, %v1394, -inf
    %1785 = vmax.xlane.f32.xlu0 %v1784
    %v1786 = vpop.xlane.xlu0 %1785
    %v1787 = vsel %vm1777, %v1470, -inf
    %1788 = vmax.xlane.f32.xlu0 %v1787
    %v1789 = vpop.xlane.xlu0 %1788
    %v1790 = vsel %vm1777, %v1546, -inf
    %1791 = vmax.xlane.f32.xlu0 %v1790
    %v1792 = vpop.xlane.xlu0 %1791
    %v1793 = vsel %vm1777, %v1622, -inf
    %1794 = vmax.xlane.f32.xlu0 %v1793
    %v1795 = vpop.xlane.xlu0 %1794
    %v1796 = vsel %vm1777, %v1698, -inf
    %1797 = vmax.xlane.f32.xlu0 %v1796
    %v1798 = vpop.xlane.xlu0 %1797
    %v1799 = vsel %vm1777, %v1774, -inf
    %1800 = vmax.xlane.f32.xlu0 %v1799
    %v1801 = vpop.xlane.xlu0 %1800
    %v1802 = vsub.f32 %v1242, %v1780
    %v1803 = vsub.f32 %v1318, %v1783
    %v1804 = vsub.f32 %v1394, %v1786
    %v1805 = vsub.f32 %v1470, %v1789
    %v1806 = vsub.f32 %v1546, %v1792
    %v1807 = vsub.f32 %v1622, %v1795
    %v1808 = vsub.f32 %v1698, %v1798
    %v1809 = vsub.f32 %v1774, %v1801
    %v1810 = vmul.f32 %v1802, 1.442695
    %v1811 = vpow.pop %v1810
    %v1812 = vmul.f32 %v1803, 1.442695
    %v1813 = vpow.pop %v1812
    %v1814 = vmul.f32 %v1804, 1.442695
    %v1815 = vpow.pop %v1814
    %v1816 = vmul.f32 %v1805, 1.442695
    %v1817 = vpow.pop %v1816
    %v1818 = vmul.f32 %v1806, 1.442695
    %v1819 = vpow.pop %v1818
    %v1820 = vmul.f32 %v1807, 1.442695
    %v1821 = vpow.pop %v1820
    %v1822 = vmul.f32 %v1808, 1.442695
    %v1823 = vpow.pop %v1822
    %v1824 = vmul.f32 %v1809, 1.442695
    %v1825 = vpow.pop %v1824
    %v1826 = vsel %vm1777, %v1811, 0.0
    %1827 = vadd.xlane.f32.xlu0 %v1826
    %v1828 = vpop.xlane.xlu0 %1827
    %v1829 = vsel %vm1777, %v1813, 0.0
    %1830 = vadd.xlane.f32.xlu0 %v1829
    %v1831 = vpop.xlane.xlu0 %1830
    %v1832 = vsel %vm1777, %v1815, 0.0
    %1833 = vadd.xlane.f32.xlu0 %v1832
    %v1834 = vpop.xlane.xlu0 %1833
    %v1835 = vsel %vm1777, %v1817, 0.0
    %1836 = vadd.xlane.f32.xlu0 %v1835
    %v1837 = vpop.xlane.xlu0 %1836
    %v1838 = vsel %vm1777, %v1819, 0.0
    %1839 = vadd.xlane.f32.xlu0 %v1838
    %v1840 = vpop.xlane.xlu0 %1839
    %v1841 = vsel %vm1777, %v1821, 0.0
    %1842 = vadd.xlane.f32.xlu0 %v1841
    %v1843 = vpop.xlane.xlu0 %1842
    %v1844 = vsel %vm1777, %v1823, 0.0
    %1845 = vadd.xlane.f32.xlu0 %v1844
    %v1846 = vpop.xlane.xlu0 %1845
    %v1847 = vsel %vm1777, %v1825, 0.0
    %1848 = vadd.xlane.f32.xlu0 %v1847
    %v1849 = vpop.xlane.xlu0 %1848
    %v1850 = vpack.c.bf16 %v1811, %v1811
    %v1851 = vpack.c.bf16 %v1813, %v1813
    %v1852 = vpack.c.bf16 %v1815, %v1815
    %v1853 = vpack.c.bf16 %v1817, %v1817
    %v1854 = vpack.c.bf16 %v1819, %v1819
    %v1855 = vpack.c.bf16 %v1821, %v1821
    %v1856 = vpack.c.bf16 %v1823, %v1823
    %v1857 = vpack.c.bf16 %v1825, %v1825
    %v1859 = vsel %vm1777, %v1850, 0
    %vm1861 = vcmask 1043456
    %v1863 = vsel %vm1861, %v1160, 0
    %1865 = vmatprep.subr.bf16.mxu0 0
    %1866 = vmatpush1.bf16.msra.mxu0 0
    %1867 = vmatprep.subr.bf16.mxu0 0
    %1868 = vmatpush1.bf16.msra.mxu0 0
    %1869 = vmatprep.subr.bf16.mxu0 0
    %1870 = vmatpush1.bf16.msra.mxu0 0
    %1871 = vmatprep.subr.bf16.mxu0 0
    %1872 = vmatpush1.bf16.msra.mxu0 0
    %1873 = vmatprep.subr.bf16.mxu0 0
    %1874 = vmatpush1.bf16.msra.mxu0 0
    %1875 = vmatprep.subr.bf16.mxu0 0
    %1876 = vmatpush1.bf16.msra.mxu0 0
    %1877 = vmatprep.subr.bf16.mxu0 0
    %1878 = vmatpush1.bf16.msra.mxu0 0
    %1879 = vmatprep.subr.bf16.mxu0 0
    %1880 = vmatpush1.bf16.msra.mxu0 %v1863
    %1881 = vmatprep.subr.bf16.mxu0 0
    %1882 = vmatpush2.bf16.msra.mxu0 0
    %1883 = vmatprep.subr.bf16.mxu0 0
    %1884 = vmatpush2.bf16.msra.mxu0 0
    %1885 = vmatprep.subr.bf16.mxu0 0
    %1886 = vmatpush2.bf16.msra.mxu0 0
    %1887 = vmatprep.subr.bf16.mxu0 0
    %1888 = vmatpush2.bf16.msra.mxu0 0
    %1889 = vmatprep.subr.bf16.mxu0 0
    %1890 = vmatpush2.bf16.msra.mxu0 0
    %1891 = vmatprep.subr.bf16.mxu0 0
    %1892 = vmatpush2.bf16.msra.mxu0 0
    %1893 = vmatprep.subr.bf16.mxu0 0
    %1894 = vmatpush2.bf16.msra.mxu0 0
    %1895 = vmatprep.subr.bf16.mxu0 0
    %1896 = vmatpush2.bf16.msra.mxu0 0
    %1897 = vmatprep.mubr.bf16.mxu0 0
    %1898 = vmatmul.mubr.bf16.gmra.mxu0 %v1859
    %v1899 = vpop.f32.mrf.mxu0
    %v1900 = vadd.f32 0.0, %v1899
    %v1901 = vpop.f32.mrf.mxu0
    %v1902 = vpop.f32.mrf.mxu0
    %v1903 = vpop.f32.mrf.mxu0
    %1904 = vdwg.mxu0
    %v1906 = vsel %vm1777, %v1851, 0
    %v1909 = vsel %vm1861, %v1161, 0
    %1911 = vmatprep.subr.bf16.mxu0 0
    %1912 = vmatpush1.bf16.msra.mxu0 0
    %1913 = vmatprep.subr.bf16.mxu0 0
    %1914 = vmatpush1.bf16.msra.mxu0 0
    %1915 = vmatprep.subr.bf16.mxu0 0
    %1916 = vmatpush1.bf16.msra.mxu0 0
    %1917 = vmatprep.subr.bf16.mxu0 0
    %1918 = vmatpush1.bf16.msra.mxu0 0
    %1919 = vmatprep.subr.bf16.mxu0 0
    %1920 = vmatpush1.bf16.msra.mxu0 0
    %1921 = vmatprep.subr.bf16.mxu0 0
    %1922 = vmatpush1.bf16.msra.mxu0 0
    %1923 = vmatprep.subr.bf16.mxu0 0
    %1924 = vmatpush1.bf16.msra.mxu0 0
    %1925 = vmatprep.subr.bf16.mxu0 0
    %1926 = vmatpush1.bf16.msra.mxu0 %v1909
    %1927 = vmatprep.subr.bf16.mxu0 0
    %1928 = vmatpush2.bf16.msra.mxu0 0
    %1929 = vmatprep.subr.bf16.mxu0 0
    %1930 = vmatpush2.bf16.msra.mxu0 0
    %1931 = vmatprep.subr.bf16.mxu0 0
    %1932 = vmatpush2.bf16.msra.mxu0 0
    %1933 = vmatprep.subr.bf16.mxu0 0
    %1934 = vmatpush2.bf16.msra.mxu0 0
    %1935 = vmatprep.subr.bf16.mxu0 0
    %1936 = vmatpush2.bf16.msra.mxu0 0
    %1937 = vmatprep.subr.bf16.mxu0 0
    %1938 = vmatpush2.bf16.msra.mxu0 0
    %1939 = vmatprep.subr.bf16.mxu0 0
    %1940 = vmatpush2.bf16.msra.mxu0 0
    %1941 = vmatprep.subr.bf16.mxu0 0
    %1942 = vmatpush2.bf16.msra.mxu0 0
    %1943 = vmatprep.mubr.bf16.mxu0 0
    %1944 = vmatmul.mubr.bf16.gmra.mxu0 %v1906
    %v1945 = vpop.f32.mrf.mxu0
    %v1946 = vadd.f32 0.0, %v1945
    %v1947 = vpop.f32.mrf.mxu0
    %v1948 = vpop.f32.mrf.mxu0
    %v1949 = vpop.f32.mrf.mxu0
    %1950 = vdwg.mxu0
    %v1952 = vsel %vm1777, %v1852, 0
    %v1955 = vsel %vm1861, %v1162, 0
    %1957 = vmatprep.subr.bf16.mxu0 0
    %1958 = vmatpush1.bf16.msra.mxu0 0
    %1959 = vmatprep.subr.bf16.mxu0 0
    %1960 = vmatpush1.bf16.msra.mxu0 0
    %1961 = vmatprep.subr.bf16.mxu0 0
    %1962 = vmatpush1.bf16.msra.mxu0 0
    %1963 = vmatprep.subr.bf16.mxu0 0
    %1964 = vmatpush1.bf16.msra.mxu0 0
    %1965 = vmatprep.subr.bf16.mxu0 0
    %1966 = vmatpush1.bf16.msra.mxu0 0
    %1967 = vmatprep.subr.bf16.mxu0 0
    %1968 = vmatpush1.bf16.msra.mxu0 0
    %1969 = vmatprep.subr.bf16.mxu0 0
    %1970 = vmatpush1.bf16.msra.mxu0 0
    %1971 = vmatprep.subr.bf16.mxu0 0
    %1972 = vmatpush1.bf16.msra.mxu0 %v1955
    %1973 = vmatprep.subr.bf16.mxu0 0
    %1974 = vmatpush2.bf16.msra.mxu0 0
    %1975 = vmatprep.subr.bf16.mxu0 0
    %1976 = vmatpush2.bf16.msra.mxu0 0
    %1977 = vmatprep.subr.bf16.mxu0 0
    %1978 = vmatpush2.bf16.msra.mxu0 0
    %1979 = vmatprep.subr.bf16.mxu0 0
    %1980 = vmatpush2.bf16.msra.mxu0 0
    %1981 = vmatprep.subr.bf16.mxu0 0
    %1982 = vmatpush2.bf16.msra.mxu0 0
    %1983 = vmatprep.subr.bf16.mxu0 0
    %1984 = vmatpush2.bf16.msra.mxu0 0
    %1985 = vmatprep.subr.bf16.mxu0 0
    %1986 = vmatpush2.bf16.msra.mxu0 0
    %1987 = vmatprep.subr.bf16.mxu0 0
    %1988 = vmatpush2.bf16.msra.mxu0 0
    %1989 = vmatprep.mubr.bf16.mxu0 0
    %1990 = vmatmul.mubr.bf16.gmra.mxu0 %v1952
    %v1991 = vpop.f32.mrf.mxu0
    %v1992 = vadd.f32 0.0, %v1991
    %v1993 = vpop.f32.mrf.mxu0
    %v1994 = vpop.f32.mrf.mxu0
    %v1995 = vpop.f32.mrf.mxu0
    %1996 = vdwg.mxu0
    %v1998 = vsel %vm1777, %v1853, 0
    %v2001 = vsel %vm1861, %v1163, 0
    %2003 = vmatprep.subr.bf16.mxu0 0
    %2004 = vmatpush1.bf16.msra.mxu0 0
    %2005 = vmatprep.subr.bf16.mxu0 0
    %2006 = vmatpush1.bf16.msra.mxu0 0
    %2007 = vmatprep.subr.bf16.mxu0 0
    %2008 = vmatpush1.bf16.msra.mxu0 0
    %2009 = vmatprep.subr.bf16.mxu0 0
    %2010 = vmatpush1.bf16.msra.mxu0 0
    %2011 = vmatprep.subr.bf16.mxu0 0
    %2012 = vmatpush1.bf16.msra.mxu0 0
    %2013 = vmatprep.subr.bf16.mxu0 0
    %2014 = vmatpush1.bf16.msra.mxu0 0
    %2015 = vmatprep.subr.bf16.mxu0 0
    %2016 = vmatpush1.bf16.msra.mxu0 0
    %2017 = vmatprep.subr.bf16.mxu0 0
    %2018 = vmatpush1.bf16.msra.mxu0 %v2001
    %2019 = vmatprep.subr.bf16.mxu0 0
    %2020 = vmatpush2.bf16.msra.mxu0 0
    %2021 = vmatprep.subr.bf16.mxu0 0
    %2022 = vmatpush2.bf16.msra.mxu0 0
    %2023 = vmatprep.subr.bf16.mxu0 0
    %2024 = vmatpush2.bf16.msra.mxu0 0
    %2025 = vmatprep.subr.bf16.mxu0 0
    %2026 = vmatpush2.bf16.msra.mxu0 0
    %2027 = vmatprep.subr.bf16.mxu0 0
    %2028 = vmatpush2.bf16.msra.mxu0 0
    %2029 = vmatprep.subr.bf16.mxu0 0
    %2030 = vmatpush2.bf16.msra.mxu0 0
    %2031 = vmatprep.subr.bf16.mxu0 0
    %2032 = vmatpush2.bf16.msra.mxu0 0
    %2033 = vmatprep.subr.bf16.mxu0 0
    %2034 = vmatpush2.bf16.msra.mxu0 0
    %2035 = vmatprep.mubr.bf16.mxu0 0
    %2036 = vmatmul.mubr.bf16.gmra.mxu0 %v1998
    %v2037 = vpop.f32.mrf.mxu0
    %v2038 = vadd.f32 0.0, %v2037
    %v2039 = vpop.f32.mrf.mxu0
    %v2040 = vpop.f32.mrf.mxu0
    %v2041 = vpop.f32.mrf.mxu0
    %2042 = vdwg.mxu0
    %v2044 = vsel %vm1777, %v1854, 0
    %v2047 = vsel %vm1861, %v1164, 0
    %2049 = vmatprep.subr.bf16.mxu0 0
    %2050 = vmatpush1.bf16.msra.mxu0 0
    %2051 = vmatprep.subr.bf16.mxu0 0
    %2052 = vmatpush1.bf16.msra.mxu0 0
    %2053 = vmatprep.subr.bf16.mxu0 0
    %2054 = vmatpush1.bf16.msra.mxu0 0
    %2055 = vmatprep.subr.bf16.mxu0 0
    %2056 = vmatpush1.bf16.msra.mxu0 0
    %2057 = vmatprep.subr.bf16.mxu0 0
    %2058 = vmatpush1.bf16.msra.mxu0 0
    %2059 = vmatprep.subr.bf16.mxu0 0
    %2060 = vmatpush1.bf16.msra.mxu0 0
    %2061 = vmatprep.subr.bf16.mxu0 0
    %2062 = vmatpush1.bf16.msra.mxu0 0
    %2063 = vmatprep.subr.bf16.mxu0 0
    %2064 = vmatpush1.bf16.msra.mxu0 %v2047
    %2065 = vmatprep.subr.bf16.mxu0 0
    %2066 = vmatpush2.bf16.msra.mxu0 0
    %2067 = vmatprep.subr.bf16.mxu0 0
    %2068 = vmatpush2.bf16.msra.mxu0 0
    %2069 = vmatprep.subr.bf16.mxu0 0
    %2070 = vmatpush2.bf16.msra.mxu0 0
    %2071 = vmatprep.subr.bf16.mxu0 0
    %2072 = vmatpush2.bf16.msra.mxu0 0
    %2073 = vmatprep.subr.bf16.mxu0 0
    %2074 = vmatpush2.bf16.msra.mxu0 0
    %2075 = vmatprep.subr.bf16.mxu0 0
    %2076 = vmatpush2.bf16.msra.mxu0 0
    %2077 = vmatprep.subr.bf16.mxu0 0
    %2078 = vmatpush2.bf16.msra.mxu0 0
    %2079 = vmatprep.subr.bf16.mxu0 0
    %2080 = vmatpush2.bf16.msra.mxu0 0
    %2081 = vmatprep.mubr.bf16.mxu0 0
    %2082 = vmatmul.mubr.bf16.gmra.mxu0 %v2044
    %v2083 = vpop.f32.mrf.mxu0
    %v2084 = vadd.f32 0.0, %v2083
    %v2085 = vpop.f32.mrf.mxu0
    %v2086 = vpop.f32.mrf.mxu0
    %v2087 = vpop.f32.mrf.mxu0
    %2088 = vdwg.mxu0
    %v2090 = vsel %vm1777, %v1855, 0
    %v2093 = vsel %vm1861, %v1165, 0
    %2095 = vmatprep.subr.bf16.mxu0 0
    %2096 = vmatpush1.bf16.msra.mxu0 0
    %2097 = vmatprep.subr.bf16.mxu0 0
    %2098 = vmatpush1.bf16.msra.mxu0 0
    %2099 = vmatprep.subr.bf16.mxu0 0
    %2100 = vmatpush1.bf16.msra.mxu0 0
    %2101 = vmatprep.subr.bf16.mxu0 0
    %2102 = vmatpush1.bf16.msra.mxu0 0
    %2103 = vmatprep.subr.bf16.mxu0 0
    %2104 = vmatpush1.bf16.msra.mxu0 0
    %2105 = vmatprep.subr.bf16.mxu0 0
    %2106 = vmatpush1.bf16.msra.mxu0 0
    %2107 = vmatprep.subr.bf16.mxu0 0
    %2108 = vmatpush1.bf16.msra.mxu0 0
    %2109 = vmatprep.subr.bf16.mxu0 0
    %2110 = vmatpush1.bf16.msra.mxu0 %v2093
    %2111 = vmatprep.subr.bf16.mxu0 0
    %2112 = vmatpush2.bf16.msra.mxu0 0
    %2113 = vmatprep.subr.bf16.mxu0 0
    %2114 = vmatpush2.bf16.msra.mxu0 0
    %2115 = vmatprep.subr.bf16.mxu0 0
    %2116 = vmatpush2.bf16.msra.mxu0 0
    %2117 = vmatprep.subr.bf16.mxu0 0
    %2118 = vmatpush2.bf16.msra.mxu0 0
    %2119 = vmatprep.subr.bf16.mxu0 0
    %2120 = vmatpush2.bf16.msra.mxu0 0
    %2121 = vmatprep.subr.bf16.mxu0 0
    %2122 = vmatpush2.bf16.msra.mxu0 0
    %2123 = vmatprep.subr.bf16.mxu0 0
    %2124 = vmatpush2.bf16.msra.mxu0 0
    %2125 = vmatprep.subr.bf16.mxu0 0
    %2126 = vmatpush2.bf16.msra.mxu0 0
    %2127 = vmatprep.mubr.bf16.mxu0 0
    %2128 = vmatmul.mubr.bf16.gmra.mxu0 %v2090
    %v2129 = vpop.f32.mrf.mxu0
    %v2130 = vadd.f32 0.0, %v2129
    %v2131 = vpop.f32.mrf.mxu0
    %v2132 = vpop.f32.mrf.mxu0
    %v2133 = vpop.f32.mrf.mxu0
    %2134 = vdwg.mxu0
    %v2136 = vsel %vm1777, %v1856, 0
    %v2139 = vsel %vm1861, %v1166, 0
    %2141 = vmatprep.subr.bf16.mxu0 0
    %2142 = vmatpush1.bf16.msra.mxu0 0
    %2143 = vmatprep.subr.bf16.mxu0 0
    %2144 = vmatpush1.bf16.msra.mxu0 0
    %2145 = vmatprep.subr.bf16.mxu0 0
    %2146 = vmatpush1.bf16.msra.mxu0 0
    %2147 = vmatprep.subr.bf16.mxu0 0
    %2148 = vmatpush1.bf16.msra.mxu0 0
    %2149 = vmatprep.subr.bf16.mxu0 0
    %2150 = vmatpush1.bf16.msra.mxu0 0
    %2151 = vmatprep.subr.bf16.mxu0 0
    %2152 = vmatpush1.bf16.msra.mxu0 0
    %2153 = vmatprep.subr.bf16.mxu0 0
    %2154 = vmatpush1.bf16.msra.mxu0 0
    %2155 = vmatprep.subr.bf16.mxu0 0
    %2156 = vmatpush1.bf16.msra.mxu0 %v2139
    %2157 = vmatprep.subr.bf16.mxu0 0
    %2158 = vmatpush2.bf16.msra.mxu0 0
    %2159 = vmatprep.subr.bf16.mxu0 0
    %2160 = vmatpush2.bf16.msra.mxu0 0
    %2161 = vmatprep.subr.bf16.mxu0 0
    %2162 = vmatpush2.bf16.msra.mxu0 0
    %2163 = vmatprep.subr.bf16.mxu0 0
    %2164 = vmatpush2.bf16.msra.mxu0 0
    %2165 = vmatprep.subr.bf16.mxu0 0
    %2166 = vmatpush2.bf16.msra.mxu0 0
    %2167 = vmatprep.subr.bf16.mxu0 0
    %2168 = vmatpush2.bf16.msra.mxu0 0
    %2169 = vmatprep.subr.bf16.mxu0 0
    %2170 = vmatpush2.bf16.msra.mxu0 0
    %2171 = vmatprep.subr.bf16.mxu0 0
    %2172 = vmatpush2.bf16.msra.mxu0 0
    %2173 = vmatprep.mubr.bf16.mxu0 0
    %2174 = vmatmul.mubr.bf16.gmra.mxu0 %v2136
    %v2175 = vpop.f32.mrf.mxu0
    %v2176 = vadd.f32 0.0, %v2175
    %v2177 = vpop.f32.mrf.mxu0
    %v2178 = vpop.f32.mrf.mxu0
    %v2179 = vpop.f32.mrf.mxu0
    %2180 = vdwg.mxu0
    %v2182 = vsel %vm1777, %v1857, 0
    %v2185 = vsel %vm1861, %v1167, 0
    %2187 = vmatprep.subr.bf16.mxu0 0
    %2188 = vmatpush1.bf16.msra.mxu0 0
    %2189 = vmatprep.subr.bf16.mxu0 0
    %2190 = vmatpush1.bf16.msra.mxu0 0
    %2191 = vmatprep.subr.bf16.mxu0 0
    %2192 = vmatpush1.bf16.msra.mxu0 0
    %2193 = vmatprep.subr.bf16.mxu0 0
    %2194 = vmatpush1.bf16.msra.mxu0 0
    %2195 = vmatprep.subr.bf16.mxu0 0
    %2196 = vmatpush1.bf16.msra.mxu0 0
    %2197 = vmatprep.subr.bf16.mxu0 0
    %2198 = vmatpush1.bf16.msra.mxu0 0
    %2199 = vmatprep.subr.bf16.mxu0 0
    %2200 = vmatpush1.bf16.msra.mxu0 0
    %2201 = vmatprep.subr.bf16.mxu0 0
    %2202 = vmatpush1.bf16.msra.mxu0 %v2185
    %2203 = vmatprep.subr.bf16.mxu0 0
    %2204 = vmatpush2.bf16.msra.mxu0 0
    %2205 = vmatprep.subr.bf16.mxu0 0
    %2206 = vmatpush2.bf16.msra.mxu0 0
    %2207 = vmatprep.subr.bf16.mxu0 0
    %2208 = vmatpush2.bf16.msra.mxu0 0
    %2209 = vmatprep.subr.bf16.mxu0 0
    %2210 = vmatpush2.bf16.msra.mxu0 0
    %2211 = vmatprep.subr.bf16.mxu0 0
    %2212 = vmatpush2.bf16.msra.mxu0 0
    %2213 = vmatprep.subr.bf16.mxu0 0
    %2214 = vmatpush2.bf16.msra.mxu0 0
    %2215 = vmatprep.subr.bf16.mxu0 0
    %2216 = vmatpush2.bf16.msra.mxu0 0
    %2217 = vmatprep.subr.bf16.mxu0 0
    %2218 = vmatpush2.bf16.msra.mxu0 0
    %2219 = vmatprep.mubr.bf16.mxu0 0
    %2220 = vmatmul.mubr.bf16.gmra.mxu0 %v2182
    %v2221 = vpop.f32.mrf.mxu0
    %v2222 = vadd.f32 0.0, %v2221
    %v2223 = vpop.f32.mrf.mxu0
    %v2224 = vpop.f32.mrf.mxu0
    %v2225 = vpop.f32.mrf.mxu0
    %2226 = vdwg.mxu0
    %v2227 = vrcp.pop %v1828
    %v2228 = vrcp.pop %v1831
    %v2229 = vrcp.pop %v1834
    %v2230 = vrcp.pop %v1837
    %v2231 = vrcp.pop %v1840
    %v2232 = vrcp.pop %v1843
    %v2233 = vrcp.pop %v1846
    %v2234 = vrcp.pop %v1849
    %v2235 = vmul.f32 %v1900, %v2227
    %v2236 = vmul.f32 %v1946, %v2228
    %v2237 = vmul.f32 %v1992, %v2229
    %v2238 = vmul.f32 %v2038, %v2230
    %v2239 = vmul.f32 %v2084, %v2231
    %v2240 = vmul.f32 %v2130, %v2232
    %v2241 = vmul.f32 %v2176, %v2233
    %v2242 = vmul.f32 %v2222, %v2234
    %v2243 = vcombine.low %v2235, %v2237
    %v2244 = vcombine.high %v2235, %v2237
    %v2246 = vunpack.c.l.s4 1983009808
    %v2247 = vunpack.c.0.s8 %v2246
    %v2248 = vlaneseq
    %v2249 = vshrl.u32 %v2248, 7
    %v2250 = vsub.s32 %v2247, %v2249
    %v2251 = vrot.slane %v2243, %v2250
    %v2253 = vunpack.c.l.s4 1983009808
    %v2254 = vunpack.c.0.s8 %v2253
    %v2255 = vlaneseq
    %v2256 = vshrl.u32 %v2255, 7
    %v2257 = vsub.s32 %v2254, %v2256
    %v2258 = vrot.slane %v2244, %v2257
    %v2259 = vcombine.low %v2236, %v2238
    %v2260 = vcombine.high %v2236, %v2238
    %v2262 = vunpack.c.l.s4 1983009808
    %v2263 = vunpack.c.0.s8 %v2262
    %v2264 = vlaneseq
    %v2265 = vshrl.u32 %v2264, 7
    %v2266 = vsub.s32 %v2263, %v2265
    %v2267 = vrot.slane %v2259, %v2266
    %v2269 = vunpack.c.l.s4 1983009808
    %v2270 = vunpack.c.0.s8 %v2269
    %v2271 = vlaneseq
    %v2272 = vshrl.u32 %v2271, 7
    %v2273 = vsub.s32 %v2270, %v2272
    %v2274 = vrot.slane %v2260, %v2273
    %v2275 = vcombine.low %v2251, %v2267
    %v2276 = vcombine.high %v2251, %v2267
    %v2278 = vunpack.c.l.s4 1934713408
    %v2279 = vunpack.c.0.s8 %v2278
    %v2280 = vlaneseq
    %v2281 = vshrl.u32 %v2280, 7
    %v2282 = vsub.s32 %v2279, %v2281
    %v2283 = vrot.slane %v2275, %v2282
    %v2285 = vunpack.c.l.s4 1934713408
    %v2286 = vunpack.c.0.s8 %v2285
    %v2287 = vlaneseq
    %v2288 = vshrl.u32 %v2287, 7
    %v2289 = vsub.s32 %v2286, %v2288
    %v2290 = vrot.slane %v2276, %v2289
    %v2291 = vcombine.low %v2258, %v2274
    %v2292 = vcombine.high %v2258, %v2274
    %v2294 = vunpack.c.l.s4 1934713408
    %v2295 = vunpack.c.0.s8 %v2294
    %v2296 = vlaneseq
    %v2297 = vshrl.u32 %v2296, 7
    %v2298 = vsub.s32 %v2295, %v2297
    %v2299 = vrot.slane %v2291, %v2298
    %v2301 = vunpack.c.l.s4 1934713408
    %v2302 = vunpack.c.0.s8 %v2301
    %v2303 = vlaneseq
    %v2304 = vshrl.u32 %v2303, 7
    %v2305 = vsub.s32 %v2302, %v2304
    %v2306 = vrot.slane %v2292, %v2305
    %v2307 = vcombine.high %v2283, 0.0
    %v2308 = vcombine.high %v2290, 0.0
    %v2309 = vcombine.high %v2299, 0.0
    %v2310 = vcombine.high %v2306, 0.0
    %v2311 = vcombine.low %v2239, %v2241
    %v2312 = vcombine.high %v2239, %v2241
    %v2314 = vunpack.c.l.s4 1983009808
    %v2315 = vunpack.c.0.s8 %v2314
    %v2316 = vlaneseq
    %v2317 = vshrl.u32 %v2316, 7
    %v2318 = vsub.s32 %v2315, %v2317
    %v2319 = vrot.slane %v2311, %v2318
    %v2321 = vunpack.c.l.s4 1983009808
    %v2322 = vunpack.c.0.s8 %v2321
    %v2323 = vlaneseq
    %v2324 = vshrl.u32 %v2323, 7
    %v2325 = vsub.s32 %v2322, %v2324
    %v2326 = vrot.slane %v2312, %v2325
    %v2327 = vcombine.low %v2240, %v2242
    %v2328 = vcombine.high %v2240, %v2242
    %v2330 = vunpack.c.l.s4 1983009808
    %v2331 = vunpack.c.0.s8 %v2330
    %v2332 = vlaneseq
    %v2333 = vshrl.u32 %v2332, 7
    %v2334 = vsub.s32 %v2331, %v2333
    %v2335 = vrot.slane %v2327, %v2334
    %v2337 = vunpack.c.l.s4 1983009808
    %v2338 = vunpack.c.0.s8 %v2337
    %v2339 = vlaneseq
    %v2340 = vshrl.u32 %v2339, 7
    %v2341 = vsub.s32 %v2338, %v2340
    %v2342 = vrot.slane %v2328, %v2341
    %v2343 = vcombine.low %v2319, %v2335
    %v2344 = vcombine.high %v2319, %v2335
    %v2346 = vunpack.c.l.s4 1934713408
    %v2347 = vunpack.c.0.s8 %v2346
    %v2348 = vlaneseq
    %v2349 = vshrl.u32 %v2348, 7
    %v2350 = vsub.s32 %v2347, %v2349
    %v2351 = vrot.slane %v2343, %v2350
    %v2353 = vunpack.c.l.s4 1934713408
    %v2354 = vunpack.c.0.s8 %v2353
    %v2355 = vlaneseq
    %v2356 = vshrl.u32 %v2355, 7
    %v2357 = vsub.s32 %v2354, %v2356
    %v2358 = vrot.slane %v2344, %v2357
    %v2359 = vcombine.low %v2326, %v2342
    %v2360 = vcombine.high %v2326, %v2342
    %v2362 = vunpack.c.l.s4 1934713408
    %v2363 = vunpack.c.0.s8 %v2362
    %v2364 = vlaneseq
    %v2365 = vshrl.u32 %v2364, 7
    %v2366 = vsub.s32 %v2363, %v2365
    %v2367 = vrot.slane %v2359, %v2366
    %v2369 = vunpack.c.l.s4 1934713408
    %v2370 = vunpack.c.0.s8 %v2369
    %v2371 = vlaneseq
    %v2372 = vshrl.u32 %v2371, 7
    %v2373 = vsub.s32 %v2370, %v2372
    %v2374 = vrot.slane %v2360, %v2373
    %v2375 = vcombine.high %v2351, 0.0
    %v2376 = vcombine.high %v2358, 0.0
    %v2377 = vcombine.high %v2367, 0.0
    %v2378 = vcombine.high %v2374, 0.0
    %v2379 = vcombine.low %v2283, %v2290
    %v2381 = vunpack.c.l.s4 1983009808
    %v2382 = vunpack.c.0.s8 %v2381
    %v2383 = vlaneseq
    %v2384 = vshrl.u32 %v2383, 7
    %v2385 = vsub.s32 %v2382, %v2384
    %v2386 = vrot.slane %v2379, %v2385
    %v2387 = vcombine.low %v2307, %v2308
    %v2389 = vunpack.c.l.s4 1983009808
    %v2390 = vunpack.c.0.s8 %v2389
    %v2391 = vlaneseq
    %v2392 = vshrl.u32 %v2391, 7
    %v2393 = vsub.s32 %v2390, %v2392
    %v2394 = vrot.slane %v2387, %v2393
    %v2395 = vcombine.low %v2299, %v2306
    %v2397 = vunpack.c.l.s4 1983009808
    %v2398 = vunpack.c.0.s8 %v2397
    %v2399 = vlaneseq
    %v2400 = vshrl.u32 %v2399, 7
    %v2401 = vsub.s32 %v2398, %v2400
    %v2402 = vrot.slane %v2395, %v2401
    %v2403 = vcombine.low %v2309, %v2310
    %v2405 = vunpack.c.l.s4 1983009808
    %v2406 = vunpack.c.0.s8 %v2405
    %v2407 = vlaneseq
    %v2408 = vshrl.u32 %v2407, 7
    %v2409 = vsub.s32 %v2406, %v2408
    %v2410 = vrot.slane %v2403, %v2409
    %v2411 = vcombine.low %v2386, %v2394
    %v2412 = vcombine.high %v2386, %v2394
    %v2414 = vunpack.c.l.s4 1934713408
    %v2415 = vunpack.c.0.s8 %v2414
    %v2416 = vlaneseq
    %v2417 = vshrl.u32 %v2416, 7
    %v2418 = vsub.s32 %v2415, %v2417
    %v2419 = vrot.slane %v2411, %v2418
    %v2421 = vunpack.c.l.s4 1934713408
    %v2422 = vunpack.c.0.s8 %v2421
    %v2423 = vlaneseq
    %v2424 = vshrl.u32 %v2423, 7
    %v2425 = vsub.s32 %v2422, %v2424
    %v2426 = vrot.slane %v2412, %v2425
    %v2427 = vcombine.low %v2402, %v2410
    %v2428 = vcombine.high %v2402, %v2410
    %v2430 = vunpack.c.l.s4 1934713408
    %v2431 = vunpack.c.0.s8 %v2430
    %v2432 = vlaneseq
    %v2433 = vshrl.u32 %v2432, 7
    %v2434 = vsub.s32 %v2431, %v2433
    %v2435 = vrot.slane %v2427, %v2434
    %v2437 = vunpack.c.l.s4 1934713408
    %v2438 = vunpack.c.0.s8 %v2437
    %v2439 = vlaneseq
    %v2440 = vshrl.u32 %v2439, 7
    %v2441 = vsub.s32 %v2438, %v2440
    %v2442 = vrot.slane %v2428, %v2441
    %v2443 = vcombine.low %v2419, %v2435
    %v2444 = vcombine.high %v2419, %v2435
    %v2445 = vcombine.low %v2426, %v2442
    %v2446 = vcombine.high %v2426, %v2442
    %v2447 = vcombine.low %v2351, %v2358
    %v2449 = vunpack.c.l.s4 1983009808
    %v2450 = vunpack.c.0.s8 %v2449
    %v2451 = vlaneseq
    %v2452 = vshrl.u32 %v2451, 7
    %v2453 = vsub.s32 %v2450, %v2452
    %v2454 = vrot.slane %v2447, %v2453
    %v2455 = vcombine.low %v2375, %v2376
    %v2457 = vunpack.c.l.s4 1983009808
    %v2458 = vunpack.c.0.s8 %v2457
    %v2459 = vlaneseq
    %v2460 = vshrl.u32 %v2459, 7
    %v2461 = vsub.s32 %v2458, %v2460
    %v2462 = vrot.slane %v2455, %v2461
    %v2463 = vcombine.low %v2367, %v2374
    %v2465 = vunpack.c.l.s4 1983009808
    %v2466 = vunpack.c.0.s8 %v2465
    %v2467 = vlaneseq
    %v2468 = vshrl.u32 %v2467, 7
    %v2469 = vsub.s32 %v2466, %v2468
    %v2470 = vrot.slane %v2463, %v2469
    %v2471 = vcombine.low %v2377, %v2378
    %v2473 = vunpack.c.l.s4 1983009808
    %v2474 = vunpack.c.0.s8 %v2473
    %v2475 = vlaneseq
    %v2476 = vshrl.u32 %v2475, 7
    %v2477 = vsub.s32 %v2474, %v2476
    %v2478 = vrot.slane %v2471, %v2477
    %v2479 = vcombine.low %v2454, %v2462
    %v2480 = vcombine.high %v2454, %v2462
    %v2482 = vunpack.c.l.s4 1934713408
    %v2483 = vunpack.c.0.s8 %v2482
    %v2484 = vlaneseq
    %v2485 = vshrl.u32 %v2484, 7
    %v2486 = vsub.s32 %v2483, %v2485
    %v2487 = vrot.slane %v2479, %v2486
    %v2489 = vunpack.c.l.s4 1934713408
    %v2490 = vunpack.c.0.s8 %v2489
    %v2491 = vlaneseq
    %v2492 = vshrl.u32 %v2491, 7
    %v2493 = vsub.s32 %v2490, %v2492
    %v2494 = vrot.slane %v2480, %v2493
    %v2495 = vcombine.low %v2470, %v2478
    %v2496 = vcombine.high %v2470, %v2478
    %v2498 = vunpack.c.l.s4 1934713408
    %v2499 = vunpack.c.0.s8 %v2498
    %v2500 = vlaneseq
    %v2501 = vshrl.u32 %v2500, 7
    %v2502 = vsub.s32 %v2499, %v2501
    %v2503 = vrot.slane %v2495, %v2502
    %v2505 = vunpack.c.l.s4 1934713408
    %v2506 = vunpack.c.0.s8 %v2505
    %v2507 = vlaneseq
    %v2508 = vshrl.u32 %v2507, 7
    %v2509 = vsub.s32 %v2506, %v2508
    %v2510 = vrot.slane %v2496, %v2509
    %v2511 = vcombine.low %v2487, %v2503
    %v2512 = vcombine.high %v2487, %v2503
    %v2513 = vcombine.low %v2494, %v2510
    %v2514 = vcombine.high %v2494, %v2510
    %2517 = vrot.lane.b32.xlu0 %v2444, 16
    %v2518 = vpop.permute.xlu0 %2517
    %2519 = vrot.lane.b32.xlu0 %v2512, 16
    %v2520 = vpop.permute.xlu0 %2519
    %2525 = vrot.lane.b32.xlu0 %v2445, 32
    %v2526 = vpop.permute.xlu0 %2525
    %2527 = vrot.lane.b32.xlu0 %v2513, 32
    %v2528 = vpop.permute.xlu0 %2527
    %2533 = vrot.lane.b32.xlu0 %v2446, 48
    %v2534 = vpop.permute.xlu0 %2533
    %2535 = vrot.lane.b32.xlu0 %v2514, 48
    %v2536 = vpop.permute.xlu0 %2535
    %v2539 = vsel %vm1168, %v2443, %v2518
    %v2540 = vsel %vm1168, %v2511, %v2520
    %v2541 = vsel %vm42, %v2539, %v2526
    %v2542 = vsel %vm42, %v2540, %v2528
    %vm2543 = vcmask 392192
    %v2544 = vsel %vm2543, %v2541, %v2534
    %v2545 = vsel %vm2543, %v2542, %v2536
    %v2546 = vld [vmem:[%s4] sm:$0xff]
    %v2547 = vld [vmem:[%s4 + $0x8] sm:$0xff]
    %v2548 = vld [vmem:[%s4 + $0x10] sm:$0xff]
    %v2549 = vld [vmem:[%s4 + $0x18] sm:$0xff]
    %v2550 = vld [vmem:[%s4 + $0x20] sm:$0xff]
    %v2551 = vld [vmem:[%s4 + $0x28] sm:$0xff]
    %v2552 = vld [vmem:[%s4 + $0x30] sm:$0xff]
    %v2553 = vld [vmem:[%s4 + $0x38] sm:$0xff]
    %vm2554 = vcmask 523264
    %v2556 = vsel %vm2554, %v2544, 0
    %v2559 = vsel %vm2554, %v2545, 0
    %2561 = vmatprep.subr.mxu0 0.0
    %2562 = vmatpush1.msra.mxu0 0.0
    %2563 = vmatprep.subr.mxu0 0.0
    %2564 = vmatpush1.msra.mxu0 0.0
    %2565 = vmatprep.subr.mxu0 0.0
    %2566 = vmatpush1.msra.mxu0 0.0
    %2567 = vmatprep.subr.mxu0 0.0
    %2568 = vmatpush1.msra.mxu0 0.0
    %2569 = vmatprep.subr.mxu0 0.0
    %2570 = vmatpush1.msra.mxu0 0.0
    %2571 = vmatprep.subr.mxu0 0.0
    %2572 = vmatpush1.msra.mxu0 0.0
    %2573 = vmatprep.subr.mxu0 0.0
    %2574 = vmatpush1.msra.mxu0 0.0
    %2575 = vmatprep.subr.mxu0 0.0
    %2576 = vmatpush1.msra.mxu0 0.0
    %2577 = vmatprep.subr.mxu0 0.0
    %2578 = vmatpush1.msra.mxu0 %v2553
    %2579 = vmatprep.subr.mxu0 0.0
    %2580 = vmatpush1.msra.mxu0 %v2552
    %2581 = vmatprep.subr.mxu0 0.0
    %2582 = vmatpush1.msra.mxu0 %v2551
    %2583 = vmatprep.subr.mxu0 0.0
    %2584 = vmatpush1.msra.mxu0 %v2550
    %2585 = vmatprep.subr.mxu0 0.0
    %2586 = vmatpush1.msra.mxu0 %v2549
    %2587 = vmatprep.subr.mxu0 0.0
    %2588 = vmatpush1.msra.mxu0 %v2548
    %2589 = vmatprep.subr.mxu0 0.0
    %2590 = vmatpush1.msra.mxu0 %v2547
    %2591 = vmatprep.subr.mxu0 0.0
    %2592 = vmatpush1.msra.mxu0 %v2546
    %2593 = vmatprep.subr.mxu0 0.0
    %2594 = vmatpush2.msra.mxu0 0.0
    %2595 = vmatprep.subr.mxu0 0.0
    %2596 = vmatpush2.msra.mxu0 0.0
    %2597 = vmatprep.subr.mxu0 0.0
    %2598 = vmatpush2.msra.mxu0 0.0
    %2599 = vmatprep.subr.mxu0 0.0
    %2600 = vmatpush2.msra.mxu0 0.0
    %2601 = vmatprep.subr.mxu0 0.0
    %2602 = vmatpush2.msra.mxu0 0.0
    %2603 = vmatprep.subr.mxu0 0.0
    %2604 = vmatpush2.msra.mxu0 0.0
    %2605 = vmatprep.subr.mxu0 0.0
    %2606 = vmatpush2.msra.mxu0 0.0
    %2607 = vmatprep.subr.mxu0 0.0
    %2608 = vmatpush2.msra.mxu0 0.0
    %2609 = vmatprep.subr.mxu0 0.0
    %2610 = vmatpush2.msra.mxu0 0.0
    %2611 = vmatprep.subr.mxu0 0.0
    %2612 = vmatpush2.msra.mxu0 0.0
    %2613 = vmatprep.subr.mxu0 0.0
    %2614 = vmatpush2.msra.mxu0 0.0
    %2615 = vmatprep.subr.mxu0 0.0
    %2616 = vmatpush2.msra.mxu0 0.0
    %2617 = vmatprep.subr.mxu0 0.0
    %2618 = vmatpush2.msra.mxu0 0.0
    %2619 = vmatprep.subr.mxu0 0.0
    %2620 = vmatpush2.msra.mxu0 0.0
    %2621 = vmatprep.subr.mxu0 0.0
    %2622 = vmatpush2.msra.mxu0 0.0
    %2623 = vmatprep.subr.mxu0 0.0
    %2624 = vmatpush2.msra.mxu0 0.0
    %2625 = vmatprep.mubr.f32.mxu0 0.0
    %2626 = vmatmul.mubr.f32.gmra.mxu0 %v2556
    %v2627 = vpop.f32.mrf.mxu0
    %v2628 = vadd.f32 0.0, %v2627
    %v2629 = vpop.f32.mrf.mxu0
    %2630 = vmatprep.mubr.f32.mxu0 0.0
    %2631 = vmatmul.mubr.f32.gmra.mxu0 %v2559
    %v2632 = vpop.f32.mrf.mxu0
    %v2633 = vadd.f32 0.0, %v2632
    %v2634 = vpop.f32.mrf.mxu0
    %2635 = vdwg.mxu0
    %2636 = vst.msk [vmem:[#allocation5] sm:$0xff] %vm42, %v2628
    %2637 = vst.msk [vmem:[#allocation5 + $0x8] sm:$0xff] %vm42, %v2633
    // Predicated region
    $region26: #{tpu_custom_call.1} parent=1 // pred_check
      _
    $region27: #{tpu_custom_call.1} parent=1 // pred_check_branch
      %2639 = sbr.rel (0) target = $region29
    $region28: #{tpu_custom_call.1} parent=1 // pred_region
      %s2641 = ssub.s32 256, 256
      %2642 = vsyncadd [#allocation4], %s2641
      %s2643 = sshll.u32 [#allocation5], 4
      %s2644 = int_to_ptr.vmem [resolvable:$true] %s2643
      %2649 = dma.vmem_to_hbm [thread:$0]  %s2644, 256, %s5, [#allocation4], 128, 128, 8
    $region29: #{tpu_custom_call.1} parent=1 // pred_fallthru
      _
    // Predicated region
    $region30: #{tpu_custom_call.1} parent=1 // pred_check
      _
    $region31: #{tpu_custom_call.1} parent=1 // pred_check_branch
      %2651 = sbr.rel (0) target = $region33
    $region32: #{tpu_custom_call.1} parent=1 // pred_region
      %2652 = dma.done [#allocation4], 256
    $region33: #{tpu_custom_call.1} parent=1 // pred_fallthru
      _
    %2653 = vsyncpa [#allocation3], 1
    %2654 = vsyncpa [#allocation4], 1

</llo_original>
